<compile_context>
chip_gen: v7x
topology: tpu7x:2x2x1
jax: 0.10.0
libtpu: 0.0.40
codegen_flags: <defaults>
</compile_context>

<pallas_src>
import jax
import jax.numpy as jnp
from jax.experimental import pallas as pl
from jax.experimental.pallas import tpu as pltpu


# -----------------------------------------------------------------------------
# Fused kernel (one batch element per grid step, everything resident in VMEM):
#   a1 = vlin1(x_pad)                       (act(0)=0, so zero padding stays zero)
#   y1 = conv1_3x3(a1) + b1                 (9 lane-shifted slices of the padded map)
#   a2 = vlin2(y1) * wrap_mask              (wrap columns zeroed -> conv2's zero padding)
#   y2 = conv2_3x3(pad(a2)) + b2 + Ks @ x   (1x1 G3 shortcut fused)
# -----------------------------------------------------------------------------
def _make_upblock_kernel(H, W, cin3, cout3):
    Wp = W + 2
    n_out = H * Wp
    P = (H + 2) * Wp + 2          # +2 trailing zeros so the last tap's slice stays in bounds
    taps = tuple(kh * Wp + kw for kh in range(3) for kw in range(3))

    def kernel(xp_ref, k1_ref, b1_ref, k2_ref, b2_ref, ks_ref,
               wg1_ref, bg1_ref, wg2_ref, bg2_ref, mask_ref, o_ref):
        io = xp_ref.dtype
        xp = xp_ref[...]                                            # (cin3, P)
        xpf = xp.astype(jnp.float32)

        # act1 (vlin): x * sigmoid(Wg1 @ x + bg1); computed ONCE per pixel.
        g1 = jax.nn.sigmoid(
            jnp.dot(wg1_ref[...], xpf, preferred_element_type=jnp.float32) + bg1_ref[...])
        a1 = (xpf * g1).astype(io)                                  # (cin3, P), pad stays 0

        # conv1: 9 accumulating MXU dots over lane-shifted views (in-kernel im2col).
        y1 = jnp.zeros((cout3, n_out), jnp.float32)
        for t, off in enumerate(taps):
            y1 = y1 + jnp.dot(k1_ref[t], a1[:, off:off + n_out],
                              preferred_element_type=jnp.float32)
        y1 = y1 + b1_ref[...]

        # act2 fused as conv1's epilogue; zero the wrap columns so they act as conv2's padding.
        g2 = jax.nn.sigmoid(
            jnp.dot(wg2_ref[...], y1, preferred_element_type=jnp.float32) + bg2_ref[...])
        a2 = (y1 * g2 * mask_ref[...]).astype(io)                   # (cout3, n_out)
        zpad = jnp.zeros((cout3, Wp + 1), io)
        a2p = jnp.concatenate([zpad, a2, zpad], axis=1)             # (cout3, P)

        # conv2 + bias + 1x1 shortcut on x (valid-aligned slice of the padded input).
        y2 = jnp.zeros((cout3, n_out), jnp.float32)
        for t, off in enumerate(taps):
            y2 = y2 + jnp.dot(k2_ref[t], a2p[:, off:off + n_out],
                              preferred_element_type=jnp.float32)
        y2 = y2 + jnp.dot(ks_ref[...], xp[:, Wp + 1:Wp + 1 + n_out],
                          preferred_element_type=jnp.float32)
        o_ref[...] = (y2 + b2_ref[...]).astype(o_ref.dtype)

    return kernel


# -----------------------------------------------------------------------------
# Glue: layout conversion, padding, parameter assembly (plain JAX).
# -----------------------------------------------------------------------------
def _g3_block(s, b1, b2, b3):
    """Rotor (s + b1 e23 + b2 e31 + b3 e12) action on vectors, vector part:
    u -> s*u - b x u.  Returns block kernel K[i, j, Co, Ci, kh, kw]."""
    row0 = jnp.stack([s, b3, -b2], axis=0)
    row1 = jnp.stack([-b3, s, b1], axis=0)
    row2 = jnp.stack([b2, -b1, s], axis=0)
    return jnp.stack([row0, row1, row2], axis=0)


def assemble_g3_conv_taps(comps):
    """comps: (4, Co, Ci, kh, kw) -> (kh*kw, 3*Co, 3*Ci); rows i*Co+co, cols j*Ci+ci
    (blade-major channels, matching the activation row layout)."""
    K = _g3_block(comps[0], comps[1], comps[2], comps[3])     # (i, j, Co, Ci, kh, kw)
    _, _, Co, Ci, kh, kw = K.shape
    Wm = jnp.transpose(K, (4, 5, 0, 2, 1, 3))                 # (kh, kw, i, Co, j, Ci)
    return Wm.reshape(kh * kw, 3 * Co, 3 * Ci)


def assemble_vlin_cp(wt, bt):
    """Conv3d(C, C, (3,1,1)) weight (C, C, 3) + bias (C,) -> gate matmul (3*C, 3*C) and bias
    (3*C, 1), rows tiled over the 3 blades (gate broadcast folded into the weight)."""
    C = wt.shape[0]
    wsmall = jnp.transpose(wt, (0, 2, 1)).reshape(C, 3 * C)   # [o, j*C + c] = wt[o, c, j]
    return jnp.tile(wsmall, (3, 1)), jnp.tile(bt, 3).reshape(3 * C, 1)


@jax.jit
def clifford_g3_upblock_forward(x_torch, params):
    """x_torch: (B, Ci+Co, 3, H, W)  ->  (B, Co, 3, H, W)."""
    B, Cb, I, H, W = x_torch.shape
    cout3 = params["b1"].shape[0]
    Co = cout3 // 3
    cin3 = I * Cb
    Wp = W + 2
    n_out = H * Wp
    P = (H + 2) * Wp + 2
    io_dtype = params["k1"].dtype

    # torch (B, C, 3, H, W) -> blade-major channel rows, pixels flattened onto lanes,
    # zero-padded spatially (pad=1) plus 2 trailing zeros for the last-tap slice.
    xr = jnp.transpose(x_torch, (0, 2, 1, 3, 4)).reshape(B, cin3, H, W).astype(io_dtype)
    xp = jnp.pad(xr, ((0, 0), (0, 0), (1, 1), (1, 1))).reshape(B, cin3, (H + 2) * Wp)
    xp = jnp.pad(xp, ((0, 0), (0, 0), (0, 2)))                 # (B, cin3, P)

    # Wrap-column mask: output column p is a real pixel iff (p mod Wp) < W.
    mask = (jnp.arange(n_out) % Wp < W).astype(jnp.float32).reshape(1, n_out)

    kernel = _make_upblock_kernel(H, W, cin3, cout3)

    def full_spec(shape):
        return pl.BlockSpec(shape, lambda b: (0,) * len(shape))

    out = pl.pallas_call(
        kernel,
        out_shape=jax.ShapeDtypeStruct((B, cout3, n_out), jnp.float32),
        grid_spec=pltpu.PrefetchScalarGridSpec(
            num_scalar_prefetch=0,
            grid=(B,),
            in_specs=[
                pl.BlockSpec((None, cin3, P), lambda b: (b, 0, 0)),
                full_spec(params["k1"].shape),
                full_spec(params["b1"].shape),
                full_spec(params["k2"].shape),
                full_spec(params["b2"].shape),
                full_spec(params["ks"].shape),
                full_spec(params["wg1"].shape),
                full_spec(params["bg1"].shape),
                full_spec(params["wg2"].shape),
                full_spec(params["bg2"].shape),
                full_spec(mask.shape),
            ],
            out_specs=pl.BlockSpec((None, cout3, n_out), lambda b: (b, 0, 0)),
        ),
        compiler_params=pltpu.CompilerParams(dimension_semantics=("parallel",)),
    )(xp, params["k1"], params["b1"], params["k2"], params["b2"], params["ks"],
      params["wg1"], params["bg1"], params["wg2"], params["bg2"], mask)

    # Drop the wrap columns and go back to torch layout (B, Co, 3, H, W).
    out = out.reshape(B, 3, Co, H, Wp)[..., :W]
    return jnp.transpose(out, (0, 2, 1, 3, 4))


# -----------------------------------------------------------------------------
# Pure-JAX reference (same math, via lax.conv / einsum) for a sanity check.
# -----------------------------------------------------------------------------
def _ref_vlin(x, wt, bt):
    gate = jax.nn.sigmoid(
        jnp.einsum("bcihw,oci->bohw", x, wt, precision=jax.lax.Precision.HIGHEST)
        + bt[None, :, None, None])
    return x * gate[:, :, None]


def _ref_g3conv(x, comps, bias, padding):
    K = _g3_block(comps[0], comps[1], comps[2], comps[3])
    _, _, Co, Ci, kh, kw = K.shape
    B, C, I, H, W = x.shape
    xin = jnp.transpose(x, (0, 2, 1, 3, 4)).reshape(B, 3 * C, H, W)
    Kbig = jnp.transpose(K, (0, 2, 1, 3, 4, 5)).reshape(3 * Co, 3 * Ci, kh, kw)
    y = jax.lax.conv_general_dilated(
        xin, Kbig, window_strides=(1, 1),
        padding=[(padding, padding), (padding, padding)],
        dimension_numbers=("NCHW", "OIHW", "NCHW"),
        precision=jax.lax.Precision.HIGHEST)
    if bias is not None:
        y = y + bias.reshape(1, 3 * Co, 1, 1)
    return jnp.transpose(y.reshape(B, 3, Co, H, W), (0, 2, 1, 3, 4))


def reference_forward(x, raw):
    a1 = _ref_vlin(x, raw["wg1_t"], raw["bg1_t"])
    o1 = _ref_g3conv(a1, raw["conv1"], raw["bias1"], 1)
    a2 = _ref_vlin(o1, raw["wg2_t"], raw["bg2_t"])
    o2 = _ref_g3conv(a2, raw["conv2"], raw["bias2"], 1)
    sc = _ref_g3conv(x, raw["convs"], None, 0)
    return o2 + sc


# -----------------------------------------------------------------------------
if __name__ == "__main__":
    B, Ci, Co, H, W = 2, 4, 4, 16, 16     # UpBlock(in_channels=4, out_channels=4)
    Cb = Ci + Co                          # basic block input channels = in + out

    key = jax.random.PRNGKey(0)
    ks = jax.random.split(key, 12)

    def nrm(k, shape, scale=0.2):
        return scale * jax.random.normal(k, shape, dtype=jnp.float32)

    x = jax.random.normal(ks[0], (B, Cb, 3, H, W), dtype=jnp.float32)

    # Deterministic synthetic parameters (torch-convention shapes).
    raw = {
        "wg1_t": nrm(ks[1], (Cb, Cb, 3)),        # act1: Conv3d(Cb, Cb, (3,1,1)) weight
        "bg1_t": nrm(ks[2], (Cb,)),
        "conv1": nrm(ks[3], (4, Co, Cb, 3, 3)),  # (s, b1, b2, b3) kernels
        "bias1": nrm(ks[4], (3, Co)),
        "wg2_t": nrm(ks[5], (Co, Co, 3)),        # act2: Conv3d(Co, Co, (3,1,1)) weight
        "bg2_t": nrm(ks[6], (Co,)),
        "conv2": nrm(ks[7], (4, Co, Co, 3, 3)),
        "bias2": nrm(ks[8], (3, Co)),
        "convs": nrm(ks[9], (4, Co, Cb, 1, 1)),  # shortcut 1x1 G3 conv, no bias
    }

    def build_params(io_dtype):
        wg1, bg1 = assemble_vlin_cp(raw["wg1_t"], raw["bg1_t"])
        wg2, bg2 = assemble_vlin_cp(raw["wg2_t"], raw["bg2_t"])
        return {
            # tiny gate weights / biases stay f32 (gate math is f32 on all generations)
            "wg1": wg1, "bg1": bg1, "wg2": wg2, "bg2": bg2,
            "b1": raw["bias1"].reshape(3 * Co, 1),
            "b2": raw["bias2"].reshape(3 * Co, 1),
            # big-operand path dtype (activations / patches follow this dtype)
            "k1": assemble_g3_conv_taps(raw["conv1"]).astype(io_dtype),   # (9, 3Co, 3Cb)
            "k2": assemble_g3_conv_taps(raw["conv2"]).astype(io_dtype),   # (9, 3Co, 3Co)
            "ks": assemble_g3_conv_taps(raw["convs"])[0].astype(io_dtype),  # (3Co, 3Cb)
        }

    ref = jax.block_until_ready(reference_forward(x, raw))

    # f32 path: tight correctness check of the math.
    out = jax.block_until_ready(clifford_g3_upblock_forward(x, build_params(jnp.float32)))
    assert out.shape == (B, Co, 3, H, W), out.shape
    err32 = float(jnp.max(jnp.abs(out - ref)))
    assert err32 < 2e-2, f"f32 path: max abs err vs reference: {err32}"

    # bf16 storage / f32 accumulation path (bandwidth-optimized for v6e/v7x).
    out16 = jax.block_until_ready(clifford_g3_upblock_forward(x, build_params(jnp.bfloat16)))
    err16 = float(jnp.max(jnp.abs(out16 - ref)))
    assert err16 < 2e-1, f"bf16 path: max abs err vs reference: {err16}"  # loose: bf16 storage

    print("KERNEL_OK")
</pallas_src>

<mosaic_0001>
module attributes {stable_mosaic.version = 11 : i64} {
  func.func @kernel(%arg0: i32, %arg1: memref<1x24x326xf32, #tpu.memory_space<vmem>>, %arg2: memref<9x12x24xf32, #tpu.memory_space<vmem>>, %arg3: memref<12x1xf32, #tpu.memory_space<vmem>>, %arg4: memref<9x12x12xf32, #tpu.memory_space<vmem>>, %arg5: memref<12x1xf32, #tpu.memory_space<vmem>>, %arg6: memref<12x24xf32, #tpu.memory_space<vmem>>, %arg7: memref<24x24xf32, #tpu.memory_space<vmem>>, %arg8: memref<24x1xf32, #tpu.memory_space<vmem>>, %arg9: memref<12x12xf32, #tpu.memory_space<vmem>>, %arg10: memref<12x1xf32, #tpu.memory_space<vmem>>, %arg11: memref<1x288xf32, #tpu.memory_space<vmem>>, %arg12: memref<1x12x288xf32, #tpu.memory_space<vmem>>) attributes {dimension_semantics = [#tpu.dimension_semantics<parallel>], iteration_bounds = array<i64: 2>, scalar_prefetch = 0 : i64, scratch_operands = 0 : i64, tpu.core_type = #tpu.core_type<tc>, window_params = [{transform_indices = @transform_0, window_bounds = array<i64: 1, 24, 326>}, {pipeline_mode = #tpu.pipeline_mode<synchronous>, transform_indices = @transform_1, window_bounds = array<i64: 9, 12, 24>}, {pipeline_mode = #tpu.pipeline_mode<synchronous>, transform_indices = @transform_2, window_bounds = array<i64: 12, 1>}, {pipeline_mode = #tpu.pipeline_mode<synchronous>, transform_indices = @transform_3, window_bounds = array<i64: 9, 12, 12>}, {pipeline_mode = #tpu.pipeline_mode<synchronous>, transform_indices = @transform_4, window_bounds = array<i64: 12, 1>}, {pipeline_mode = #tpu.pipeline_mode<synchronous>, transform_indices = @transform_5, window_bounds = array<i64: 12, 24>}, {pipeline_mode = #tpu.pipeline_mode<synchronous>, transform_indices = @transform_6, window_bounds = array<i64: 24, 24>}, {pipeline_mode = #tpu.pipeline_mode<synchronous>, transform_indices = @transform_7, window_bounds = array<i64: 24, 1>}, {pipeline_mode = #tpu.pipeline_mode<synchronous>, transform_indices = @transform_8, window_bounds = array<i64: 12, 12>}, {pipeline_mode = #tpu.pipeline_mode<synchronous>, transform_indices = @transform_9, window_bounds = array<i64: 12, 1>}, {pipeline_mode = #tpu.pipeline_mode<synchronous>, transform_indices = @transform_10, window_bounds = array<i64: 1, 288>}, {transform_indices = @transform_11, window_bounds = array<i64: 1, 12, 288>}]} {
    %c0 = arith.constant 0 : index
    %c0_0 = arith.constant 0 : index
    %c0_1 = arith.constant 0 : index
    %0 = vector.load %arg1[%c0, %c0_0, %c0_1] : memref<1x24x326xf32, #tpu.memory_space<vmem>>, vector<1x24x326xf32>
    %1 = vector.shape_cast %0 : vector<1x24x326xf32> to vector<24x326xf32>
    %c0_2 = arith.constant 0 : index
    %c0_3 = arith.constant 0 : index
    %2 = vector.load %arg7[%c0_2, %c0_3] : memref<24x24xf32, #tpu.memory_space<vmem>>, vector<24x24xf32>
    %cst = arith.constant dense<0.000000e+00> : vector<24x326xf32>
    %3 = tpu.matmul %2, %1, %cst {dimension_numbers = #tpu.dot_dimension_numbers<[1], [0], [0], [1], [0, 0, 1, 1], [], []>} : vector<24x24xf32>, vector<24x326xf32>, vector<24x326xf32> -> vector<24x326xf32>
    %c0_4 = arith.constant 0 : index
    %c0_5 = arith.constant 0 : index
    %4 = vector.load %arg8[%c0_4, %c0_5] : memref<24x1xf32, #tpu.memory_space<vmem>>, vector<24x1xf32>
    %5 = vector.broadcast %4 : vector<24x1xf32> to vector<24x326xf32>
    %6 = arith.addf %3, %5 : vector<24x326xf32>
    %7 = arith.negf %6 : vector<24x326xf32>
    %8 = math.exp %7 : vector<24x326xf32>
    %cst_6 = arith.constant 1.000000e+00 : f32
    %9 = vector.broadcast %cst_6 : f32 to vector<24x326xf32>
    %10 = arith.addf %9, %8 : vector<24x326xf32>
    %11 = arith.divf %9, %10 : vector<24x326xf32>
    %12 = arith.mulf %1, %11 : vector<24x326xf32>
    %cst_7 = arith.constant 0.000000e+00 : f32
    %13 = vector.broadcast %cst_7 : f32 to vector<12x288xf32>
    %c0_8 = arith.constant 0 : index
    %c0_9 = arith.constant 0 : index
    %c0_10 = arith.constant 0 : index
    %14 = vector.load %arg2[%c0_8, %c0_9, %c0_10] : memref<9x12x24xf32, #tpu.memory_space<vmem>>, vector<1x12x24xf32>
    %15 = vector.shape_cast %14 : vector<1x12x24xf32> to vector<12x24xf32>
    %16 = vector.extract_strided_slice %12 {offsets = [0, 0], sizes = [24, 288], strides = [1, 1]} : vector<24x326xf32> to vector<24x288xf32>
    %cst_11 = arith.constant dense<0.000000e+00> : vector<12x288xf32>
    %17 = tpu.matmul %15, %16, %cst_11 {dimension_numbers = #tpu.dot_dimension_numbers<[1], [0], [0], [1], [0, 0, 1, 1], [], []>} : vector<12x24xf32>, vector<24x288xf32>, vector<12x288xf32> -> vector<12x288xf32>
    %18 = arith.addf %13, %17 : vector<12x288xf32>
    %c1 = arith.constant 1 : index
    %c0_12 = arith.constant 0 : index
    %c0_13 = arith.constant 0 : index
    %19 = vector.load %arg2[%c1, %c0_12, %c0_13] : memref<9x12x24xf32, #tpu.memory_space<vmem>>, vector<1x12x24xf32>
    %20 = vector.shape_cast %19 : vector<1x12x24xf32> to vector<12x24xf32>
    %21 = vector.extract_strided_slice %12 {offsets = [0, 1], sizes = [24, 288], strides = [1, 1]} : vector<24x326xf32> to vector<24x288xf32>
    %cst_14 = arith.constant dense<0.000000e+00> : vector<12x288xf32>
    %22 = tpu.matmul %20, %21, %cst_14 {dimension_numbers = #tpu.dot_dimension_numbers<[1], [0], [0], [1], [0, 0, 1, 1], [], []>} : vector<12x24xf32>, vector<24x288xf32>, vector<12x288xf32> -> vector<12x288xf32>
    %23 = arith.addf %18, %22 : vector<12x288xf32>
    %c2 = arith.constant 2 : index
    %c0_15 = arith.constant 0 : index
    %c0_16 = arith.constant 0 : index
    %24 = vector.load %arg2[%c2, %c0_15, %c0_16] : memref<9x12x24xf32, #tpu.memory_space<vmem>>, vector<1x12x24xf32>
    %25 = vector.shape_cast %24 : vector<1x12x24xf32> to vector<12x24xf32>
    %26 = vector.extract_strided_slice %12 {offsets = [0, 2], sizes = [24, 288], strides = [1, 1]} : vector<24x326xf32> to vector<24x288xf32>
    %cst_17 = arith.constant dense<0.000000e+00> : vector<12x288xf32>
    %27 = tpu.matmul %25, %26, %cst_17 {dimension_numbers = #tpu.dot_dimension_numbers<[1], [0], [0], [1], [0, 0, 1, 1], [], []>} : vector<12x24xf32>, vector<24x288xf32>, vector<12x288xf32> -> vector<12x288xf32>
    %28 = arith.addf %23, %27 : vector<12x288xf32>
    %c3 = arith.constant 3 : index
    %c0_18 = arith.constant 0 : index
    %c0_19 = arith.constant 0 : index
    %29 = vector.load %arg2[%c3, %c0_18, %c0_19] : memref<9x12x24xf32, #tpu.memory_space<vmem>>, vector<1x12x24xf32>
    %30 = vector.shape_cast %29 : vector<1x12x24xf32> to vector<12x24xf32>
    %31 = vector.extract_strided_slice %12 {offsets = [0, 18], sizes = [24, 288], strides = [1, 1]} : vector<24x326xf32> to vector<24x288xf32>
    %cst_20 = arith.constant dense<0.000000e+00> : vector<12x288xf32>
    %32 = tpu.matmul %30, %31, %cst_20 {dimension_numbers = #tpu.dot_dimension_numbers<[1], [0], [0], [1], [0, 0, 1, 1], [], []>} : vector<12x24xf32>, vector<24x288xf32>, vector<12x288xf32> -> vector<12x288xf32>
    %33 = arith.addf %28, %32 : vector<12x288xf32>
    %c4 = arith.constant 4 : index
    %c0_21 = arith.constant 0 : index
    %c0_22 = arith.constant 0 : index
    %34 = vector.load %arg2[%c4, %c0_21, %c0_22] : memref<9x12x24xf32, #tpu.memory_space<vmem>>, vector<1x12x24xf32>
    %35 = vector.shape_cast %34 : vector<1x12x24xf32> to vector<12x24xf32>
    %36 = vector.extract_strided_slice %12 {offsets = [0, 19], sizes = [24, 288], strides = [1, 1]} : vector<24x326xf32> to vector<24x288xf32>
    %cst_23 = arith.constant dense<0.000000e+00> : vector<12x288xf32>
    %37 = tpu.matmul %35, %36, %cst_23 {dimension_numbers = #tpu.dot_dimension_numbers<[1], [0], [0], [1], [0, 0, 1, 1], [], []>} : vector<12x24xf32>, vector<24x288xf32>, vector<12x288xf32> -> vector<12x288xf32>
    %38 = arith.addf %33, %37 : vector<12x288xf32>
    %c5 = arith.constant 5 : index
    %c0_24 = arith.constant 0 : index
    %c0_25 = arith.constant 0 : index
    %39 = vector.load %arg2[%c5, %c0_24, %c0_25] : memref<9x12x24xf32, #tpu.memory_space<vmem>>, vector<1x12x24xf32>
    %40 = vector.shape_cast %39 : vector<1x12x24xf32> to vector<12x24xf32>
    %41 = vector.extract_strided_slice %12 {offsets = [0, 20], sizes = [24, 288], strides = [1, 1]} : vector<24x326xf32> to vector<24x288xf32>
    %cst_26 = arith.constant dense<0.000000e+00> : vector<12x288xf32>
    %42 = tpu.matmul %40, %41, %cst_26 {dimension_numbers = #tpu.dot_dimension_numbers<[1], [0], [0], [1], [0, 0, 1, 1], [], []>} : vector<12x24xf32>, vector<24x288xf32>, vector<12x288xf32> -> vector<12x288xf32>
    %43 = arith.addf %38, %42 : vector<12x288xf32>
    %c6 = arith.constant 6 : index
    %c0_27 = arith.constant 0 : index
    %c0_28 = arith.constant 0 : index
    %44 = vector.load %arg2[%c6, %c0_27, %c0_28] : memref<9x12x24xf32, #tpu.memory_space<vmem>>, vector<1x12x24xf32>
    %45 = vector.shape_cast %44 : vector<1x12x24xf32> to vector<12x24xf32>
    %46 = vector.extract_strided_slice %12 {offsets = [0, 36], sizes = [24, 288], strides = [1, 1]} : vector<24x326xf32> to vector<24x288xf32>
    %cst_29 = arith.constant dense<0.000000e+00> : vector<12x288xf32>
    %47 = tpu.matmul %45, %46, %cst_29 {dimension_numbers = #tpu.dot_dimension_numbers<[1], [0], [0], [1], [0, 0, 1, 1], [], []>} : vector<12x24xf32>, vector<24x288xf32>, vector<12x288xf32> -> vector<12x288xf32>
    %48 = arith.addf %43, %47 : vector<12x288xf32>
    %c7 = arith.constant 7 : index
    %c0_30 = arith.constant 0 : index
    %c0_31 = arith.constant 0 : index
    %49 = vector.load %arg2[%c7, %c0_30, %c0_31] : memref<9x12x24xf32, #tpu.memory_space<vmem>>, vector<1x12x24xf32>
    %50 = vector.shape_cast %49 : vector<1x12x24xf32> to vector<12x24xf32>
    %51 = vector.extract_strided_slice %12 {offsets = [0, 37], sizes = [24, 288], strides = [1, 1]} : vector<24x326xf32> to vector<24x288xf32>
    %cst_32 = arith.constant dense<0.000000e+00> : vector<12x288xf32>
    %52 = tpu.matmul %50, %51, %cst_32 {dimension_numbers = #tpu.dot_dimension_numbers<[1], [0], [0], [1], [0, 0, 1, 1], [], []>} : vector<12x24xf32>, vector<24x288xf32>, vector<12x288xf32> -> vector<12x288xf32>
    %53 = arith.addf %48, %52 : vector<12x288xf32>
    %c8 = arith.constant 8 : index
    %c0_33 = arith.constant 0 : index
    %c0_34 = arith.constant 0 : index
    %54 = vector.load %arg2[%c8, %c0_33, %c0_34] : memref<9x12x24xf32, #tpu.memory_space<vmem>>, vector<1x12x24xf32>
    %55 = vector.shape_cast %54 : vector<1x12x24xf32> to vector<12x24xf32>
    %56 = vector.extract_strided_slice %12 {offsets = [0, 38], sizes = [24, 288], strides = [1, 1]} : vector<24x326xf32> to vector<24x288xf32>
    %cst_35 = arith.constant dense<0.000000e+00> : vector<12x288xf32>
    %57 = tpu.matmul %55, %56, %cst_35 {dimension_numbers = #tpu.dot_dimension_numbers<[1], [0], [0], [1], [0, 0, 1, 1], [], []>} : vector<12x24xf32>, vector<24x288xf32>, vector<12x288xf32> -> vector<12x288xf32>
    %58 = arith.addf %53, %57 : vector<12x288xf32>
    %c0_36 = arith.constant 0 : index
    %c0_37 = arith.constant 0 : index
    %59 = vector.load %arg3[%c0_36, %c0_37] : memref<12x1xf32, #tpu.memory_space<vmem>>, vector<12x1xf32>
    %60 = vector.broadcast %59 : vector<12x1xf32> to vector<12x288xf32>
    %61 = arith.addf %58, %60 : vector<12x288xf32>
    %c0_38 = arith.constant 0 : index
    %c0_39 = arith.constant 0 : index
    %62 = vector.load %arg9[%c0_38, %c0_39] : memref<12x12xf32, #tpu.memory_space<vmem>>, vector<12x12xf32>
    %cst_40 = arith.constant dense<0.000000e+00> : vector<12x288xf32>
    %63 = tpu.matmul %62, %61, %cst_40 {dimension_numbers = #tpu.dot_dimension_numbers<[1], [0], [0], [1], [0, 0, 1, 1], [], []>} : vector<12x12xf32>, vector<12x288xf32>, vector<12x288xf32> -> vector<12x288xf32>
    %c0_41 = arith.constant 0 : index
    %c0_42 = arith.constant 0 : index
    %64 = vector.load %arg10[%c0_41, %c0_42] : memref<12x1xf32, #tpu.memory_space<vmem>>, vector<12x1xf32>
    %65 = vector.broadcast %64 : vector<12x1xf32> to vector<12x288xf32>
    %66 = arith.addf %63, %65 : vector<12x288xf32>
    %67 = arith.negf %66 : vector<12x288xf32>
    %68 = math.exp %67 : vector<12x288xf32>
    %cst_43 = arith.constant 1.000000e+00 : f32
    %69 = vector.broadcast %cst_43 : f32 to vector<12x288xf32>
    %70 = arith.addf %69, %68 : vector<12x288xf32>
    %71 = arith.divf %69, %70 : vector<12x288xf32>
    %72 = arith.mulf %61, %71 : vector<12x288xf32>
    %c0_44 = arith.constant 0 : index
    %c0_45 = arith.constant 0 : index
    %73 = vector.load %arg11[%c0_44, %c0_45] : memref<1x288xf32, #tpu.memory_space<vmem>>, vector<1x288xf32>
    %74 = vector.broadcast %73 : vector<1x288xf32> to vector<12x288xf32>
    %75 = arith.mulf %72, %74 : vector<12x288xf32>
    %cst_46 = arith.constant 0.000000e+00 : f32
    %76 = vector.broadcast %cst_46 : f32 to vector<12x19xf32>
    %77 = tpu.concatenate %76, %75, %76 in 1 : vector<12x19xf32>, vector<12x288xf32>, vector<12x19xf32> -> vector<12x326xf32>
    %cst_47 = arith.constant 0.000000e+00 : f32
    %78 = vector.broadcast %cst_47 : f32 to vector<12x288xf32>
    %c0_48 = arith.constant 0 : index
    %c0_49 = arith.constant 0 : index
    %c0_50 = arith.constant 0 : index
    %79 = vector.load %arg4[%c0_48, %c0_49, %c0_50] : memref<9x12x12xf32, #tpu.memory_space<vmem>>, vector<1x12x12xf32>
    %80 = vector.shape_cast %79 : vector<1x12x12xf32> to vector<12x12xf32>
    %81 = vector.extract_strided_slice %77 {offsets = [0, 0], sizes = [12, 288], strides = [1, 1]} : vector<12x326xf32> to vector<12x288xf32>
    %cst_51 = arith.constant dense<0.000000e+00> : vector<12x288xf32>
    %82 = tpu.matmul %80, %81, %cst_51 {dimension_numbers = #tpu.dot_dimension_numbers<[1], [0], [0], [1], [0, 0, 1, 1], [], []>} : vector<12x12xf32>, vector<12x288xf32>, vector<12x288xf32> -> vector<12x288xf32>
    %83 = arith.addf %78, %82 : vector<12x288xf32>
    %c1_52 = arith.constant 1 : index
    %c0_53 = arith.constant 0 : index
    %c0_54 = arith.constant 0 : index
    %84 = vector.load %arg4[%c1_52, %c0_53, %c0_54] : memref<9x12x12xf32, #tpu.memory_space<vmem>>, vector<1x12x12xf32>
    %85 = vector.shape_cast %84 : vector<1x12x12xf32> to vector<12x12xf32>
    %86 = vector.extract_strided_slice %77 {offsets = [0, 1], sizes = [12, 288], strides = [1, 1]} : vector<12x326xf32> to vector<12x288xf32>
    %cst_55 = arith.constant dense<0.000000e+00> : vector<12x288xf32>
    %87 = tpu.matmul %85, %86, %cst_55 {dimension_numbers = #tpu.dot_dimension_numbers<[1], [0], [0], [1], [0, 0, 1, 1], [], []>} : vector<12x12xf32>, vector<12x288xf32>, vector<12x288xf32> -> vector<12x288xf32>
    %88 = arith.addf %83, %87 : vector<12x288xf32>
    %c2_56 = arith.constant 2 : index
    %c0_57 = arith.constant 0 : index
    %c0_58 = arith.constant 0 : index
    %89 = vector.load %arg4[%c2_56, %c0_57, %c0_58] : memref<9x12x12xf32, #tpu.memory_space<vmem>>, vector<1x12x12xf32>
    %90 = vector.shape_cast %89 : vector<1x12x12xf32> to vector<12x12xf32>
    %91 = vector.extract_strided_slice %77 {offsets = [0, 2], sizes = [12, 288], strides = [1, 1]} : vector<12x326xf32> to vector<12x288xf32>
    %cst_59 = arith.constant dense<0.000000e+00> : vector<12x288xf32>
    %92 = tpu.matmul %90, %91, %cst_59 {dimension_numbers = #tpu.dot_dimension_numbers<[1], [0], [0], [1], [0, 0, 1, 1], [], []>} : vector<12x12xf32>, vector<12x288xf32>, vector<12x288xf32> -> vector<12x288xf32>
    %93 = arith.addf %88, %92 : vector<12x288xf32>
    %c3_60 = arith.constant 3 : index
    %c0_61 = arith.constant 0 : index
    %c0_62 = arith.constant 0 : index
    %94 = vector.load %arg4[%c3_60, %c0_61, %c0_62] : memref<9x12x12xf32, #tpu.memory_space<vmem>>, vector<1x12x12xf32>
    %95 = vector.shape_cast %94 : vector<1x12x12xf32> to vector<12x12xf32>
    %96 = vector.extract_strided_slice %77 {offsets = [0, 18], sizes = [12, 288], strides = [1, 1]} : vector<12x326xf32> to vector<12x288xf32>
    %cst_63 = arith.constant dense<0.000000e+00> : vector<12x288xf32>
    %97 = tpu.matmul %95, %96, %cst_63 {dimension_numbers = #tpu.dot_dimension_numbers<[1], [0], [0], [1], [0, 0, 1, 1], [], []>} : vector<12x12xf32>, vector<12x288xf32>, vector<12x288xf32> -> vector<12x288xf32>
    %98 = arith.addf %93, %97 : vector<12x288xf32>
    %c4_64 = arith.constant 4 : index
    %c0_65 = arith.constant 0 : index
    %c0_66 = arith.constant 0 : index
    %99 = vector.load %arg4[%c4_64, %c0_65, %c0_66] : memref<9x12x12xf32, #tpu.memory_space<vmem>>, vector<1x12x12xf32>
    %100 = vector.shape_cast %99 : vector<1x12x12xf32> to vector<12x12xf32>
    %101 = vector.extract_strided_slice %77 {offsets = [0, 19], sizes = [12, 288], strides = [1, 1]} : vector<12x326xf32> to vector<12x288xf32>
    %cst_67 = arith.constant dense<0.000000e+00> : vector<12x288xf32>
    %102 = tpu.matmul %100, %101, %cst_67 {dimension_numbers = #tpu.dot_dimension_numbers<[1], [0], [0], [1], [0, 0, 1, 1], [], []>} : vector<12x12xf32>, vector<12x288xf32>, vector<12x288xf32> -> vector<12x288xf32>
    %103 = arith.addf %98, %102 : vector<12x288xf32>
    %c5_68 = arith.constant 5 : index
    %c0_69 = arith.constant 0 : index
    %c0_70 = arith.constant 0 : index
    %104 = vector.load %arg4[%c5_68, %c0_69, %c0_70] : memref<9x12x12xf32, #tpu.memory_space<vmem>>, vector<1x12x12xf32>
    %105 = vector.shape_cast %104 : vector<1x12x12xf32> to vector<12x12xf32>
    %106 = vector.extract_strided_slice %77 {offsets = [0, 20], sizes = [12, 288], strides = [1, 1]} : vector<12x326xf32> to vector<12x288xf32>
    %cst_71 = arith.constant dense<0.000000e+00> : vector<12x288xf32>
    %107 = tpu.matmul %105, %106, %cst_71 {dimension_numbers = #tpu.dot_dimension_numbers<[1], [0], [0], [1], [0, 0, 1, 1], [], []>} : vector<12x12xf32>, vector<12x288xf32>, vector<12x288xf32> -> vector<12x288xf32>
    %108 = arith.addf %103, %107 : vector<12x288xf32>
    %c6_72 = arith.constant 6 : index
    %c0_73 = arith.constant 0 : index
    %c0_74 = arith.constant 0 : index
    %109 = vector.load %arg4[%c6_72, %c0_73, %c0_74] : memref<9x12x12xf32, #tpu.memory_space<vmem>>, vector<1x12x12xf32>
    %110 = vector.shape_cast %109 : vector<1x12x12xf32> to vector<12x12xf32>
    %111 = vector.extract_strided_slice %77 {offsets = [0, 36], sizes = [12, 288], strides = [1, 1]} : vector<12x326xf32> to vector<12x288xf32>
    %cst_75 = arith.constant dense<0.000000e+00> : vector<12x288xf32>
    %112 = tpu.matmul %110, %111, %cst_75 {dimension_numbers = #tpu.dot_dimension_numbers<[1], [0], [0], [1], [0, 0, 1, 1], [], []>} : vector<12x12xf32>, vector<12x288xf32>, vector<12x288xf32> -> vector<12x288xf32>
    %113 = arith.addf %108, %112 : vector<12x288xf32>
    %c7_76 = arith.constant 7 : index
    %c0_77 = arith.constant 0 : index
    %c0_78 = arith.constant 0 : index
    %114 = vector.load %arg4[%c7_76, %c0_77, %c0_78] : memref<9x12x12xf32, #tpu.memory_space<vmem>>, vector<1x12x12xf32>
    %115 = vector.shape_cast %114 : vector<1x12x12xf32> to vector<12x12xf32>
    %116 = vector.extract_strided_slice %77 {offsets = [0, 37], sizes = [12, 288], strides = [1, 1]} : vector<12x326xf32> to vector<12x288xf32>
    %cst_79 = arith.constant dense<0.000000e+00> : vector<12x288xf32>
    %117 = tpu.matmul %115, %116, %cst_79 {dimension_numbers = #tpu.dot_dimension_numbers<[1], [0], [0], [1], [0, 0, 1, 1], [], []>} : vector<12x12xf32>, vector<12x288xf32>, vector<12x288xf32> -> vector<12x288xf32>
    %118 = arith.addf %113, %117 : vector<12x288xf32>
    %c8_80 = arith.constant 8 : index
    %c0_81 = arith.constant 0 : index
    %c0_82 = arith.constant 0 : index
    %119 = vector.load %arg4[%c8_80, %c0_81, %c0_82] : memref<9x12x12xf32, #tpu.memory_space<vmem>>, vector<1x12x12xf32>
    %120 = vector.shape_cast %119 : vector<1x12x12xf32> to vector<12x12xf32>
    %121 = vector.extract_strided_slice %77 {offsets = [0, 38], sizes = [12, 288], strides = [1, 1]} : vector<12x326xf32> to vector<12x288xf32>
    %cst_83 = arith.constant dense<0.000000e+00> : vector<12x288xf32>
    %122 = tpu.matmul %120, %121, %cst_83 {dimension_numbers = #tpu.dot_dimension_numbers<[1], [0], [0], [1], [0, 0, 1, 1], [], []>} : vector<12x12xf32>, vector<12x288xf32>, vector<12x288xf32> -> vector<12x288xf32>
    %123 = arith.addf %118, %122 : vector<12x288xf32>
    %c0_84 = arith.constant 0 : index
    %c0_85 = arith.constant 0 : index
    %124 = vector.load %arg6[%c0_84, %c0_85] : memref<12x24xf32, #tpu.memory_space<vmem>>, vector<12x24xf32>
    %125 = vector.extract_strided_slice %1 {offsets = [0, 19], sizes = [24, 288], strides = [1, 1]} : vector<24x326xf32> to vector<24x288xf32>
    %cst_86 = arith.constant dense<0.000000e+00> : vector<12x288xf32>
    %126 = tpu.matmul %124, %125, %cst_86 {dimension_numbers = #tpu.dot_dimension_numbers<[1], [0], [0], [1], [0, 0, 1, 1], [], []>} : vector<12x24xf32>, vector<24x288xf32>, vector<12x288xf32> -> vector<12x288xf32>
    %127 = arith.addf %123, %126 : vector<12x288xf32>
    %c0_87 = arith.constant 0 : index
    %c0_88 = arith.constant 0 : index
    %128 = vector.load %arg5[%c0_87, %c0_88] : memref<12x1xf32, #tpu.memory_space<vmem>>, vector<12x1xf32>
    %129 = vector.broadcast %128 : vector<12x1xf32> to vector<12x288xf32>
    %130 = arith.addf %127, %129 : vector<12x288xf32>
    %c0_89 = arith.constant 0 : index
    %c0_90 = arith.constant 0 : index
    %c0_91 = arith.constant 0 : index
    %131 = vector.load %arg12[%c0_89, %c0_90, %c0_91] : memref<1x12x288xf32, #tpu.memory_space<vmem>>, vector<1x12x288xf32>
    %132 = vector.shape_cast %131 : vector<1x12x288xf32> to vector<12x288xf32>
    %133 = vector.shape_cast %130 : vector<12x288xf32> to vector<1x12x288xf32>
    tpu.vector_store %arg12[%c0_89, %c0_90, %c0_91], %133 {strides = array<i32>} : memref<1x12x288xf32, #tpu.memory_space<vmem>>, vector<1x12x288xf32>,
    return
  }
  func.func @transform_0(%arg0: i32) -> (i32, i32, i32) {
    %c0_i32 = arith.constant 0 : i32
    %c0_i32_0 = arith.constant 0 : i32
    %c0_i32_1 = arith.constant 0 : i32
    return %arg0, %c0_i32, %c0_i32_0 : i32, i32, i32
  }
  func.func @transform_1(%arg0: i32) -> (i32, i32, i32) {
    %c0_i32 = arith.constant 0 : i32
    %c0_i32_0 = arith.constant 0 : i32
    %c0_i32_1 = arith.constant 0 : i32
    %c0_i32_2 = arith.constant 0 : i32
    return %c0_i32, %c0_i32_0, %c0_i32_1 : i32, i32, i32
  }
  func.func @transform_2(%arg0: i32) -> (i32, i32) {
    %c0_i32 = arith.constant 0 : i32
    %c0_i32_0 = arith.constant 0 : i32
    %c0_i32_1 = arith.constant 0 : i32
    return %c0_i32, %c0_i32_0 : i32, i32
  }
  func.func @transform_3(%arg0: i32) -> (i32, i32, i32) {
    %c0_i32 = arith.constant 0 : i32
    %c0_i32_0 = arith.constant 0 : i32
    %c0_i32_1 = arith.constant 0 : i32
    %c0_i32_2 = arith.constant 0 : i32
    return %c0_i32, %c0_i32_0, %c0_i32_1 : i32, i32, i32
  }
  func.func @transform_4(%arg0: i32) -> (i32, i32) {
    %c0_i32 = arith.constant 0 : i32
    %c0_i32_0 = arith.constant 0 : i32
    %c0_i32_1 = arith.constant 0 : i32
    return %c0_i32, %c0_i32_0 : i32, i32
  }
  func.func @transform_5(%arg0: i32) -> (i32, i32) {
    %c0_i32 = arith.constant 0 : i32
    %c0_i32_0 = arith.constant 0 : i32
    %c0_i32_1 = arith.constant 0 : i32
    return %c0_i32, %c0_i32_0 : i32, i32
  }
  func.func @transform_6(%arg0: i32) -> (i32, i32) {
    %c0_i32 = arith.constant 0 : i32
    %c0_i32_0 = arith.constant 0 : i32
    %c0_i32_1 = arith.constant 0 : i32
    return %c0_i32, %c0_i32_0 : i32, i32
  }
  func.func @transform_7(%arg0: i32) -> (i32, i32) {
    %c0_i32 = arith.constant 0 : i32
    %c0_i32_0 = arith.constant 0 : i32
    %c0_i32_1 = arith.constant 0 : i32
    return %c0_i32, %c0_i32_0 : i32, i32
  }
  func.func @transform_8(%arg0: i32) -> (i32, i32) {
    %c0_i32 = arith.constant 0 : i32
    %c0_i32_0 = arith.constant 0 : i32
    %c0_i32_1 = arith.constant 0 : i32
    return %c0_i32, %c0_i32_0 : i32, i32
  }
  func.func @transform_9(%arg0: i32) -> (i32, i32) {
    %c0_i32 = arith.constant 0 : i32
    %c0_i32_0 = arith.constant 0 : i32
    %c0_i32_1 = arith.constant 0 : i32
    return %c0_i32, %c0_i32_0 : i32, i32
  }
  func.func @transform_10(%arg0: i32) -> (i32, i32) {
    %c0_i32 = arith.constant 0 : i32
    %c0_i32_0 = arith.constant 0 : i32
    %c0_i32_1 = arith.constant 0 : i32
    return %c0_i32, %c0_i32_0 : i32, i32
  }
  func.func @transform_11(%arg0: i32) -> (i32, i32, i32) {
    %c0_i32 = arith.constant 0 : i32
    %c0_i32_0 = arith.constant 0 : i32
    %c0_i32_1 = arith.constant 0 : i32
    return %arg0, %c0_i32, %c0_i32_0 : i32, i32, i32
  }
}

</mosaic_0001>

<llo_original>
// kernel: clifford_g3_upblock_forward.1
$region0: #{clifford_g3_upblock_forward.1}
  #allocation0 [shape = 'u32[]', space=smem, size = 0x4, offset = 0x4, fixed_abs, tag = 'smem constant byte address 0x4 - core index']
  #allocation1 [shape = 'u32[144,128]{1,0:T(1,128)}', space=vmem, size = 0x12000, scoped, tag = 'internal scratch']
  %s0 = inlined_call_operand.vmem [shape: f32[2,24,326], index: 0, kind: input, shape index: {}]
  %s1 = inlined_call_operand.vmem [shape: f32[9,12,24], index: 1, kind: input, shape index: {}]
  %s2 = inlined_call_operand.vmem [shape: f32[12,1], index: 2, kind: input, shape index: {}]
  %s3 = inlined_call_operand.vmem [shape: f32[9,12,12], index: 3, kind: input, shape index: {}]
  %s4 = inlined_call_operand.vmem [shape: f32[12,1], index: 4, kind: input, shape index: {}]
  %s5 = inlined_call_operand.vmem [shape: f32[12,24], index: 5, kind: input, shape index: {}]
  %s6 = inlined_call_operand.vmem [shape: f32[24,24], index: 6, kind: input, shape index: {}]
  %s7 = inlined_call_operand.vmem [shape: f32[24,1], index: 7, kind: input, shape index: {}]
  %s8 = inlined_call_operand.vmem [shape: f32[12,12], index: 8, kind: input, shape index: {}]
  %s9 = inlined_call_operand.vmem [shape: f32[12,1], index: 9, kind: input, shape index: {}]
  %s10 = inlined_call_operand.vmem [shape: f32[1,288], index: 10, kind: input, shape index: {}]
  %s11 = inlined_call_operand.vmem [shape: f32[2,12,288], index: 11, kind: output, shape index: {}]
  %s12 = sld [smem:[#allocation0]]
  $region77: #{clifford_g3_upblock_forward.1} parent=0
    _
  %s14 = ssub.s32 1, %s12
  %s15 = scalar_select 0, %s14, %s12
  loop: start=0, step=1, limit=4
  $region2: #{clifford_g3_upblock_forward.1} parent=0 // loop_pre_header
    _
  $region3: #{clifford_g3_upblock_forward.1} parent=0 // loop_header
    %s17 = sphi 0, %s21
    %p18 = scmp.ge.s32.totalorder %s17, 4
    %s27 = sphi 0, %s29
    %s30 = sphi 0, %s27
    %s31 = sphi 0, %s30
    %s47 = sphi 0, %s31
    %s51 = sphi 0, %s51
    %s53 = sphi 0, %s51
    %s54 = sphi 0, %s53
    %s68 = sphi 0, %s54
    %s72 = sphi 0, %s72
    %s74 = sphi 0, %s72
    %s75 = sphi 0, %s74
    %s89 = sphi 0, %s75
    %s93 = sphi 0, %s93
    %s95 = sphi 0, %s93
    %s96 = sphi 0, %s95
    %s110 = sphi 0, %s96
    %s114 = sphi 0, %s114
    %s116 = sphi 0, %s114
    %s117 = sphi 0, %s116
    %s131 = sphi 0, %s117
    %s135 = sphi 0, %s135
    %s137 = sphi 0, %s135
    %s138 = sphi 0, %s137
    %s152 = sphi 0, %s138
    %s156 = sphi 0, %s156
    %s158 = sphi 0, %s156
    %s159 = sphi 0, %s158
    %s173 = sphi 0, %s159
    %s177 = sphi 0, %s177
    %s179 = sphi 0, %s177
    %s180 = sphi 0, %s179
    %s194 = sphi 0, %s180
    %s198 = sphi 0, %s198
    %s200 = sphi 0, %s198
    %s201 = sphi 0, %s200
    %s215 = sphi 0, %s201
    %s219 = sphi 0, %s219
    %s221 = sphi 0, %s219
    %s222 = sphi 0, %s221
    %s236 = sphi 0, %s222
    %s240 = sphi 0, %s240
    %s242 = sphi 0, %s240
    %s243 = sphi 0, %s242
    %s257 = sphi 0, %s243
    %s263 = sphi 0, %s265
    %s266 = sphi 0, %s263
    %s267 = sphi 0, %s266
    %s283 = sphi 0, %s267
  $region4: #{clifford_g3_upblock_forward.1} parent=0 // loop_header_branch
    %20 = sbr.rel (%p18) target = $region8
  $region5: #{clifford_g3_upblock_forward.1} parent=0 // loop_body
    %s22 = ssub.s32 %s17, 1
    %s23 = ssub.s32 %s17, 2
    %s24 = sadd.s32 %s17, 1
    %s25 = ssub.s32 %s17, %s24
    %p26 = scmp.eq.s32.totalorder %s25, 0
    %s28 = sadd.s32 %s27, 1
    %s29 = scalar_select %p26, %s27, %s28
    %p32 = pneg %p26
    %p33 = scmp.eq.s32.totalorder %s17, 1
    %p34 = por %p32, %p33
    %p35 = scmp.ne.s32.totalorder %s27, %s30
    %p36 = scmp.eq.s32.totalorder %s17, 0
    %p37 = por %p35, %p36
    %p38 = scmp.ne.s32.totalorder %s27, %s30
    %p39 = scmp.eq.s32.totalorder %s22, 1
    %p40 = por %p38, %p39
    %p41 = scmp.ne.s32.totalorder %s30, %s31
    %p42 = scmp.eq.s32.totalorder %s22, 0
    %p43 = por %p41, %p42
    %p44 = scmp.ne.s32.totalorder %s30, %s31
    %p45 = scmp.eq.s32.totalorder %s23, 1
    %p46 = por %p44, %p45
    %p48 = scmp.ne.s32.totalorder %s31, %s47
    %p49 = scmp.eq.s32.totalorder %s23, 0
    %p50 = por %p48, %p49
    %s52 = sadd.s32 %s51, 1
    %p55 = scmp.eq.s32.totalorder %s17, 1
    %p56 = scmp.ne.s32.totalorder %s51, %s53
    %p57 = scmp.eq.s32.totalorder %s17, 0
    %p58 = por %p56, %p57
    %p59 = scmp.ne.s32.totalorder %s51, %s53
    %p60 = scmp.eq.s32.totalorder %s22, 1
    %p61 = por %p59, %p60
    %p62 = scmp.ne.s32.totalorder %s53, %s54
    %p63 = scmp.eq.s32.totalorder %s22, 0
    %p64 = por %p62, %p63
    %p65 = scmp.ne.s32.totalorder %s53, %s54
    %p66 = scmp.eq.s32.totalorder %s23, 1
    %p67 = por %p65, %p66
    %p69 = scmp.ne.s32.totalorder %s54, %s68
    %p70 = scmp.eq.s32.totalorder %s23, 0
    %p71 = por %p69, %p70
    %s73 = sadd.s32 %s72, 1
    %p76 = scmp.eq.s32.totalorder %s17, 1
    %p77 = scmp.ne.s32.totalorder %s72, %s74
    %p78 = scmp.eq.s32.totalorder %s17, 0
    %p79 = por %p77, %p78
    %p80 = scmp.ne.s32.totalorder %s72, %s74
    %p81 = scmp.eq.s32.totalorder %s22, 1
    %p82 = por %p80, %p81
    %p83 = scmp.ne.s32.totalorder %s74, %s75
    %p84 = scmp.eq.s32.totalorder %s22, 0
    %p85 = por %p83, %p84
    %p86 = scmp.ne.s32.totalorder %s74, %s75
    %p87 = scmp.eq.s32.totalorder %s23, 1
    %p88 = por %p86, %p87
    %p90 = scmp.ne.s32.totalorder %s75, %s89
    %p91 = scmp.eq.s32.totalorder %s23, 0
    %p92 = por %p90, %p91
    %s94 = sadd.s32 %s93, 1
    %p97 = scmp.eq.s32.totalorder %s17, 1
    %p98 = scmp.ne.s32.totalorder %s93, %s95
    %p99 = scmp.eq.s32.totalorder %s17, 0
    %p100 = por %p98, %p99
    %p101 = scmp.ne.s32.totalorder %s93, %s95
    %p102 = scmp.eq.s32.totalorder %s22, 1
    %p103 = por %p101, %p102
    %p104 = scmp.ne.s32.totalorder %s95, %s96
    %p105 = scmp.eq.s32.totalorder %s22, 0
    %p106 = por %p104, %p105
    %p107 = scmp.ne.s32.totalorder %s95, %s96
    %p108 = scmp.eq.s32.totalorder %s23, 1
    %p109 = por %p107, %p108
    %p111 = scmp.ne.s32.totalorder %s96, %s110
    %p112 = scmp.eq.s32.totalorder %s23, 0
    %p113 = por %p111, %p112
    %s115 = sadd.s32 %s114, 1
    %p118 = scmp.eq.s32.totalorder %s17, 1
    %p119 = scmp.ne.s32.totalorder %s114, %s116
    %p120 = scmp.eq.s32.totalorder %s17, 0
    %p121 = por %p119, %p120
    %p122 = scmp.ne.s32.totalorder %s114, %s116
    %p123 = scmp.eq.s32.totalorder %s22, 1
    %p124 = por %p122, %p123
    %p125 = scmp.ne.s32.totalorder %s116, %s117
    %p126 = scmp.eq.s32.totalorder %s22, 0
    %p127 = por %p125, %p126
    %p128 = scmp.ne.s32.totalorder %s116, %s117
    %p129 = scmp.eq.s32.totalorder %s23, 1
    %p130 = por %p128, %p129
    %p132 = scmp.ne.s32.totalorder %s117, %s131
    %p133 = scmp.eq.s32.totalorder %s23, 0
    %p134 = por %p132, %p133
    %s136 = sadd.s32 %s135, 1
    %p139 = scmp.eq.s32.totalorder %s17, 1
    %p140 = scmp.ne.s32.totalorder %s135, %s137
    %p141 = scmp.eq.s32.totalorder %s17, 0
    %p142 = por %p140, %p141
    %p143 = scmp.ne.s32.totalorder %s135, %s137
    %p144 = scmp.eq.s32.totalorder %s22, 1
    %p145 = por %p143, %p144
    %p146 = scmp.ne.s32.totalorder %s137, %s138
    %p147 = scmp.eq.s32.totalorder %s22, 0
    %p148 = por %p146, %p147
    %p149 = scmp.ne.s32.totalorder %s137, %s138
    %p150 = scmp.eq.s32.totalorder %s23, 1
    %p151 = por %p149, %p150
    %p153 = scmp.ne.s32.totalorder %s138, %s152
    %p154 = scmp.eq.s32.totalorder %s23, 0
    %p155 = por %p153, %p154
    %s157 = sadd.s32 %s156, 1
    %p160 = scmp.eq.s32.totalorder %s17, 1
    %p161 = scmp.ne.s32.totalorder %s156, %s158
    %p162 = scmp.eq.s32.totalorder %s17, 0
    %p163 = por %p161, %p162
    %p164 = scmp.ne.s32.totalorder %s156, %s158
    %p165 = scmp.eq.s32.totalorder %s22, 1
    %p166 = por %p164, %p165
    %p167 = scmp.ne.s32.totalorder %s158, %s159
    %p168 = scmp.eq.s32.totalorder %s22, 0
    %p169 = por %p167, %p168
    %p170 = scmp.ne.s32.totalorder %s158, %s159
    %p171 = scmp.eq.s32.totalorder %s23, 1
    %p172 = por %p170, %p171
    %p174 = scmp.ne.s32.totalorder %s159, %s173
    %p175 = scmp.eq.s32.totalorder %s23, 0
    %p176 = por %p174, %p175
    %s178 = sadd.s32 %s177, 1
    %p181 = scmp.eq.s32.totalorder %s17, 1
    %p182 = scmp.ne.s32.totalorder %s177, %s179
    %p183 = scmp.eq.s32.totalorder %s17, 0
    %p184 = por %p182, %p183
    %p185 = scmp.ne.s32.totalorder %s177, %s179
    %p186 = scmp.eq.s32.totalorder %s22, 1
    %p187 = por %p185, %p186
    %p188 = scmp.ne.s32.totalorder %s179, %s180
    %p189 = scmp.eq.s32.totalorder %s22, 0
    %p190 = por %p188, %p189
    %p191 = scmp.ne.s32.totalorder %s179, %s180
    %p192 = scmp.eq.s32.totalorder %s23, 1
    %p193 = por %p191, %p192
    %p195 = scmp.ne.s32.totalorder %s180, %s194
    %p196 = scmp.eq.s32.totalorder %s23, 0
    %p197 = por %p195, %p196
    %s199 = sadd.s32 %s198, 1
    %p202 = scmp.eq.s32.totalorder %s17, 1
    %p203 = scmp.ne.s32.totalorder %s198, %s200
    %p204 = scmp.eq.s32.totalorder %s17, 0
    %p205 = por %p203, %p204
    %p206 = scmp.ne.s32.totalorder %s198, %s200
    %p207 = scmp.eq.s32.totalorder %s22, 1
    %p208 = por %p206, %p207
    %p209 = scmp.ne.s32.totalorder %s200, %s201
    %p210 = scmp.eq.s32.totalorder %s22, 0
    %p211 = por %p209, %p210
    %p212 = scmp.ne.s32.totalorder %s200, %s201
    %p213 = scmp.eq.s32.totalorder %s23, 1
    %p214 = por %p212, %p213
    %p216 = scmp.ne.s32.totalorder %s201, %s215
    %p217 = scmp.eq.s32.totalorder %s23, 0
    %p218 = por %p216, %p217
    %s220 = sadd.s32 %s219, 1
    %p223 = scmp.eq.s32.totalorder %s17, 1
    %p224 = scmp.ne.s32.totalorder %s219, %s221
    %p225 = scmp.eq.s32.totalorder %s17, 0
    %p226 = por %p224, %p225
    %p227 = scmp.ne.s32.totalorder %s219, %s221
    %p228 = scmp.eq.s32.totalorder %s22, 1
    %p229 = por %p227, %p228
    %p230 = scmp.ne.s32.totalorder %s221, %s222
    %p231 = scmp.eq.s32.totalorder %s22, 0
    %p232 = por %p230, %p231
    %p233 = scmp.ne.s32.totalorder %s221, %s222
    %p234 = scmp.eq.s32.totalorder %s23, 1
    %p235 = por %p233, %p234
    %p237 = scmp.ne.s32.totalorder %s222, %s236
    %p238 = scmp.eq.s32.totalorder %s23, 0
    %p239 = por %p237, %p238
    %s241 = sadd.s32 %s240, 1
    %p244 = scmp.eq.s32.totalorder %s17, 1
    %p245 = scmp.ne.s32.totalorder %s240, %s242
    %p246 = scmp.eq.s32.totalorder %s17, 0
    %p247 = por %p245, %p246
    %p248 = scmp.ne.s32.totalorder %s240, %s242
    %p249 = scmp.eq.s32.totalorder %s22, 1
    %p250 = por %p248, %p249
    %p251 = scmp.ne.s32.totalorder %s242, %s243
    %p252 = scmp.eq.s32.totalorder %s22, 0
    %p253 = por %p251, %p252
    %p254 = scmp.ne.s32.totalorder %s242, %s243
    %p255 = scmp.eq.s32.totalorder %s23, 1
    %p256 = por %p254, %p255
    %p258 = scmp.ne.s32.totalorder %s243, %s257
    %p259 = scmp.eq.s32.totalorder %s23, 0
    %p260 = por %p258, %p259
    %s261 = ssub.s32 %s17, %s24
    %p262 = scmp.eq.s32.totalorder %s261, 0
    %s264 = sadd.s32 %s263, 1
    %s265 = scalar_select %p262, %s263, %s264
    %p268 = pneg %p262
    %p269 = scmp.eq.s32.totalorder %s17, 1
    %p270 = por %p268, %p269
    %p271 = scmp.ne.s32.totalorder %s263, %s266
    %p272 = scmp.eq.s32.totalorder %s17, 0
    %p273 = por %p271, %p272
    %p274 = scmp.ne.s32.totalorder %s263, %s266
    %p275 = scmp.eq.s32.totalorder %s22, 1
    %p276 = por %p274, %p275
    %p277 = scmp.ne.s32.totalorder %s266, %s267
    %p278 = scmp.eq.s32.totalorder %s22, 0
    %p279 = por %p277, %p278
    %p280 = scmp.ne.s32.totalorder %s266, %s267
    %p281 = scmp.eq.s32.totalorder %s23, 1
    %p282 = por %p280, %p281
    %p284 = scmp.ne.s32.totalorder %s267, %s283
    %p285 = scmp.eq.s32.totalorder %s23, 0
    %p286 = por %p284, %p285
    %p287 = scmp.le.s32.totalorder 1, %s17
    %p288 = scmp.lt.s32.totalorder %s17, 3
    %p289 = pnand %p287, %p288
    %p290 = pneg %p289
    // Predicated region
    $region9: #{clifford_g3_upblock_forward.1} parent=5 // pred_check
      _
    $region10: #{clifford_g3_upblock_forward.1} parent=5 // pred_check_branch
      %292 = sbr.rel (%p289) target = $region12
    $region11: #{clifford_g3_upblock_forward.1} parent=5 // pred_region
      %s293 = ssub.s32 %s17, 1
      // Predicated region
      $region13: #{clifford_g3_upblock_forward.1} parent=11 // pred_check
        %p294 = pneg %p64
      $region14: #{clifford_g3_upblock_forward.1} parent=11 // pred_check_branch
        %296 = sbr.rel (%p294) target = $region16
      $region15: #{clifford_g3_upblock_forward.1} parent=11 // pred_region
        _
      $region16: #{clifford_g3_upblock_forward.1} parent=11 // pred_fallthru
        _
      // Predicated region
      $region17: #{clifford_g3_upblock_forward.1} parent=11 // pred_check
        %p297 = pneg %p85
      $region18: #{clifford_g3_upblock_forward.1} parent=11 // pred_check_branch
        %299 = sbr.rel (%p297) target = $region20
      $region19: #{clifford_g3_upblock_forward.1} parent=11 // pred_region
        _
      $region20: #{clifford_g3_upblock_forward.1} parent=11 // pred_fallthru
        _
      // Predicated region
      $region21: #{clifford_g3_upblock_forward.1} parent=11 // pred_check
        %p300 = pneg %p106
      $region22: #{clifford_g3_upblock_forward.1} parent=11 // pred_check_branch
        %302 = sbr.rel (%p300) target = $region24
      $region23: #{clifford_g3_upblock_forward.1} parent=11 // pred_region
        _
      $region24: #{clifford_g3_upblock_forward.1} parent=11 // pred_fallthru
        _
      // Predicated region
      $region25: #{clifford_g3_upblock_forward.1} parent=11 // pred_check
        %p303 = pneg %p127
      $region26: #{clifford_g3_upblock_forward.1} parent=11 // pred_check_branch
        %305 = sbr.rel (%p303) target = $region28
      $region27: #{clifford_g3_upblock_forward.1} parent=11 // pred_region
        _
      $region28: #{clifford_g3_upblock_forward.1} parent=11 // pred_fallthru
        _
      // Predicated region
      $region29: #{clifford_g3_upblock_forward.1} parent=11 // pred_check
        %p306 = pneg %p148
      $region30: #{clifford_g3_upblock_forward.1} parent=11 // pred_check_branch
        %308 = sbr.rel (%p306) target = $region32
      $region31: #{clifford_g3_upblock_forward.1} parent=11 // pred_region
        _
      $region32: #{clifford_g3_upblock_forward.1} parent=11 // pred_fallthru
        _
      // Predicated region
      $region33: #{clifford_g3_upblock_forward.1} parent=11 // pred_check
        %p309 = pneg %p169
      $region34: #{clifford_g3_upblock_forward.1} parent=11 // pred_check_branch
        %311 = sbr.rel (%p309) target = $region36
      $region35: #{clifford_g3_upblock_forward.1} parent=11 // pred_region
        _
      $region36: #{clifford_g3_upblock_forward.1} parent=11 // pred_fallthru
        _
      // Predicated region
      $region37: #{clifford_g3_upblock_forward.1} parent=11 // pred_check
        %p312 = pneg %p190
      $region38: #{clifford_g3_upblock_forward.1} parent=11 // pred_check_branch
        %314 = sbr.rel (%p312) target = $region40
      $region39: #{clifford_g3_upblock_forward.1} parent=11 // pred_region
        _
      $region40: #{clifford_g3_upblock_forward.1} parent=11 // pred_fallthru
        _
      // Predicated region
      $region41: #{clifford_g3_upblock_forward.1} parent=11 // pred_check
        %p315 = pneg %p211
      $region42: #{clifford_g3_upblock_forward.1} parent=11 // pred_check_branch
        %317 = sbr.rel (%p315) target = $region44
      $region43: #{clifford_g3_upblock_forward.1} parent=11 // pred_region
        _
      $region44: #{clifford_g3_upblock_forward.1} parent=11 // pred_fallthru
        _
      // Predicated region
      $region45: #{clifford_g3_upblock_forward.1} parent=11 // pred_check
        %p318 = pneg %p232
      $region46: #{clifford_g3_upblock_forward.1} parent=11 // pred_check_branch
        %320 = sbr.rel (%p318) target = $region48
      $region47: #{clifford_g3_upblock_forward.1} parent=11 // pred_region
        _
      $region48: #{clifford_g3_upblock_forward.1} parent=11 // pred_fallthru
        _
      // Predicated region
      $region49: #{clifford_g3_upblock_forward.1} parent=11 // pred_check
        %p321 = pneg %p253
      $region50: #{clifford_g3_upblock_forward.1} parent=11 // pred_check_branch
        %323 = sbr.rel (%p321) target = $region52
      $region51: #{clifford_g3_upblock_forward.1} parent=11 // pred_region
        _
      $region52: #{clifford_g3_upblock_forward.1} parent=11 // pred_fallthru
        _
    $region12: #{clifford_g3_upblock_forward.1} parent=5 // pred_fallthru
      _
    %p324 = scmp.lt.s32.totalorder %s17, 2
    // Predicated region
    $region53: #{clifford_g3_upblock_forward.1} parent=5 // pred_check
      %p325 = pneg %p324
    $region54: #{clifford_g3_upblock_forward.1} parent=5 // pred_check_branch
      %327 = sbr.rel (%p325) target = $region56
    $region55: #{clifford_g3_upblock_forward.1} parent=5 // pred_region
      // Predicated region
      $region57: #{clifford_g3_upblock_forward.1} parent=55 // pred_check
        %p328 = pneg %p37
      $region58: #{clifford_g3_upblock_forward.1} parent=55 // pred_check_branch
        %330 = sbr.rel (%p328) target = $region60
      $region59: #{clifford_g3_upblock_forward.1} parent=55 // pred_region
        %p331 = scmp.lt.s32.totalorder %s17, 1
        %s332 = scalar_select %p331, %s17, 1
        %s333 = smul.addr %s332, 9
        %s334 = smul.addr %s333, 8
        %s335 = scalar_lea.vmem %s0, %s334
      $region60: #{clifford_g3_upblock_forward.1} parent=55 // pred_fallthru
        _
    $region56: #{clifford_g3_upblock_forward.1} parent=5 // pred_fallthru
      _
    %p336 = scmp.le.s32.totalorder 1, %s17
    %p337 = scmp.lt.s32.totalorder %s17, 3
    %p338 = pnand %p336, %p337
    %p339 = pneg %p338
    // Predicated region
    $region61: #{clifford_g3_upblock_forward.1} parent=5 // pred_check
      _
    $region62: #{clifford_g3_upblock_forward.1} parent=5 // pred_check_branch
      %341 = sbr.rel (%p338) target = $region64
    $region63: #{clifford_g3_upblock_forward.1} parent=5 // pred_region
      %s342 = ssub.s32 %s17, 1
      %p343 = scmp.lt.s32.totalorder %s22, 1
      %s344 = scalar_select %p343, %s22, 1
      %s345 = smul.addr %s344, 9
      %s346 = smul.addr %s345, 8
      %s347 = scalar_lea.vmem %s0, %s346
      %p348 = pneg %p43
      %p349 = pneg %p40
      %p350 = pneg %p64
      %p351 = pneg %p61
      %p352 = pneg %p85
      %p353 = pneg %p82
      %p354 = pneg %p106
      %p355 = pneg %p103
      %p356 = pneg %p127
      %p357 = pneg %p124
      %p358 = pneg %p148
      %p359 = pneg %p145
      %p360 = pneg %p169
      %p361 = pneg %p166
      %p362 = pneg %p190
      %p363 = pneg %p187
      %p364 = pneg %p211
      %p365 = pneg %p208
      %p366 = pneg %p232
      %p367 = pneg %p229
      %p368 = pneg %p253
      %p369 = pneg %p250
      %p370 = pneg %p279
      %p371 = pneg %p276
      %p372 = scmp.lt.s32.totalorder %s22, 1
      %s373 = scalar_select %p372, %s22, 1
      %s374 = smul.addr %s373, 6
      %s375 = smul.addr %s374, 8
      %s376 = scalar_lea.vmem %s11, %s375
      %p377 = scmp.lt.s32.totalorder %s22, 1
      %s378 = scalar_select %p377, %s22, 1
      %s379 = smul.addr %s378, 9
      %s380 = smul.addr %s379, 8
      %s381 = scalar_lea.vmem %s0, %s380
      %p382 = scmp.lt.s32.totalorder %s22, 1
      %s383 = scalar_select %p382, %s22, 1
      %s384 = smul.addr %s383, 6
      %s385 = smul.addr %s384, 8
      %s386 = scalar_lea.vmem %s11, %s385
      %v387 = vld [vmem:[%s381] sm:$0xff]
      %v388 = vld [vmem:[%s381 + $0x8] sm:$0xff]
      %v389 = vld [vmem:[%s381 + $0x10] sm:$0xff]
      %v390 = vld [vmem:[%s381 + $0x18] sm:$0xff]
      %v391 = vld [vmem:[%s381 + $0x20] sm:$0xff]
      %v392 = vld [vmem:[%s381 + $0x28] sm:$0xff]
      %v393 = vld [vmem:[%s381 + $0x30] sm:$0xff]
      %v394 = vld [vmem:[%s381 + $0x38] sm:$0xff]
      %v395 = vld [vmem:[%s381 + $0x40] sm:$0xff]
      %v396 = vld [vmem:[%s6] sm:$0xff]
      %v397 = vld [vmem:[%s6 + $0x8] sm:$0xff]
      %v398 = vld [vmem:[%s6 + $0x10] sm:$0xff]
      %v399 = vld [vmem:[%s7] sm:$0xff]
      %v400 = vld [vmem:[%s7 + $0x8] sm:$0xff]
      %v401 = vld [vmem:[%s7 + $0x10] sm:$0xff]
      %403 = vset.pattern.permute.xlu0 0
      %404 = vperm.xlu0 %403, %v399
      %v405 = vpop.permute.xlu0 %404
      %408 = vset.pattern.permute.xlu0 0
      %409 = vperm.xlu0 %408, %v400
      %v410 = vpop.permute.xlu0 %409
      %413 = vset.pattern.permute.xlu0 0
      %414 = vperm.xlu0 %413, %v401
      %v415 = vpop.permute.xlu0 %414
      %vm417 = vcmask 195584
      %v419 = vsel %vm417, %v396, 0
      %v422 = vsel %vm417, %v397, 0
      %v425 = vsel %vm417, %v398, 0
      %427 = vmatprep.subr.mxu0 %v388
      %428 = vmatpush1.msra.mxu0 %v387
      %429 = vmatprep.subr.mxu0 %v391
      %430 = vmatpush1.msra.mxu0 %v390
      %431 = vmatprep.subr.mxu0 %v394
      %432 = vmatpush1.msra.mxu0 %v393
      %433 = vmatprep.subr.mxu0 0.0
      %434 = vmatpush1.msra.mxu0 0.0
      %435 = vmatprep.subr.mxu0 0.0
      %436 = vmatpush1.msra.mxu0 0.0
      %437 = vmatprep.subr.mxu0 0.0
      %438 = vmatpush1.msra.mxu0 0.0
      %439 = vmatprep.subr.mxu0 0.0
      %440 = vmatpush1.msra.mxu0 0.0
      %441 = vmatprep.subr.mxu0 0.0
      %442 = vmatpush1.msra.mxu0 0.0
      %443 = vmatprep.subr.mxu0 0.0
      %444 = vmatpush1.msra.mxu0 0.0
      %445 = vmatprep.subr.mxu0 0.0
      %446 = vmatpush1.msra.mxu0 0.0
      %447 = vmatprep.subr.mxu0 0.0
      %448 = vmatpush1.msra.mxu0 0.0
      %449 = vmatprep.subr.mxu0 0.0
      %450 = vmatpush1.msra.mxu0 0.0
      %451 = vmatprep.subr.mxu0 0.0
      %452 = vmatpush1.msra.mxu0 0.0
      %453 = vmatprep.subr.mxu0 0.0
      %454 = vmatpush1.msra.mxu0 0.0
      %455 = vmatprep.subr.mxu0 0.0
      %456 = vmatpush1.msra.mxu0 0.0
      %457 = vmatprep.subr.mxu0 0.0
      %458 = vmatpush1.msra.mxu0 0.0
      %459 = vmatprep.subr.mxu0 0.0
      %460 = vmatpush1.msra.mxu0 0.0
      %461 = vmatprep.subr.mxu0 0.0
      %462 = vmatpush1.msra.mxu0 0.0
      %463 = vmatprep.subr.mxu0 0.0
      %464 = vmatpush1.msra.mxu0 0.0
      %465 = vmatprep.subr.mxu0 0.0
      %466 = vmatpush1.msra.mxu0 0.0
      %467 = vmatprep.subr.mxu0 0.0
      %468 = vmatpush1.msra.mxu0 0.0
      %469 = vmatprep.subr.mxu0 0.0
      %470 = vmatpush1.msra.mxu0 0.0
      %471 = vmatprep.subr.mxu0 0.0
      %472 = vmatpush1.msra.mxu0 0.0
      %473 = vmatprep.subr.mxu0 0.0
      %474 = vmatpush1.msra.mxu0 0.0
      %475 = vmatprep.subr.mxu0 0.0
      %476 = vmatpush1.msra.mxu0 0.0
      %477 = vmatprep.subr.mxu0 0.0
      %478 = vmatpush1.msra.mxu0 0.0
      %479 = vmatprep.subr.mxu0 0.0
      %480 = vmatpush1.msra.mxu0 0.0
      %481 = vmatprep.subr.mxu0 0.0
      %482 = vmatpush1.msra.mxu0 0.0
      %483 = vmatprep.subr.mxu0 0.0
      %484 = vmatpush1.msra.mxu0 0.0
      %485 = vmatprep.subr.mxu0 0.0
      %486 = vmatpush1.msra.mxu0 0.0
      %487 = vmatprep.subr.mxu0 0.0
      %488 = vmatpush1.msra.mxu0 0.0
      %489 = vmatprep.subr.mxu0 0.0
      %490 = vmatpush1.msra.mxu0 0.0
      %491 = vmatprep.mubr.f32.mxu0 0.0
      %492 = vmatmul.mubr.f32.gmra.mrb[0].mxu0 %v419
      %v493 = vpop.f32.mrb[0].mxu0
      %v494 = vadd.f32 %v405, %v493
      %v495 = vpop.f32.mrb[0].mxu0
      %v496 = vadd.f32 %v405, %v495
      %497 = vmatprep.mubr.f32.mxu0 0.0
      %498 = vmatmul.mubr.f32.gmra.mrb[0].mxu0 %v422
      %v499 = vpop.f32.mrb[0].mxu0
      %v500 = vadd.f32 %v410, %v499
      %v501 = vpop.f32.mrb[0].mxu0
      %v502 = vadd.f32 %v410, %v501
      %503 = vmatprep.mubr.f32.mxu0 0.0
      %504 = vmatmul.mubr.f32.gmra.mrb[0].mxu0 %v425
      %v505 = vpop.f32.mrb[0].mxu0
      %v506 = vadd.f32 %v415, %v505
      %v507 = vpop.f32.mrb[0].mxu0
      %v508 = vadd.f32 %v415, %v507
      %509 = vdwg.mxu0
      %510 = vmatprep.subr.mxu0 0.0
      %511 = vmatpush1.msra.mxu0 %v389
      %512 = vmatprep.subr.mxu0 0.0
      %513 = vmatpush1.msra.mxu0 %v392
      %514 = vmatprep.subr.mxu0 0.0
      %515 = vmatpush1.msra.mxu0 %v395
      %516 = vmatprep.subr.mxu0 0.0
      %517 = vmatpush1.msra.mxu0 0.0
      %518 = vmatprep.subr.mxu0 0.0
      %519 = vmatpush1.msra.mxu0 0.0
      %520 = vmatprep.subr.mxu0 0.0
      %521 = vmatpush1.msra.mxu0 0.0
      %522 = vmatprep.subr.mxu0 0.0
      %523 = vmatpush1.msra.mxu0 0.0
      %524 = vmatprep.subr.mxu0 0.0
      %525 = vmatpush1.msra.mxu0 0.0
      %526 = vmatprep.subr.mxu0 0.0
      %527 = vmatpush1.msra.mxu0 0.0
      %528 = vmatprep.subr.mxu0 0.0
      %529 = vmatpush1.msra.mxu0 0.0
      %530 = vmatprep.subr.mxu0 0.0
      %531 = vmatpush1.msra.mxu0 0.0
      %532 = vmatprep.subr.mxu0 0.0
      %533 = vmatpush1.msra.mxu0 0.0
      %534 = vmatprep.subr.mxu0 0.0
      %535 = vmatpush1.msra.mxu0 0.0
      %536 = vmatprep.subr.mxu0 0.0
      %537 = vmatpush1.msra.mxu0 0.0
      %538 = vmatprep.subr.mxu0 0.0
      %539 = vmatpush1.msra.mxu0 0.0
      %540 = vmatprep.subr.mxu0 0.0
      %541 = vmatpush1.msra.mxu0 0.0
      %542 = vmatprep.subr.mxu0 0.0
      %543 = vmatpush1.msra.mxu0 0.0
      %544 = vmatprep.subr.mxu0 0.0
      %545 = vmatpush1.msra.mxu0 0.0
      %546 = vmatprep.subr.mxu0 0.0
      %547 = vmatpush1.msra.mxu0 0.0
      %548 = vmatprep.subr.mxu0 0.0
      %549 = vmatpush1.msra.mxu0 0.0
      %550 = vmatprep.subr.mxu0 0.0
      %551 = vmatpush1.msra.mxu0 0.0
      %552 = vmatprep.subr.mxu0 0.0
      %553 = vmatpush1.msra.mxu0 0.0
      %554 = vmatprep.subr.mxu0 0.0
      %555 = vmatpush1.msra.mxu0 0.0
      %556 = vmatprep.subr.mxu0 0.0
      %557 = vmatpush1.msra.mxu0 0.0
      %558 = vmatprep.subr.mxu0 0.0
      %559 = vmatpush1.msra.mxu0 0.0
      %560 = vmatprep.subr.mxu0 0.0
      %561 = vmatpush1.msra.mxu0 0.0
      %562 = vmatprep.subr.mxu0 0.0
      %563 = vmatpush1.msra.mxu0 0.0
      %564 = vmatprep.subr.mxu0 0.0
      %565 = vmatpush1.msra.mxu0 0.0
      %566 = vmatprep.subr.mxu0 0.0
      %567 = vmatpush1.msra.mxu0 0.0
      %568 = vmatprep.subr.mxu0 0.0
      %569 = vmatpush1.msra.mxu0 0.0
      %570 = vmatprep.subr.mxu0 0.0
      %571 = vmatpush1.msra.mxu0 0.0
      %572 = vmatprep.subr.mxu0 0.0
      %573 = vmatpush1.msra.mxu0 0.0
      %574 = vmatprep.mubr.f32.mxu0 0.0
      %575 = vmatmul.mubr.f32.gmra.mrb[0].mxu0 %v419
      %v576 = vpop.f32.mrb[0].mxu0
      %v577 = vadd.f32 %v405, %v576
      %v578 = vpop.f32.mrb[0].mxu0
      %579 = vmatprep.mubr.f32.mxu0 0.0
      %580 = vmatmul.mubr.f32.gmra.mrb[0].mxu0 %v422
      %v581 = vpop.f32.mrb[0].mxu0
      %v582 = vadd.f32 %v410, %v581
      %v583 = vpop.f32.mrb[0].mxu0
      %584 = vmatprep.mubr.f32.mxu0 0.0
      %585 = vmatmul.mubr.f32.gmra.mrb[0].mxu0 %v425
      %v586 = vpop.f32.mrb[0].mxu0
      %v587 = vadd.f32 %v415, %v586
      %v588 = vpop.f32.mrb[0].mxu0
      %589 = vdwg.mxu0
      %v590 = vxor.u32 %v494, 2147483648
      %v591 = vxor.u32 %v496, 2147483648
      %v592 = vxor.u32 %v577, 2147483648
      %v593 = vxor.u32 %v500, 2147483648
      %v594 = vxor.u32 %v502, 2147483648
      %v595 = vxor.u32 %v582, 2147483648
      %v596 = vxor.u32 %v506, 2147483648
      %v597 = vxor.u32 %v508, 2147483648
      %v598 = vxor.u32 %v587, 2147483648
      %v599 = vmul.f32 %v590, 1.442695
      %v600 = vpow.pop %v599
      %v601 = vmul.f32 %v591, 1.442695
      %v602 = vpow.pop %v601
      %v603 = vmul.f32 %v592, 1.442695
      %v604 = vpow.pop %v603
      %v605 = vmul.f32 %v593, 1.442695
      %v606 = vpow.pop %v605
      %v607 = vmul.f32 %v594, 1.442695
      %v608 = vpow.pop %v607
      %v609 = vmul.f32 %v595, 1.442695
      %v610 = vpow.pop %v609
      %v611 = vmul.f32 %v596, 1.442695
      %v612 = vpow.pop %v611
      %v613 = vmul.f32 %v597, 1.442695
      %v614 = vpow.pop %v613
      %v615 = vmul.f32 %v598, 1.442695
      %v616 = vpow.pop %v615
      %v617 = vadd.f32 %v600, 1.0
      %v618 = vadd.f32 %v602, 1.0
      %v619 = vadd.f32 %v604, 1.0
      %v620 = vadd.f32 %v606, 1.0
      %v621 = vadd.f32 %v608, 1.0
      %v622 = vadd.f32 %v610, 1.0
      %v623 = vadd.f32 %v612, 1.0
      %v624 = vadd.f32 %v614, 1.0
      %v625 = vadd.f32 %v616, 1.0
      %v626 = vrcp.pop %v617
      %v627 = vmul.f32 1.0, %v626
      %v628 = vrcp.pop %v618
      %v629 = vmul.f32 1.0, %v628
      %v630 = vrcp.pop %v619
      %v631 = vmul.f32 1.0, %v630
      %v632 = vrcp.pop %v620
      %v633 = vmul.f32 1.0, %v632
      %v634 = vrcp.pop %v621
      %v635 = vmul.f32 1.0, %v634
      %v636 = vrcp.pop %v622
      %v637 = vmul.f32 1.0, %v636
      %v638 = vrcp.pop %v623
      %v639 = vmul.f32 1.0, %v638
      %v640 = vrcp.pop %v624
      %v641 = vmul.f32 1.0, %v640
      %v642 = vrcp.pop %v625
      %v643 = vmul.f32 1.0, %v642
      %v644 = vmul.f32 %v387, %v627
      %v645 = vmul.f32 %v388, %v629
      %v646 = vmul.f32 %v389, %v631
      %v647 = vmul.f32 %v390, %v633
      %v648 = vmul.f32 %v391, %v635
      %v649 = vmul.f32 %v392, %v637
      %v650 = vmul.f32 %v393, %v639
      %v651 = vmul.f32 %v394, %v641
      %v652 = vmul.f32 %v395, %v643
      %v653 = vld [vmem:[%s1] sm:$0xff]
      %v654 = vld [vmem:[%s1 + $0x8] sm:$0xf]
      %s655 = scalar_lea.vmem %s1, 16
      %v656 = vld [vmem:[%s655] sm:$0xff]
      %v657 = vld [vmem:[%s655 + $0x8] sm:$0xf]
      %667 = vrot.lane.b32.xlu0 %v644, 127
      %v668 = vpop.permute.xlu0 %667
      %669 = vrot.lane.b32.xlu0 %v645, 127
      %v670 = vpop.permute.xlu0 %669
      %671 = vrot.lane.b32.xlu0 %v646, 127
      %v672 = vpop.permute.xlu0 %671
      %673 = vrot.lane.b32.xlu0 %v647, 127
      %v674 = vpop.permute.xlu0 %673
      %675 = vrot.lane.b32.xlu0 %v648, 127
      %v676 = vpop.permute.xlu0 %675
      %677 = vrot.lane.b32.xlu0 %v649, 127
      %v678 = vpop.permute.xlu0 %677
      %679 = vrot.lane.b32.xlu0 %v650, 127
      %v680 = vpop.permute.xlu0 %679
      %681 = vrot.lane.b32.xlu0 %v651, 127
      %v682 = vpop.permute.xlu0 %681
      %683 = vrot.lane.b32.xlu0 %v652, 127
      %v684 = vpop.permute.xlu0 %683
      %vm685 = vcmask 1039360
      %v686 = vsel %vm685, %v668, %v670
      %v687 = vsel %vm685, %v670, %v672
      %v688 = vsel %vm685, %v674, %v676
      %v689 = vsel %vm685, %v676, %v678
      %v690 = vsel %vm685, %v680, %v682
      %v691 = vsel %vm685, %v682, %v684
      %v702 = vsel %vm417, %v656, 0
      %v705 = vsel %vm417, %v657, 0
      %707 = vmatprep.subr.mxu0 %v687
      %708 = vmatpush1.msra.mxu0 %v686
      %709 = vmatprep.subr.mxu0 %v689
      %710 = vmatpush1.msra.mxu0 %v688
      %711 = vmatprep.subr.mxu0 %v691
      %712 = vmatpush1.msra.mxu0 %v690
      %713 = vmatprep.subr.mxu0 0.0
      %714 = vmatpush1.msra.mxu0 0.0
      %715 = vmatprep.subr.mxu0 0.0
      %716 = vmatpush1.msra.mxu0 0.0
      %717 = vmatprep.subr.mxu0 0.0
      %718 = vmatpush1.msra.mxu0 0.0
      %719 = vmatprep.subr.mxu0 0.0
      %720 = vmatpush1.msra.mxu0 0.0
      %721 = vmatprep.subr.mxu0 0.0
      %722 = vmatpush1.msra.mxu0 0.0
      %723 = vmatprep.subr.mxu0 0.0
      %724 = vmatpush1.msra.mxu0 0.0
      %725 = vmatprep.subr.mxu0 0.0
      %726 = vmatpush1.msra.mxu0 0.0
      %727 = vmatprep.subr.mxu0 0.0
      %728 = vmatpush1.msra.mxu0 0.0
      %729 = vmatprep.subr.mxu0 0.0
      %730 = vmatpush1.msra.mxu0 0.0
      %731 = vmatprep.subr.mxu0 0.0
      %732 = vmatpush1.msra.mxu0 0.0
      %733 = vmatprep.subr.mxu0 0.0
      %734 = vmatpush1.msra.mxu0 0.0
      %735 = vmatprep.subr.mxu0 0.0
      %736 = vmatpush1.msra.mxu0 0.0
      %737 = vmatprep.subr.mxu0 0.0
      %738 = vmatpush1.msra.mxu0 0.0
      %739 = vmatprep.subr.mxu0 0.0
      %740 = vmatpush1.msra.mxu0 0.0
      %741 = vmatprep.subr.mxu0 0.0
      %742 = vmatpush1.msra.mxu0 0.0
      %743 = vmatprep.subr.mxu0 0.0
      %744 = vmatpush1.msra.mxu0 0.0
      %745 = vmatprep.subr.mxu0 0.0
      %746 = vmatpush1.msra.mxu0 0.0
      %747 = vmatprep.subr.mxu0 0.0
      %748 = vmatpush1.msra.mxu0 0.0
      %749 = vmatprep.subr.mxu0 0.0
      %750 = vmatpush1.msra.mxu0 0.0
      %751 = vmatprep.subr.mxu0 0.0
      %752 = vmatpush1.msra.mxu0 0.0
      %753 = vmatprep.subr.mxu0 0.0
      %754 = vmatpush1.msra.mxu0 0.0
      %755 = vmatprep.subr.mxu0 0.0
      %756 = vmatpush1.msra.mxu0 0.0
      %757 = vmatprep.subr.mxu0 0.0
      %758 = vmatpush1.msra.mxu0 0.0
      %759 = vmatprep.subr.mxu0 0.0
      %760 = vmatpush1.msra.mxu0 0.0
      %761 = vmatprep.subr.mxu0 0.0
      %762 = vmatpush1.msra.mxu0 0.0
      %763 = vmatprep.subr.mxu0 0.0
      %764 = vmatpush1.msra.mxu0 0.0
      %765 = vmatprep.subr.mxu0 0.0
      %766 = vmatpush1.msra.mxu0 0.0
      %767 = vmatprep.subr.mxu0 0.0
      %768 = vmatpush1.msra.mxu0 0.0
      %769 = vmatprep.subr.mxu0 0.0
      %770 = vmatpush1.msra.mxu0 0.0
      %771 = vmatprep.mubr.f32.mxu0 0.0
      %772 = vmatmul.mubr.f32.gmra.mrb[0].mxu0 %v702
      %v773 = vpop.f32.mrb[0].mxu0
      %v774 = vadd.f32 0.0, %v773
      %v775 = vpop.f32.mrb[0].mxu0
      %v776 = vadd.f32 0.0, %v775
      %777 = vmatprep.mubr.f32.mxu0 0.0
      %778 = vmatmul.mubr.f32.gmra.mrb[0].mxu0 %v705
      %v779 = vpop.f32.mrb[0].mxu0
      %v780 = vadd.f32 0.0, %v779
      %v781 = vpop.f32.mrb[0].mxu0
      %v782 = vadd.f32 0.0, %v781
      %783 = vdwg.mxu0
      %784 = vmatprep.subr.mxu0 0.0
      %785 = vmatpush1.msra.mxu0 %v672
      %786 = vmatprep.subr.mxu0 0.0
      %787 = vmatpush1.msra.mxu0 %v678
      %788 = vmatprep.subr.mxu0 0.0
      %789 = vmatpush1.msra.mxu0 %v684
      %790 = vmatprep.subr.mxu0 0.0
      %791 = vmatpush1.msra.mxu0 0.0
      %792 = vmatprep.subr.mxu0 0.0
      %793 = vmatpush1.msra.mxu0 0.0
      %794 = vmatprep.subr.mxu0 0.0
      %795 = vmatpush1.msra.mxu0 0.0
      %796 = vmatprep.subr.mxu0 0.0
      %797 = vmatpush1.msra.mxu0 0.0
      %798 = vmatprep.subr.mxu0 0.0
      %799 = vmatpush1.msra.mxu0 0.0
      %800 = vmatprep.subr.mxu0 0.0
      %801 = vmatpush1.msra.mxu0 0.0
      %802 = vmatprep.subr.mxu0 0.0
      %803 = vmatpush1.msra.mxu0 0.0
      %804 = vmatprep.subr.mxu0 0.0
      %805 = vmatpush1.msra.mxu0 0.0
      %806 = vmatprep.subr.mxu0 0.0
      %807 = vmatpush1.msra.mxu0 0.0
      %808 = vmatprep.subr.mxu0 0.0
      %809 = vmatpush1.msra.mxu0 0.0
      %810 = vmatprep.subr.mxu0 0.0
      %811 = vmatpush1.msra.mxu0 0.0
      %812 = vmatprep.subr.mxu0 0.0
      %813 = vmatpush1.msra.mxu0 0.0
      %814 = vmatprep.subr.mxu0 0.0
      %815 = vmatpush1.msra.mxu0 0.0
      %816 = vmatprep.subr.mxu0 0.0
      %817 = vmatpush1.msra.mxu0 0.0
      %818 = vmatprep.subr.mxu0 0.0
      %819 = vmatpush1.msra.mxu0 0.0
      %820 = vmatprep.subr.mxu0 0.0
      %821 = vmatpush1.msra.mxu0 0.0
      %822 = vmatprep.subr.mxu0 0.0
      %823 = vmatpush1.msra.mxu0 0.0
      %824 = vmatprep.subr.mxu0 0.0
      %825 = vmatpush1.msra.mxu0 0.0
      %826 = vmatprep.subr.mxu0 0.0
      %827 = vmatpush1.msra.mxu0 0.0
      %828 = vmatprep.subr.mxu0 0.0
      %829 = vmatpush1.msra.mxu0 0.0
      %830 = vmatprep.subr.mxu0 0.0
      %831 = vmatpush1.msra.mxu0 0.0
      %832 = vmatprep.subr.mxu0 0.0
      %833 = vmatpush1.msra.mxu0 0.0
      %834 = vmatprep.subr.mxu0 0.0
      %835 = vmatpush1.msra.mxu0 0.0
      %836 = vmatprep.subr.mxu0 0.0
      %837 = vmatpush1.msra.mxu0 0.0
      %838 = vmatprep.subr.mxu0 0.0
      %839 = vmatpush1.msra.mxu0 0.0
      %840 = vmatprep.subr.mxu0 0.0
      %841 = vmatpush1.msra.mxu0 0.0
      %842 = vmatprep.subr.mxu0 0.0
      %843 = vmatpush1.msra.mxu0 0.0
      %844 = vmatprep.subr.mxu0 0.0
      %845 = vmatpush1.msra.mxu0 0.0
      %846 = vmatprep.subr.mxu0 0.0
      %847 = vmatpush1.msra.mxu0 0.0
      %848 = vmatprep.mubr.f32.mxu0 0.0
      %849 = vmatmul.mubr.f32.gmra.mrb[0].mxu0 %v702
      %v850 = vpop.f32.mrb[0].mxu0
      %v851 = vadd.f32 0.0, %v850
      %v852 = vpop.f32.mrb[0].mxu0
      %853 = vmatprep.mubr.f32.mxu0 0.0
      %854 = vmatmul.mubr.f32.gmra.mrb[0].mxu0 %v705
      %v855 = vpop.f32.mrb[0].mxu0
      %v856 = vadd.f32 0.0, %v855
      %v857 = vpop.f32.mrb[0].mxu0
      %858 = vdwg.mxu0
      %v860 = vsel %vm417, %v653, 0
      %v863 = vsel %vm417, %v654, 0
      %865 = vmatprep.subr.mxu0 %v645
      %866 = vmatpush1.msra.mxu0 %v644
      %867 = vmatprep.subr.mxu0 %v648
      %868 = vmatpush1.msra.mxu0 %v647
      %869 = vmatprep.subr.mxu0 %v651
      %870 = vmatpush1.msra.mxu0 %v650
      %871 = vmatprep.subr.mxu0 0.0
      %872 = vmatpush1.msra.mxu0 0.0
      %873 = vmatprep.subr.mxu0 0.0
      %874 = vmatpush1.msra.mxu0 0.0
      %875 = vmatprep.subr.mxu0 0.0
      %876 = vmatpush1.msra.mxu0 0.0
      %877 = vmatprep.subr.mxu0 0.0
      %878 = vmatpush1.msra.mxu0 0.0
      %879 = vmatprep.subr.mxu0 0.0
      %880 = vmatpush1.msra.mxu0 0.0
      %881 = vmatprep.subr.mxu0 0.0
      %882 = vmatpush1.msra.mxu0 0.0
      %883 = vmatprep.subr.mxu0 0.0
      %884 = vmatpush1.msra.mxu0 0.0
      %885 = vmatprep.subr.mxu0 0.0
      %886 = vmatpush1.msra.mxu0 0.0
      %887 = vmatprep.subr.mxu0 0.0
      %888 = vmatpush1.msra.mxu0 0.0
      %889 = vmatprep.subr.mxu0 0.0
      %890 = vmatpush1.msra.mxu0 0.0
      %891 = vmatprep.subr.mxu0 0.0
      %892 = vmatpush1.msra.mxu0 0.0
      %893 = vmatprep.subr.mxu0 0.0
      %894 = vmatpush1.msra.mxu0 0.0
      %895 = vmatprep.subr.mxu0 0.0
      %896 = vmatpush1.msra.mxu0 0.0
      %897 = vmatprep.subr.mxu0 0.0
      %898 = vmatpush1.msra.mxu0 0.0
      %899 = vmatprep.subr.mxu0 0.0
      %900 = vmatpush1.msra.mxu0 0.0
      %901 = vmatprep.subr.mxu0 0.0
      %902 = vmatpush1.msra.mxu0 0.0
      %903 = vmatprep.subr.mxu0 0.0
      %904 = vmatpush1.msra.mxu0 0.0
      %905 = vmatprep.subr.mxu0 0.0
      %906 = vmatpush1.msra.mxu0 0.0
      %907 = vmatprep.subr.mxu0 0.0
      %908 = vmatpush1.msra.mxu0 0.0
      %909 = vmatprep.subr.mxu0 0.0
      %910 = vmatpush1.msra.mxu0 0.0
      %911 = vmatprep.subr.mxu0 0.0
      %912 = vmatpush1.msra.mxu0 0.0
      %913 = vmatprep.subr.mxu0 0.0
      %914 = vmatpush1.msra.mxu0 0.0
      %915 = vmatprep.subr.mxu0 0.0
      %916 = vmatpush1.msra.mxu0 0.0
      %917 = vmatprep.subr.mxu0 0.0
      %918 = vmatpush1.msra.mxu0 0.0
      %919 = vmatprep.subr.mxu0 0.0
      %920 = vmatpush1.msra.mxu0 0.0
      %921 = vmatprep.subr.mxu0 0.0
      %922 = vmatpush1.msra.mxu0 0.0
      %923 = vmatprep.subr.mxu0 0.0
      %924 = vmatpush1.msra.mxu0 0.0
      %925 = vmatprep.subr.mxu0 0.0
      %926 = vmatpush1.msra.mxu0 0.0
      %927 = vmatprep.subr.mxu0 0.0
      %928 = vmatpush1.msra.mxu0 0.0
      %929 = vmatprep.mubr.f32.mxu0 0.0
      %930 = vmatmul.mubr.f32.gmra.mrb[0].mxu0 %v860
      %v931 = vpop.f32.mrb[0].mxu0
      %v932 = vadd.f32 %v774, %v931
      %v933 = vpop.f32.mrb[0].mxu0
      %v934 = vadd.f32 %v776, %v933
      %935 = vmatprep.mubr.f32.mxu0 0.0
      %936 = vmatmul.mubr.f32.gmra.mrb[0].mxu0 %v863
      %v937 = vpop.f32.mrb[0].mxu0
      %v938 = vadd.f32 %v780, %v937
      %v939 = vpop.f32.mrb[0].mxu0
      %v940 = vadd.f32 %v782, %v939
      %941 = vdwg.mxu0
      %942 = vmatprep.subr.mxu0 0.0
      %943 = vmatpush1.msra.mxu0 %v646
      %944 = vmatprep.subr.mxu0 0.0
      %945 = vmatpush1.msra.mxu0 %v649
      %946 = vmatprep.subr.mxu0 0.0
      %947 = vmatpush1.msra.mxu0 %v652
      %948 = vmatprep.subr.mxu0 0.0
      %949 = vmatpush1.msra.mxu0 0.0
      %950 = vmatprep.subr.mxu0 0.0
      %951 = vmatpush1.msra.mxu0 0.0
      %952 = vmatprep.subr.mxu0 0.0
      %953 = vmatpush1.msra.mxu0 0.0
      %954 = vmatprep.subr.mxu0 0.0
      %955 = vmatpush1.msra.mxu0 0.0
      %956 = vmatprep.subr.mxu0 0.0
      %957 = vmatpush1.msra.mxu0 0.0
      %958 = vmatprep.subr.mxu0 0.0
      %959 = vmatpush1.msra.mxu0 0.0
      %960 = vmatprep.subr.mxu0 0.0
      %961 = vmatpush1.msra.mxu0 0.0
      %962 = vmatprep.subr.mxu0 0.0
      %963 = vmatpush1.msra.mxu0 0.0
      %964 = vmatprep.subr.mxu0 0.0
      %965 = vmatpush1.msra.mxu0 0.0
      %966 = vmatprep.subr.mxu0 0.0
      %967 = vmatpush1.msra.mxu0 0.0
      %968 = vmatprep.subr.mxu0 0.0
      %969 = vmatpush1.msra.mxu0 0.0
      %970 = vmatprep.subr.mxu0 0.0
      %971 = vmatpush1.msra.mxu0 0.0
      %972 = vmatprep.subr.mxu0 0.0
      %973 = vmatpush1.msra.mxu0 0.0
      %974 = vmatprep.subr.mxu0 0.0
      %975 = vmatpush1.msra.mxu0 0.0
      %976 = vmatprep.subr.mxu0 0.0
      %977 = vmatpush1.msra.mxu0 0.0
      %978 = vmatprep.subr.mxu0 0.0
      %979 = vmatpush1.msra.mxu0 0.0
      %980 = vmatprep.subr.mxu0 0.0
      %981 = vmatpush1.msra.mxu0 0.0
      %982 = vmatprep.subr.mxu0 0.0
      %983 = vmatpush1.msra.mxu0 0.0
      %984 = vmatprep.subr.mxu0 0.0
      %985 = vmatpush1.msra.mxu0 0.0
      %986 = vmatprep.subr.mxu0 0.0
      %987 = vmatpush1.msra.mxu0 0.0
      %988 = vmatprep.subr.mxu0 0.0
      %989 = vmatpush1.msra.mxu0 0.0
      %990 = vmatprep.subr.mxu0 0.0
      %991 = vmatpush1.msra.mxu0 0.0
      %992 = vmatprep.subr.mxu0 0.0
      %993 = vmatpush1.msra.mxu0 0.0
      %994 = vmatprep.subr.mxu0 0.0
      %995 = vmatpush1.msra.mxu0 0.0
      %996 = vmatprep.subr.mxu0 0.0
      %997 = vmatpush1.msra.mxu0 0.0
      %998 = vmatprep.subr.mxu0 0.0
      %999 = vmatpush1.msra.mxu0 0.0
      %1000 = vmatprep.subr.mxu0 0.0
      %1001 = vmatpush1.msra.mxu0 0.0
      %1002 = vmatprep.subr.mxu0 0.0
      %1003 = vmatpush1.msra.mxu0 0.0
      %1004 = vmatprep.subr.mxu0 0.0
      %1005 = vmatpush1.msra.mxu0 0.0
      %1006 = vmatprep.mubr.f32.mxu0 0.0
      %1007 = vmatmul.mubr.f32.gmra.mrb[0].mxu0 %v860
      %v1008 = vpop.f32.mrb[0].mxu0
      %v1009 = vadd.f32 %v851, %v1008
      %v1010 = vpop.f32.mrb[0].mxu0
      %1011 = vmatprep.mubr.f32.mxu0 0.0
      %1012 = vmatmul.mubr.f32.gmra.mrb[0].mxu0 %v863
      %v1013 = vpop.f32.mrb[0].mxu0
      %v1014 = vadd.f32 %v856, %v1013
      %v1015 = vpop.f32.mrb[0].mxu0
      %1016 = vdwg.mxu0
      %s1017 = scalar_lea.vmem %s1, 32
      %v1018 = vld [vmem:[%s1017] sm:$0xff]
      %v1019 = vld [vmem:[%s1017 + $0x8] sm:$0xf]
      %1020 = vrot.lane.b32.xlu0 %v644, 126
      %v1021 = vpop.permute.xlu0 %1020
      %1022 = vrot.lane.b32.xlu0 %v645, 126
      %v1023 = vpop.permute.xlu0 %1022
      %1024 = vrot.lane.b32.xlu0 %v646, 126
      %v1025 = vpop.permute.xlu0 %1024
      %1026 = vrot.lane.b32.xlu0 %v647, 126
      %v1027 = vpop.permute.xlu0 %1026
      %1028 = vrot.lane.b32.xlu0 %v648, 126
      %v1029 = vpop.permute.xlu0 %1028
      %1030 = vrot.lane.b32.xlu0 %v649, 126
      %v1031 = vpop.permute.xlu0 %1030
      %1032 = vrot.lane.b32.xlu0 %v650, 126
      %v1033 = vpop.permute.xlu0 %1032
      %1034 = vrot.lane.b32.xlu0 %v651, 126
      %v1035 = vpop.permute.xlu0 %1034
      %1036 = vrot.lane.b32.xlu0 %v652, 126
      %v1037 = vpop.permute.xlu0 %1036
      %vm1038 = vcmask 1031168
      %v1039 = vsel %vm1038, %v1021, %v1023
      %v1040 = vsel %vm1038, %v1023, %v1025
      %v1041 = vsel %vm1038, %v1027, %v1029
      %v1042 = vsel %vm1038, %v1029, %v1031
      %v1043 = vsel %vm1038, %v1033, %v1035
      %v1044 = vsel %vm1038, %v1035, %v1037
      %v1055 = vsel %vm417, %v1018, 0
      %v1058 = vsel %vm417, %v1019, 0
      %1060 = vmatprep.subr.mxu0 %v1040
      %1061 = vmatpush1.msra.mxu0 %v1039
      %1062 = vmatprep.subr.mxu0 %v1042
      %1063 = vmatpush1.msra.mxu0 %v1041
      %1064 = vmatprep.subr.mxu0 %v1044
      %1065 = vmatpush1.msra.mxu0 %v1043
      %1066 = vmatprep.subr.mxu0 0.0
      %1067 = vmatpush1.msra.mxu0 0.0
      %1068 = vmatprep.subr.mxu0 0.0
      %1069 = vmatpush1.msra.mxu0 0.0
      %1070 = vmatprep.subr.mxu0 0.0
      %1071 = vmatpush1.msra.mxu0 0.0
      %1072 = vmatprep.subr.mxu0 0.0
      %1073 = vmatpush1.msra.mxu0 0.0
      %1074 = vmatprep.subr.mxu0 0.0
      %1075 = vmatpush1.msra.mxu0 0.0
      %1076 = vmatprep.subr.mxu0 0.0
      %1077 = vmatpush1.msra.mxu0 0.0
      %1078 = vmatprep.subr.mxu0 0.0
      %1079 = vmatpush1.msra.mxu0 0.0
      %1080 = vmatprep.subr.mxu0 0.0
      %1081 = vmatpush1.msra.mxu0 0.0
      %1082 = vmatprep.subr.mxu0 0.0
      %1083 = vmatpush1.msra.mxu0 0.0
      %1084 = vmatprep.subr.mxu0 0.0
      %1085 = vmatpush1.msra.mxu0 0.0
      %1086 = vmatprep.subr.mxu0 0.0
      %1087 = vmatpush1.msra.mxu0 0.0
      %1088 = vmatprep.subr.mxu0 0.0
      %1089 = vmatpush1.msra.mxu0 0.0
      %1090 = vmatprep.subr.mxu0 0.0
      %1091 = vmatpush1.msra.mxu0 0.0
      %1092 = vmatprep.subr.mxu0 0.0
      %1093 = vmatpush1.msra.mxu0 0.0
      %1094 = vmatprep.subr.mxu0 0.0
      %1095 = vmatpush1.msra.mxu0 0.0
      %1096 = vmatprep.subr.mxu0 0.0
      %1097 = vmatpush1.msra.mxu0 0.0
      %1098 = vmatprep.subr.mxu0 0.0
      %1099 = vmatpush1.msra.mxu0 0.0
      %1100 = vmatprep.subr.mxu0 0.0
      %1101 = vmatpush1.msra.mxu0 0.0
      %1102 = vmatprep.subr.mxu0 0.0
      %1103 = vmatpush1.msra.mxu0 0.0
      %1104 = vmatprep.subr.mxu0 0.0
      %1105 = vmatpush1.msra.mxu0 0.0
      %1106 = vmatprep.subr.mxu0 0.0
      %1107 = vmatpush1.msra.mxu0 0.0
      %1108 = vmatprep.subr.mxu0 0.0
      %1109 = vmatpush1.msra.mxu0 0.0
      %1110 = vmatprep.subr.mxu0 0.0
      %1111 = vmatpush1.msra.mxu0 0.0
      %1112 = vmatprep.subr.mxu0 0.0
      %1113 = vmatpush1.msra.mxu0 0.0
      %1114 = vmatprep.subr.mxu0 0.0
      %1115 = vmatpush1.msra.mxu0 0.0
      %1116 = vmatprep.subr.mxu0 0.0
      %1117 = vmatpush1.msra.mxu0 0.0
      %1118 = vmatprep.subr.mxu0 0.0
      %1119 = vmatpush1.msra.mxu0 0.0
      %1120 = vmatprep.subr.mxu0 0.0
      %1121 = vmatpush1.msra.mxu0 0.0
      %1122 = vmatprep.subr.mxu0 0.0
      %1123 = vmatpush1.msra.mxu0 0.0
      %1124 = vmatprep.mubr.f32.mxu0 0.0
      %1125 = vmatmul.mubr.f32.gmra.mrb[0].mxu0 %v1055
      %v1126 = vpop.f32.mrb[0].mxu0
      %v1127 = vadd.f32 0.0, %v1126
      %v1128 = vpop.f32.mrb[0].mxu0
      %v1129 = vadd.f32 0.0, %v1128
      %1130 = vmatprep.mubr.f32.mxu0 0.0
      %1131 = vmatmul.mubr.f32.gmra.mrb[0].mxu0 %v1058
      %v1132 = vpop.f32.mrb[0].mxu0
      %v1133 = vadd.f32 0.0, %v1132
      %v1134 = vpop.f32.mrb[0].mxu0
      %v1135 = vadd.f32 0.0, %v1134
      %1136 = vdwg.mxu0
      %1137 = vmatprep.subr.mxu0 0.0
      %1138 = vmatpush1.msra.mxu0 %v1025
      %1139 = vmatprep.subr.mxu0 0.0
      %1140 = vmatpush1.msra.mxu0 %v1031
      %1141 = vmatprep.subr.mxu0 0.0
      %1142 = vmatpush1.msra.mxu0 %v1037
      %1143 = vmatprep.subr.mxu0 0.0
      %1144 = vmatpush1.msra.mxu0 0.0
      %1145 = vmatprep.subr.mxu0 0.0
      %1146 = vmatpush1.msra.mxu0 0.0
      %1147 = vmatprep.subr.mxu0 0.0
      %1148 = vmatpush1.msra.mxu0 0.0
      %1149 = vmatprep.subr.mxu0 0.0
      %1150 = vmatpush1.msra.mxu0 0.0
      %1151 = vmatprep.subr.mxu0 0.0
      %1152 = vmatpush1.msra.mxu0 0.0
      %1153 = vmatprep.subr.mxu0 0.0
      %1154 = vmatpush1.msra.mxu0 0.0
      %1155 = vmatprep.subr.mxu0 0.0
      %1156 = vmatpush1.msra.mxu0 0.0
      %1157 = vmatprep.subr.mxu0 0.0
      %1158 = vmatpush1.msra.mxu0 0.0
      %1159 = vmatprep.subr.mxu0 0.0
      %1160 = vmatpush1.msra.mxu0 0.0
      %1161 = vmatprep.subr.mxu0 0.0
      %1162 = vmatpush1.msra.mxu0 0.0
      %1163 = vmatprep.subr.mxu0 0.0
      %1164 = vmatpush1.msra.mxu0 0.0
      %1165 = vmatprep.subr.mxu0 0.0
      %1166 = vmatpush1.msra.mxu0 0.0
      %1167 = vmatprep.subr.mxu0 0.0
      %1168 = vmatpush1.msra.mxu0 0.0
      %1169 = vmatprep.subr.mxu0 0.0
      %1170 = vmatpush1.msra.mxu0 0.0
      %1171 = vmatprep.subr.mxu0 0.0
      %1172 = vmatpush1.msra.mxu0 0.0
      %1173 = vmatprep.subr.mxu0 0.0
      %1174 = vmatpush1.msra.mxu0 0.0
      %1175 = vmatprep.subr.mxu0 0.0
      %1176 = vmatpush1.msra.mxu0 0.0
      %1177 = vmatprep.subr.mxu0 0.0
      %1178 = vmatpush1.msra.mxu0 0.0
      %1179 = vmatprep.subr.mxu0 0.0
      %1180 = vmatpush1.msra.mxu0 0.0
      %1181 = vmatprep.subr.mxu0 0.0
      %1182 = vmatpush1.msra.mxu0 0.0
      %1183 = vmatprep.subr.mxu0 0.0
      %1184 = vmatpush1.msra.mxu0 0.0
      %1185 = vmatprep.subr.mxu0 0.0
      %1186 = vmatpush1.msra.mxu0 0.0
      %1187 = vmatprep.subr.mxu0 0.0
      %1188 = vmatpush1.msra.mxu0 0.0
      %1189 = vmatprep.subr.mxu0 0.0
      %1190 = vmatpush1.msra.mxu0 0.0
      %1191 = vmatprep.subr.mxu0 0.0
      %1192 = vmatpush1.msra.mxu0 0.0
      %1193 = vmatprep.subr.mxu0 0.0
      %1194 = vmatpush1.msra.mxu0 0.0
      %1195 = vmatprep.subr.mxu0 0.0
      %1196 = vmatpush1.msra.mxu0 0.0
      %1197 = vmatprep.subr.mxu0 0.0
      %1198 = vmatpush1.msra.mxu0 0.0
      %1199 = vmatprep.subr.mxu0 0.0
      %1200 = vmatpush1.msra.mxu0 0.0
      %1201 = vmatprep.mubr.f32.mxu0 0.0
      %1202 = vmatmul.mubr.f32.gmra.mrb[0].mxu0 %v1055
      %v1203 = vpop.f32.mrb[0].mxu0
      %v1204 = vadd.f32 0.0, %v1203
      %v1205 = vpop.f32.mrb[0].mxu0
      %1206 = vmatprep.mubr.f32.mxu0 0.0
      %1207 = vmatmul.mubr.f32.gmra.mrb[0].mxu0 %v1058
      %v1208 = vpop.f32.mrb[0].mxu0
      %v1209 = vadd.f32 0.0, %v1208
      %v1210 = vpop.f32.mrb[0].mxu0
      %1211 = vdwg.mxu0
      %v1212 = vadd.f32 %v932, %v1127
      %v1213 = vadd.f32 %v934, %v1129
      %v1214 = vadd.f32 %v1009, %v1204
      %v1215 = vadd.f32 %v938, %v1133
      %v1216 = vadd.f32 %v940, %v1135
      %v1217 = vadd.f32 %v1014, %v1209
      %s1218 = scalar_lea.vmem %s1, 48
      %v1219 = vld [vmem:[%s1218] sm:$0xff]
      %v1220 = vld [vmem:[%s1218 + $0x8] sm:$0xf]
      %1221 = vrot.lane.b32.xlu0 %v644, 110
      %v1222 = vpop.permute.xlu0 %1221
      %1223 = vrot.lane.b32.xlu0 %v645, 110
      %v1224 = vpop.permute.xlu0 %1223
      %1225 = vrot.lane.b32.xlu0 %v646, 110
      %v1226 = vpop.permute.xlu0 %1225
      %1227 = vrot.lane.b32.xlu0 %v647, 110
      %v1228 = vpop.permute.xlu0 %1227
      %1229 = vrot.lane.b32.xlu0 %v648, 110
      %v1230 = vpop.permute.xlu0 %1229
      %1231 = vrot.lane.b32.xlu0 %v649, 110
      %v1232 = vpop.permute.xlu0 %1231
      %1233 = vrot.lane.b32.xlu0 %v650, 110
      %v1234 = vpop.permute.xlu0 %1233
      %1235 = vrot.lane.b32.xlu0 %v651, 110
      %v1236 = vpop.permute.xlu0 %1235
      %1237 = vrot.lane.b32.xlu0 %v652, 110
      %v1238 = vpop.permute.xlu0 %1237
      %vm1239 = vcmask 900096
      %v1240 = vsel %vm1239, %v1222, %v1224
      %v1241 = vsel %vm1239, %v1224, %v1226
      %v1242 = vsel %vm1239, %v1228, %v1230
      %v1243 = vsel %vm1239, %v1230, %v1232
      %v1244 = vsel %vm1239, %v1234, %v1236
      %v1245 = vsel %vm1239, %v1236, %v1238
      %v1256 = vsel %vm417, %v1219, 0
      %v1259 = vsel %vm417, %v1220, 0
      %1261 = vmatprep.subr.mxu0 %v1241
      %1262 = vmatpush1.msra.mxu0 %v1240
      %1263 = vmatprep.subr.mxu0 %v1243
      %1264 = vmatpush1.msra.mxu0 %v1242
      %1265 = vmatprep.subr.mxu0 %v1245
      %1266 = vmatpush1.msra.mxu0 %v1244
      %1267 = vmatprep.subr.mxu0 0.0
      %1268 = vmatpush1.msra.mxu0 0.0
      %1269 = vmatprep.subr.mxu0 0.0
      %1270 = vmatpush1.msra.mxu0 0.0
      %1271 = vmatprep.subr.mxu0 0.0
      %1272 = vmatpush1.msra.mxu0 0.0
      %1273 = vmatprep.subr.mxu0 0.0
      %1274 = vmatpush1.msra.mxu0 0.0
      %1275 = vmatprep.subr.mxu0 0.0
      %1276 = vmatpush1.msra.mxu0 0.0
      %1277 = vmatprep.subr.mxu0 0.0
      %1278 = vmatpush1.msra.mxu0 0.0
      %1279 = vmatprep.subr.mxu0 0.0
      %1280 = vmatpush1.msra.mxu0 0.0
      %1281 = vmatprep.subr.mxu0 0.0
      %1282 = vmatpush1.msra.mxu0 0.0
      %1283 = vmatprep.subr.mxu0 0.0
      %1284 = vmatpush1.msra.mxu0 0.0
      %1285 = vmatprep.subr.mxu0 0.0
      %1286 = vmatpush1.msra.mxu0 0.0
      %1287 = vmatprep.subr.mxu0 0.0
      %1288 = vmatpush1.msra.mxu0 0.0
      %1289 = vmatprep.subr.mxu0 0.0
      %1290 = vmatpush1.msra.mxu0 0.0
      %1291 = vmatprep.subr.mxu0 0.0
      %1292 = vmatpush1.msra.mxu0 0.0
      %1293 = vmatprep.subr.mxu0 0.0
      %1294 = vmatpush1.msra.mxu0 0.0
      %1295 = vmatprep.subr.mxu0 0.0
      %1296 = vmatpush1.msra.mxu0 0.0
      %1297 = vmatprep.subr.mxu0 0.0
      %1298 = vmatpush1.msra.mxu0 0.0
      %1299 = vmatprep.subr.mxu0 0.0
      %1300 = vmatpush1.msra.mxu0 0.0
      %1301 = vmatprep.subr.mxu0 0.0
      %1302 = vmatpush1.msra.mxu0 0.0
      %1303 = vmatprep.subr.mxu0 0.0
      %1304 = vmatpush1.msra.mxu0 0.0
      %1305 = vmatprep.subr.mxu0 0.0
      %1306 = vmatpush1.msra.mxu0 0.0
      %1307 = vmatprep.subr.mxu0 0.0
      %1308 = vmatpush1.msra.mxu0 0.0
      %1309 = vmatprep.subr.mxu0 0.0
      %1310 = vmatpush1.msra.mxu0 0.0
      %1311 = vmatprep.subr.mxu0 0.0
      %1312 = vmatpush1.msra.mxu0 0.0
      %1313 = vmatprep.subr.mxu0 0.0
      %1314 = vmatpush1.msra.mxu0 0.0
      %1315 = vmatprep.subr.mxu0 0.0
      %1316 = vmatpush1.msra.mxu0 0.0
      %1317 = vmatprep.subr.mxu0 0.0
      %1318 = vmatpush1.msra.mxu0 0.0
      %1319 = vmatprep.subr.mxu0 0.0
      %1320 = vmatpush1.msra.mxu0 0.0
      %1321 = vmatprep.subr.mxu0 0.0
      %1322 = vmatpush1.msra.mxu0 0.0
      %1323 = vmatprep.subr.mxu0 0.0
      %1324 = vmatpush1.msra.mxu0 0.0
      %1325 = vmatprep.mubr.f32.mxu0 0.0
      %1326 = vmatmul.mubr.f32.gmra.mrb[0].mxu0 %v1256
      %v1327 = vpop.f32.mrb[0].mxu0
      %v1328 = vadd.f32 0.0, %v1327
      %v1329 = vpop.f32.mrb[0].mxu0
      %v1330 = vadd.f32 0.0, %v1329
      %1331 = vmatprep.mubr.f32.mxu0 0.0
      %1332 = vmatmul.mubr.f32.gmra.mrb[0].mxu0 %v1259
      %v1333 = vpop.f32.mrb[0].mxu0
      %v1334 = vadd.f32 0.0, %v1333
      %v1335 = vpop.f32.mrb[0].mxu0
      %v1336 = vadd.f32 0.0, %v1335
      %1337 = vdwg.mxu0
      %1338 = vmatprep.subr.mxu0 0.0
      %1339 = vmatpush1.msra.mxu0 %v1226
      %1340 = vmatprep.subr.mxu0 0.0
      %1341 = vmatpush1.msra.mxu0 %v1232
      %1342 = vmatprep.subr.mxu0 0.0
      %1343 = vmatpush1.msra.mxu0 %v1238
      %1344 = vmatprep.subr.mxu0 0.0
      %1345 = vmatpush1.msra.mxu0 0.0
      %1346 = vmatprep.subr.mxu0 0.0
      %1347 = vmatpush1.msra.mxu0 0.0
      %1348 = vmatprep.subr.mxu0 0.0
      %1349 = vmatpush1.msra.mxu0 0.0
      %1350 = vmatprep.subr.mxu0 0.0
      %1351 = vmatpush1.msra.mxu0 0.0
      %1352 = vmatprep.subr.mxu0 0.0
      %1353 = vmatpush1.msra.mxu0 0.0
      %1354 = vmatprep.subr.mxu0 0.0
      %1355 = vmatpush1.msra.mxu0 0.0
      %1356 = vmatprep.subr.mxu0 0.0
      %1357 = vmatpush1.msra.mxu0 0.0
      %1358 = vmatprep.subr.mxu0 0.0
      %1359 = vmatpush1.msra.mxu0 0.0
      %1360 = vmatprep.subr.mxu0 0.0
      %1361 = vmatpush1.msra.mxu0 0.0
      %1362 = vmatprep.subr.mxu0 0.0
      %1363 = vmatpush1.msra.mxu0 0.0
      %1364 = vmatprep.subr.mxu0 0.0
      %1365 = vmatpush1.msra.mxu0 0.0
      %1366 = vmatprep.subr.mxu0 0.0
      %1367 = vmatpush1.msra.mxu0 0.0
      %1368 = vmatprep.subr.mxu0 0.0
      %1369 = vmatpush1.msra.mxu0 0.0
      %1370 = vmatprep.subr.mxu0 0.0
      %1371 = vmatpush1.msra.mxu0 0.0
      %1372 = vmatprep.subr.mxu0 0.0
      %1373 = vmatpush1.msra.mxu0 0.0
      %1374 = vmatprep.subr.mxu0 0.0
      %1375 = vmatpush1.msra.mxu0 0.0
      %1376 = vmatprep.subr.mxu0 0.0
      %1377 = vmatpush1.msra.mxu0 0.0
      %1378 = vmatprep.subr.mxu0 0.0
      %1379 = vmatpush1.msra.mxu0 0.0
      %1380 = vmatprep.subr.mxu0 0.0
      %1381 = vmatpush1.msra.mxu0 0.0
      %1382 = vmatprep.subr.mxu0 0.0
      %1383 = vmatpush1.msra.mxu0 0.0
      %1384 = vmatprep.subr.mxu0 0.0
      %1385 = vmatpush1.msra.mxu0 0.0
      %1386 = vmatprep.subr.mxu0 0.0
      %1387 = vmatpush1.msra.mxu0 0.0
      %1388 = vmatprep.subr.mxu0 0.0
      %1389 = vmatpush1.msra.mxu0 0.0
      %1390 = vmatprep.subr.mxu0 0.0
      %1391 = vmatpush1.msra.mxu0 0.0
      %1392 = vmatprep.subr.mxu0 0.0
      %1393 = vmatpush1.msra.mxu0 0.0
      %1394 = vmatprep.subr.mxu0 0.0
      %1395 = vmatpush1.msra.mxu0 0.0
      %1396 = vmatprep.subr.mxu0 0.0
      %1397 = vmatpush1.msra.mxu0 0.0
      %1398 = vmatprep.subr.mxu0 0.0
      %1399 = vmatpush1.msra.mxu0 0.0
      %1400 = vmatprep.subr.mxu0 0.0
      %1401 = vmatpush1.msra.mxu0 0.0
      %1402 = vmatprep.mubr.f32.mxu0 0.0
      %1403 = vmatmul.mubr.f32.gmra.mrb[0].mxu0 %v1256
      %v1404 = vpop.f32.mrb[0].mxu0
      %v1405 = vadd.f32 0.0, %v1404
      %v1406 = vpop.f32.mrb[0].mxu0
      %1407 = vmatprep.mubr.f32.mxu0 0.0
      %1408 = vmatmul.mubr.f32.gmra.mrb[0].mxu0 %v1259
      %v1409 = vpop.f32.mrb[0].mxu0
      %v1410 = vadd.f32 0.0, %v1409
      %v1411 = vpop.f32.mrb[0].mxu0
      %1412 = vdwg.mxu0
      %v1413 = vadd.f32 %v1212, %v1328
      %v1414 = vadd.f32 %v1213, %v1330
      %v1415 = vadd.f32 %v1214, %v1405
      %v1416 = vadd.f32 %v1215, %v1334
      %v1417 = vadd.f32 %v1216, %v1336
      %v1418 = vadd.f32 %v1217, %v1410
      %s1419 = scalar_lea.vmem %s1, 64
      %v1420 = vld [vmem:[%s1419] sm:$0xff]
      %v1421 = vld [vmem:[%s1419 + $0x8] sm:$0xf]
      %1422 = vrot.lane.b32.xlu0 %v644, 109
      %v1423 = vpop.permute.xlu0 %1422
      %1424 = vrot.lane.b32.xlu0 %v645, 109
      %v1425 = vpop.permute.xlu0 %1424
      %1426 = vrot.lane.b32.xlu0 %v646, 109
      %v1427 = vpop.permute.xlu0 %1426
      %1428 = vrot.lane.b32.xlu0 %v647, 109
      %v1429 = vpop.permute.xlu0 %1428
      %1430 = vrot.lane.b32.xlu0 %v648, 109
      %v1431 = vpop.permute.xlu0 %1430
      %1432 = vrot.lane.b32.xlu0 %v649, 109
      %v1433 = vpop.permute.xlu0 %1432
      %1434 = vrot.lane.b32.xlu0 %v650, 109
      %v1435 = vpop.permute.xlu0 %1434
      %1436 = vrot.lane.b32.xlu0 %v651, 109
      %v1437 = vpop.permute.xlu0 %1436
      %1438 = vrot.lane.b32.xlu0 %v652, 109
      %v1439 = vpop.permute.xlu0 %1438
      %vm1440 = vcmask 891904
      %v1441 = vsel %vm1440, %v1423, %v1425
      %v1442 = vsel %vm1440, %v1425, %v1427
      %v1443 = vsel %vm1440, %v1429, %v1431
      %v1444 = vsel %vm1440, %v1431, %v1433
      %v1445 = vsel %vm1440, %v1435, %v1437
      %v1446 = vsel %vm1440, %v1437, %v1439
      %v1457 = vsel %vm417, %v1420, 0
      %v1460 = vsel %vm417, %v1421, 0
      %1462 = vmatprep.subr.mxu0 %v1442
      %1463 = vmatpush1.msra.mxu0 %v1441
      %1464 = vmatprep.subr.mxu0 %v1444
      %1465 = vmatpush1.msra.mxu0 %v1443
      %1466 = vmatprep.subr.mxu0 %v1446
      %1467 = vmatpush1.msra.mxu0 %v1445
      %1468 = vmatprep.subr.mxu0 0.0
      %1469 = vmatpush1.msra.mxu0 0.0
      %1470 = vmatprep.subr.mxu0 0.0
      %1471 = vmatpush1.msra.mxu0 0.0
      %1472 = vmatprep.subr.mxu0 0.0
      %1473 = vmatpush1.msra.mxu0 0.0
      %1474 = vmatprep.subr.mxu0 0.0
      %1475 = vmatpush1.msra.mxu0 0.0
      %1476 = vmatprep.subr.mxu0 0.0
      %1477 = vmatpush1.msra.mxu0 0.0
      %1478 = vmatprep.subr.mxu0 0.0
      %1479 = vmatpush1.msra.mxu0 0.0
      %1480 = vmatprep.subr.mxu0 0.0
      %1481 = vmatpush1.msra.mxu0 0.0
      %1482 = vmatprep.subr.mxu0 0.0
      %1483 = vmatpush1.msra.mxu0 0.0
      %1484 = vmatprep.subr.mxu0 0.0
      %1485 = vmatpush1.msra.mxu0 0.0
      %1486 = vmatprep.subr.mxu0 0.0
      %1487 = vmatpush1.msra.mxu0 0.0
      %1488 = vmatprep.subr.mxu0 0.0
      %1489 = vmatpush1.msra.mxu0 0.0
      %1490 = vmatprep.subr.mxu0 0.0
      %1491 = vmatpush1.msra.mxu0 0.0
      %1492 = vmatprep.subr.mxu0 0.0
      %1493 = vmatpush1.msra.mxu0 0.0
      %1494 = vmatprep.subr.mxu0 0.0
      %1495 = vmatpush1.msra.mxu0 0.0
      %1496 = vmatprep.subr.mxu0 0.0
      %1497 = vmatpush1.msra.mxu0 0.0
      %1498 = vmatprep.subr.mxu0 0.0
      %1499 = vmatpush1.msra.mxu0 0.0
      %1500 = vmatprep.subr.mxu0 0.0
      %1501 = vmatpush1.msra.mxu0 0.0
      %1502 = vmatprep.subr.mxu0 0.0
      %1503 = vmatpush1.msra.mxu0 0.0
      %1504 = vmatprep.subr.mxu0 0.0
      %1505 = vmatpush1.msra.mxu0 0.0
      %1506 = vmatprep.subr.mxu0 0.0
      %1507 = vmatpush1.msra.mxu0 0.0
      %1508 = vmatprep.subr.mxu0 0.0
      %1509 = vmatpush1.msra.mxu0 0.0
      %1510 = vmatprep.subr.mxu0 0.0
      %1511 = vmatpush1.msra.mxu0 0.0
      %1512 = vmatprep.subr.mxu0 0.0
      %1513 = vmatpush1.msra.mxu0 0.0
      %1514 = vmatprep.subr.mxu0 0.0
      %1515 = vmatpush1.msra.mxu0 0.0
      %1516 = vmatprep.subr.mxu0 0.0
      %1517 = vmatpush1.msra.mxu0 0.0
      %1518 = vmatprep.subr.mxu0 0.0
      %1519 = vmatpush1.msra.mxu0 0.0
      %1520 = vmatprep.subr.mxu0 0.0
      %1521 = vmatpush1.msra.mxu0 0.0
      %1522 = vmatprep.subr.mxu0 0.0
      %1523 = vmatpush1.msra.mxu0 0.0
      %1524 = vmatprep.subr.mxu0 0.0
      %1525 = vmatpush1.msra.mxu0 0.0
      %1526 = vmatprep.mubr.f32.mxu0 0.0
      %1527 = vmatmul.mubr.f32.gmra.mrb[0].mxu0 %v1457
      %v1528 = vpop.f32.mrb[0].mxu0
      %v1529 = vadd.f32 0.0, %v1528
      %v1530 = vpop.f32.mrb[0].mxu0
      %v1531 = vadd.f32 0.0, %v1530
      %1532 = vmatprep.mubr.f32.mxu0 0.0
      %1533 = vmatmul.mubr.f32.gmra.mrb[0].mxu0 %v1460
      %v1534 = vpop.f32.mrb[0].mxu0
      %v1535 = vadd.f32 0.0, %v1534
      %v1536 = vpop.f32.mrb[0].mxu0
      %v1537 = vadd.f32 0.0, %v1536
      %1538 = vdwg.mxu0
      %1539 = vmatprep.subr.mxu0 0.0
      %1540 = vmatpush1.msra.mxu0 %v1427
      %1541 = vmatprep.subr.mxu0 0.0
      %1542 = vmatpush1.msra.mxu0 %v1433
      %1543 = vmatprep.subr.mxu0 0.0
      %1544 = vmatpush1.msra.mxu0 %v1439
      %1545 = vmatprep.subr.mxu0 0.0
      %1546 = vmatpush1.msra.mxu0 0.0
      %1547 = vmatprep.subr.mxu0 0.0
      %1548 = vmatpush1.msra.mxu0 0.0
      %1549 = vmatprep.subr.mxu0 0.0
      %1550 = vmatpush1.msra.mxu0 0.0
      %1551 = vmatprep.subr.mxu0 0.0
      %1552 = vmatpush1.msra.mxu0 0.0
      %1553 = vmatprep.subr.mxu0 0.0
      %1554 = vmatpush1.msra.mxu0 0.0
      %1555 = vmatprep.subr.mxu0 0.0
      %1556 = vmatpush1.msra.mxu0 0.0
      %1557 = vmatprep.subr.mxu0 0.0
      %1558 = vmatpush1.msra.mxu0 0.0
      %1559 = vmatprep.subr.mxu0 0.0
      %1560 = vmatpush1.msra.mxu0 0.0
      %1561 = vmatprep.subr.mxu0 0.0
      %1562 = vmatpush1.msra.mxu0 0.0
      %1563 = vmatprep.subr.mxu0 0.0
      %1564 = vmatpush1.msra.mxu0 0.0
      %1565 = vmatprep.subr.mxu0 0.0
      %1566 = vmatpush1.msra.mxu0 0.0
      %1567 = vmatprep.subr.mxu0 0.0
      %1568 = vmatpush1.msra.mxu0 0.0
      %1569 = vmatprep.subr.mxu0 0.0
      %1570 = vmatpush1.msra.mxu0 0.0
      %1571 = vmatprep.subr.mxu0 0.0
      %1572 = vmatpush1.msra.mxu0 0.0
      %1573 = vmatprep.subr.mxu0 0.0
      %1574 = vmatpush1.msra.mxu0 0.0
      %1575 = vmatprep.subr.mxu0 0.0
      %1576 = vmatpush1.msra.mxu0 0.0
      %1577 = vmatprep.subr.mxu0 0.0
      %1578 = vmatpush1.msra.mxu0 0.0
      %1579 = vmatprep.subr.mxu0 0.0
      %1580 = vmatpush1.msra.mxu0 0.0
      %1581 = vmatprep.subr.mxu0 0.0
      %1582 = vmatpush1.msra.mxu0 0.0
      %1583 = vmatprep.subr.mxu0 0.0
      %1584 = vmatpush1.msra.mxu0 0.0
      %1585 = vmatprep.subr.mxu0 0.0
      %1586 = vmatpush1.msra.mxu0 0.0
      %1587 = vmatprep.subr.mxu0 0.0
      %1588 = vmatpush1.msra.mxu0 0.0
      %1589 = vmatprep.subr.mxu0 0.0
      %1590 = vmatpush1.msra.mxu0 0.0
      %1591 = vmatprep.subr.mxu0 0.0
      %1592 = vmatpush1.msra.mxu0 0.0
      %1593 = vmatprep.subr.mxu0 0.0
      %1594 = vmatpush1.msra.mxu0 0.0
      %1595 = vmatprep.subr.mxu0 0.0
      %1596 = vmatpush1.msra.mxu0 0.0
      %1597 = vmatprep.subr.mxu0 0.0
      %1598 = vmatpush1.msra.mxu0 0.0
      %1599 = vmatprep.subr.mxu0 0.0
      %1600 = vmatpush1.msra.mxu0 0.0
      %1601 = vmatprep.subr.mxu0 0.0
      %1602 = vmatpush1.msra.mxu0 0.0
      %1603 = vmatprep.mubr.f32.mxu0 0.0
      %1604 = vmatmul.mubr.f32.gmra.mrb[0].mxu0 %v1457
      %v1605 = vpop.f32.mrb[0].mxu0
      %v1606 = vadd.f32 0.0, %v1605
      %v1607 = vpop.f32.mrb[0].mxu0
      %1608 = vmatprep.mubr.f32.mxu0 0.0
      %1609 = vmatmul.mubr.f32.gmra.mrb[0].mxu0 %v1460
      %v1610 = vpop.f32.mrb[0].mxu0
      %v1611 = vadd.f32 0.0, %v1610
      %v1612 = vpop.f32.mrb[0].mxu0
      %1613 = vdwg.mxu0
      %v1614 = vadd.f32 %v1413, %v1529
      %v1615 = vadd.f32 %v1414, %v1531
      %v1616 = vadd.f32 %v1415, %v1606
      %v1617 = vadd.f32 %v1416, %v1535
      %v1618 = vadd.f32 %v1417, %v1537
      %v1619 = vadd.f32 %v1418, %v1611
      %s1620 = scalar_lea.vmem %s1, 80
      %v1621 = vld [vmem:[%s1620] sm:$0xff]
      %v1622 = vld [vmem:[%s1620 + $0x8] sm:$0xf]
      %1623 = vrot.lane.b32.xlu0 %v644, 108
      %v1624 = vpop.permute.xlu0 %1623
      %1625 = vrot.lane.b32.xlu0 %v645, 108
      %v1626 = vpop.permute.xlu0 %1625
      %1627 = vrot.lane.b32.xlu0 %v646, 108
      %v1628 = vpop.permute.xlu0 %1627
      %1629 = vrot.lane.b32.xlu0 %v647, 108
      %v1630 = vpop.permute.xlu0 %1629
      %1631 = vrot.lane.b32.xlu0 %v648, 108
      %v1632 = vpop.permute.xlu0 %1631
      %1633 = vrot.lane.b32.xlu0 %v649, 108
      %v1634 = vpop.permute.xlu0 %1633
      %1635 = vrot.lane.b32.xlu0 %v650, 108
      %v1636 = vpop.permute.xlu0 %1635
      %1637 = vrot.lane.b32.xlu0 %v651, 108
      %v1638 = vpop.permute.xlu0 %1637
      %1639 = vrot.lane.b32.xlu0 %v652, 108
      %v1640 = vpop.permute.xlu0 %1639
      %vm1641 = vcmask 883712
      %v1642 = vsel %vm1641, %v1624, %v1626
      %v1643 = vsel %vm1641, %v1626, %v1628
      %v1644 = vsel %vm1641, %v1630, %v1632
      %v1645 = vsel %vm1641, %v1632, %v1634
      %v1646 = vsel %vm1641, %v1636, %v1638
      %v1647 = vsel %vm1641, %v1638, %v1640
      %v1658 = vsel %vm417, %v1621, 0
      %v1661 = vsel %vm417, %v1622, 0
      %1663 = vmatprep.subr.mxu0 %v1643
      %1664 = vmatpush1.msra.mxu0 %v1642
      %1665 = vmatprep.subr.mxu0 %v1645
      %1666 = vmatpush1.msra.mxu0 %v1644
      %1667 = vmatprep.subr.mxu0 %v1647
      %1668 = vmatpush1.msra.mxu0 %v1646
      %1669 = vmatprep.subr.mxu0 0.0
      %1670 = vmatpush1.msra.mxu0 0.0
      %1671 = vmatprep.subr.mxu0 0.0
      %1672 = vmatpush1.msra.mxu0 0.0
      %1673 = vmatprep.subr.mxu0 0.0
      %1674 = vmatpush1.msra.mxu0 0.0
      %1675 = vmatprep.subr.mxu0 0.0
      %1676 = vmatpush1.msra.mxu0 0.0
      %1677 = vmatprep.subr.mxu0 0.0
      %1678 = vmatpush1.msra.mxu0 0.0
      %1679 = vmatprep.subr.mxu0 0.0
      %1680 = vmatpush1.msra.mxu0 0.0
      %1681 = vmatprep.subr.mxu0 0.0
      %1682 = vmatpush1.msra.mxu0 0.0
      %1683 = vmatprep.subr.mxu0 0.0
      %1684 = vmatpush1.msra.mxu0 0.0
      %1685 = vmatprep.subr.mxu0 0.0
      %1686 = vmatpush1.msra.mxu0 0.0
      %1687 = vmatprep.subr.mxu0 0.0
      %1688 = vmatpush1.msra.mxu0 0.0
      %1689 = vmatprep.subr.mxu0 0.0
      %1690 = vmatpush1.msra.mxu0 0.0
      %1691 = vmatprep.subr.mxu0 0.0
      %1692 = vmatpush1.msra.mxu0 0.0
      %1693 = vmatprep.subr.mxu0 0.0
      %1694 = vmatpush1.msra.mxu0 0.0
      %1695 = vmatprep.subr.mxu0 0.0
      %1696 = vmatpush1.msra.mxu0 0.0
      %1697 = vmatprep.subr.mxu0 0.0
      %1698 = vmatpush1.msra.mxu0 0.0
      %1699 = vmatprep.subr.mxu0 0.0
      %1700 = vmatpush1.msra.mxu0 0.0
      %1701 = vmatprep.subr.mxu0 0.0
      %1702 = vmatpush1.msra.mxu0 0.0
      %1703 = vmatprep.subr.mxu0 0.0
      %1704 = vmatpush1.msra.mxu0 0.0
      %1705 = vmatprep.subr.mxu0 0.0
      %1706 = vmatpush1.msra.mxu0 0.0
      %1707 = vmatprep.subr.mxu0 0.0
      %1708 = vmatpush1.msra.mxu0 0.0
      %1709 = vmatprep.subr.mxu0 0.0
      %1710 = vmatpush1.msra.mxu0 0.0
      %1711 = vmatprep.subr.mxu0 0.0
      %1712 = vmatpush1.msra.mxu0 0.0
      %1713 = vmatprep.subr.mxu0 0.0
      %1714 = vmatpush1.msra.mxu0 0.0
      %1715 = vmatprep.subr.mxu0 0.0
      %1716 = vmatpush1.msra.mxu0 0.0
      %1717 = vmatprep.subr.mxu0 0.0
      %1718 = vmatpush1.msra.mxu0 0.0
      %1719 = vmatprep.subr.mxu0 0.0
      %1720 = vmatpush1.msra.mxu0 0.0
      %1721 = vmatprep.subr.mxu0 0.0
      %1722 = vmatpush1.msra.mxu0 0.0
      %1723 = vmatprep.subr.mxu0 0.0
      %1724 = vmatpush1.msra.mxu0 0.0
      %1725 = vmatprep.subr.mxu0 0.0
      %1726 = vmatpush1.msra.mxu0 0.0
      %1727 = vmatprep.mubr.f32.mxu0 0.0
      %1728 = vmatmul.mubr.f32.gmra.mrb[0].mxu0 %v1658
      %v1729 = vpop.f32.mrb[0].mxu0
      %v1730 = vadd.f32 0.0, %v1729
      %v1731 = vpop.f32.mrb[0].mxu0
      %v1732 = vadd.f32 0.0, %v1731
      %1733 = vmatprep.mubr.f32.mxu0 0.0
      %1734 = vmatmul.mubr.f32.gmra.mrb[0].mxu0 %v1661
      %v1735 = vpop.f32.mrb[0].mxu0
      %v1736 = vadd.f32 0.0, %v1735
      %v1737 = vpop.f32.mrb[0].mxu0
      %v1738 = vadd.f32 0.0, %v1737
      %1739 = vdwg.mxu0
      %1740 = vmatprep.subr.mxu0 0.0
      %1741 = vmatpush1.msra.mxu0 %v1628
      %1742 = vmatprep.subr.mxu0 0.0
      %1743 = vmatpush1.msra.mxu0 %v1634
      %1744 = vmatprep.subr.mxu0 0.0
      %1745 = vmatpush1.msra.mxu0 %v1640
      %1746 = vmatprep.subr.mxu0 0.0
      %1747 = vmatpush1.msra.mxu0 0.0
      %1748 = vmatprep.subr.mxu0 0.0
      %1749 = vmatpush1.msra.mxu0 0.0
      %1750 = vmatprep.subr.mxu0 0.0
      %1751 = vmatpush1.msra.mxu0 0.0
      %1752 = vmatprep.subr.mxu0 0.0
      %1753 = vmatpush1.msra.mxu0 0.0
      %1754 = vmatprep.subr.mxu0 0.0
      %1755 = vmatpush1.msra.mxu0 0.0
      %1756 = vmatprep.subr.mxu0 0.0
      %1757 = vmatpush1.msra.mxu0 0.0
      %1758 = vmatprep.subr.mxu0 0.0
      %1759 = vmatpush1.msra.mxu0 0.0
      %1760 = vmatprep.subr.mxu0 0.0
      %1761 = vmatpush1.msra.mxu0 0.0
      %1762 = vmatprep.subr.mxu0 0.0
      %1763 = vmatpush1.msra.mxu0 0.0
      %1764 = vmatprep.subr.mxu0 0.0
      %1765 = vmatpush1.msra.mxu0 0.0
      %1766 = vmatprep.subr.mxu0 0.0
      %1767 = vmatpush1.msra.mxu0 0.0
      %1768 = vmatprep.subr.mxu0 0.0
      %1769 = vmatpush1.msra.mxu0 0.0
      %1770 = vmatprep.subr.mxu0 0.0
      %1771 = vmatpush1.msra.mxu0 0.0
      %1772 = vmatprep.subr.mxu0 0.0
      %1773 = vmatpush1.msra.mxu0 0.0
      %1774 = vmatprep.subr.mxu0 0.0
      %1775 = vmatpush1.msra.mxu0 0.0
      %1776 = vmatprep.subr.mxu0 0.0
      %1777 = vmatpush1.msra.mxu0 0.0
      %1778 = vmatprep.subr.mxu0 0.0
      %1779 = vmatpush1.msra.mxu0 0.0
      %1780 = vmatprep.subr.mxu0 0.0
      %1781 = vmatpush1.msra.mxu0 0.0
      %1782 = vmatprep.subr.mxu0 0.0
      %1783 = vmatpush1.msra.mxu0 0.0
      %1784 = vmatprep.subr.mxu0 0.0
      %1785 = vmatpush1.msra.mxu0 0.0
      %1786 = vmatprep.subr.mxu0 0.0
      %1787 = vmatpush1.msra.mxu0 0.0
      %1788 = vmatprep.subr.mxu0 0.0
      %1789 = vmatpush1.msra.mxu0 0.0
      %1790 = vmatprep.subr.mxu0 0.0
      %1791 = vmatpush1.msra.mxu0 0.0
      %1792 = vmatprep.subr.mxu0 0.0
      %1793 = vmatpush1.msra.mxu0 0.0
      %1794 = vmatprep.subr.mxu0 0.0
      %1795 = vmatpush1.msra.mxu0 0.0
      %1796 = vmatprep.subr.mxu0 0.0
      %1797 = vmatpush1.msra.mxu0 0.0
      %1798 = vmatprep.subr.mxu0 0.0
      %1799 = vmatpush1.msra.mxu0 0.0
      %1800 = vmatprep.subr.mxu0 0.0
      %1801 = vmatpush1.msra.mxu0 0.0
      %1802 = vmatprep.subr.mxu0 0.0
      %1803 = vmatpush1.msra.mxu0 0.0
      %1804 = vmatprep.mubr.f32.mxu0 0.0
      %1805 = vmatmul.mubr.f32.gmra.mrb[0].mxu0 %v1658
      %v1806 = vpop.f32.mrb[0].mxu0
      %v1807 = vadd.f32 0.0, %v1806
      %v1808 = vpop.f32.mrb[0].mxu0
      %1809 = vmatprep.mubr.f32.mxu0 0.0
      %1810 = vmatmul.mubr.f32.gmra.mrb[0].mxu0 %v1661
      %v1811 = vpop.f32.mrb[0].mxu0
      %v1812 = vadd.f32 0.0, %v1811
      %v1813 = vpop.f32.mrb[0].mxu0
      %1814 = vdwg.mxu0
      %v1815 = vadd.f32 %v1614, %v1730
      %v1816 = vadd.f32 %v1615, %v1732
      %v1817 = vadd.f32 %v1616, %v1807
      %v1818 = vadd.f32 %v1617, %v1736
      %v1819 = vadd.f32 %v1618, %v1738
      %v1820 = vadd.f32 %v1619, %v1812
      %s1821 = scalar_lea.vmem %s1, 96
      %v1822 = vld [vmem:[%s1821] sm:$0xff]
      %v1823 = vld [vmem:[%s1821 + $0x8] sm:$0xf]
      %1824 = vrot.lane.b32.xlu0 %v644, 92
      %v1825 = vpop.permute.xlu0 %1824
      %1826 = vrot.lane.b32.xlu0 %v645, 92
      %v1827 = vpop.permute.xlu0 %1826
      %1828 = vrot.lane.b32.xlu0 %v646, 92
      %v1829 = vpop.permute.xlu0 %1828
      %1830 = vrot.lane.b32.xlu0 %v647, 92
      %v1831 = vpop.permute.xlu0 %1830
      %1832 = vrot.lane.b32.xlu0 %v648, 92
      %v1833 = vpop.permute.xlu0 %1832
      %1834 = vrot.lane.b32.xlu0 %v649, 92
      %v1835 = vpop.permute.xlu0 %1834
      %1836 = vrot.lane.b32.xlu0 %v650, 92
      %v1837 = vpop.permute.xlu0 %1836
      %1838 = vrot.lane.b32.xlu0 %v651, 92
      %v1839 = vpop.permute.xlu0 %1838
      %1840 = vrot.lane.b32.xlu0 %v652, 92
      %v1841 = vpop.permute.xlu0 %1840
      %vm1842 = vcmask 752640
      %v1843 = vsel %vm1842, %v1825, %v1827
      %v1844 = vsel %vm1842, %v1827, %v1829
      %v1845 = vsel %vm1842, %v1831, %v1833
      %v1846 = vsel %vm1842, %v1833, %v1835
      %v1847 = vsel %vm1842, %v1837, %v1839
      %v1848 = vsel %vm1842, %v1839, %v1841
      %v1859 = vsel %vm417, %v1822, 0
      %v1862 = vsel %vm417, %v1823, 0
      %1864 = vmatprep.subr.mxu0 %v1844
      %1865 = vmatpush1.msra.mxu0 %v1843
      %1866 = vmatprep.subr.mxu0 %v1846
      %1867 = vmatpush1.msra.mxu0 %v1845
      %1868 = vmatprep.subr.mxu0 %v1848
      %1869 = vmatpush1.msra.mxu0 %v1847
      %1870 = vmatprep.subr.mxu0 0.0
      %1871 = vmatpush1.msra.mxu0 0.0
      %1872 = vmatprep.subr.mxu0 0.0
      %1873 = vmatpush1.msra.mxu0 0.0
      %1874 = vmatprep.subr.mxu0 0.0
      %1875 = vmatpush1.msra.mxu0 0.0
      %1876 = vmatprep.subr.mxu0 0.0
      %1877 = vmatpush1.msra.mxu0 0.0
      %1878 = vmatprep.subr.mxu0 0.0
      %1879 = vmatpush1.msra.mxu0 0.0
      %1880 = vmatprep.subr.mxu0 0.0
      %1881 = vmatpush1.msra.mxu0 0.0
      %1882 = vmatprep.subr.mxu0 0.0
      %1883 = vmatpush1.msra.mxu0 0.0
      %1884 = vmatprep.subr.mxu0 0.0
      %1885 = vmatpush1.msra.mxu0 0.0
      %1886 = vmatprep.subr.mxu0 0.0
      %1887 = vmatpush1.msra.mxu0 0.0
      %1888 = vmatprep.subr.mxu0 0.0
      %1889 = vmatpush1.msra.mxu0 0.0
      %1890 = vmatprep.subr.mxu0 0.0
      %1891 = vmatpush1.msra.mxu0 0.0
      %1892 = vmatprep.subr.mxu0 0.0
      %1893 = vmatpush1.msra.mxu0 0.0
      %1894 = vmatprep.subr.mxu0 0.0
      %1895 = vmatpush1.msra.mxu0 0.0
      %1896 = vmatprep.subr.mxu0 0.0
      %1897 = vmatpush1.msra.mxu0 0.0
      %1898 = vmatprep.subr.mxu0 0.0
      %1899 = vmatpush1.msra.mxu0 0.0
      %1900 = vmatprep.subr.mxu0 0.0
      %1901 = vmatpush1.msra.mxu0 0.0
      %1902 = vmatprep.subr.mxu0 0.0
      %1903 = vmatpush1.msra.mxu0 0.0
      %1904 = vmatprep.subr.mxu0 0.0
      %1905 = vmatpush1.msra.mxu0 0.0
      %1906 = vmatprep.subr.mxu0 0.0
      %1907 = vmatpush1.msra.mxu0 0.0
      %1908 = vmatprep.subr.mxu0 0.0
      %1909 = vmatpush1.msra.mxu0 0.0
      %1910 = vmatprep.subr.mxu0 0.0
      %1911 = vmatpush1.msra.mxu0 0.0
      %1912 = vmatprep.subr.mxu0 0.0
      %1913 = vmatpush1.msra.mxu0 0.0
      %1914 = vmatprep.subr.mxu0 0.0
      %1915 = vmatpush1.msra.mxu0 0.0
      %1916 = vmatprep.subr.mxu0 0.0
      %1917 = vmatpush1.msra.mxu0 0.0
      %1918 = vmatprep.subr.mxu0 0.0
      %1919 = vmatpush1.msra.mxu0 0.0
      %1920 = vmatprep.subr.mxu0 0.0
      %1921 = vmatpush1.msra.mxu0 0.0
      %1922 = vmatprep.subr.mxu0 0.0
      %1923 = vmatpush1.msra.mxu0 0.0
      %1924 = vmatprep.subr.mxu0 0.0
      %1925 = vmatpush1.msra.mxu0 0.0
      %1926 = vmatprep.subr.mxu0 0.0
      %1927 = vmatpush1.msra.mxu0 0.0
      %1928 = vmatprep.mubr.f32.mxu0 0.0
      %1929 = vmatmul.mubr.f32.gmra.mrb[0].mxu0 %v1859
      %v1930 = vpop.f32.mrb[0].mxu0
      %v1931 = vadd.f32 0.0, %v1930
      %v1932 = vpop.f32.mrb[0].mxu0
      %v1933 = vadd.f32 0.0, %v1932
      %1934 = vmatprep.mubr.f32.mxu0 0.0
      %1935 = vmatmul.mubr.f32.gmra.mrb[0].mxu0 %v1862
      %v1936 = vpop.f32.mrb[0].mxu0
      %v1937 = vadd.f32 0.0, %v1936
      %v1938 = vpop.f32.mrb[0].mxu0
      %v1939 = vadd.f32 0.0, %v1938
      %1940 = vdwg.mxu0
      %1941 = vmatprep.subr.mxu0 0.0
      %1942 = vmatpush1.msra.mxu0 %v1829
      %1943 = vmatprep.subr.mxu0 0.0
      %1944 = vmatpush1.msra.mxu0 %v1835
      %1945 = vmatprep.subr.mxu0 0.0
      %1946 = vmatpush1.msra.mxu0 %v1841
      %1947 = vmatprep.subr.mxu0 0.0
      %1948 = vmatpush1.msra.mxu0 0.0
      %1949 = vmatprep.subr.mxu0 0.0
      %1950 = vmatpush1.msra.mxu0 0.0
      %1951 = vmatprep.subr.mxu0 0.0
      %1952 = vmatpush1.msra.mxu0 0.0
      %1953 = vmatprep.subr.mxu0 0.0
      %1954 = vmatpush1.msra.mxu0 0.0
      %1955 = vmatprep.subr.mxu0 0.0
      %1956 = vmatpush1.msra.mxu0 0.0
      %1957 = vmatprep.subr.mxu0 0.0
      %1958 = vmatpush1.msra.mxu0 0.0
      %1959 = vmatprep.subr.mxu0 0.0
      %1960 = vmatpush1.msra.mxu0 0.0
      %1961 = vmatprep.subr.mxu0 0.0
      %1962 = vmatpush1.msra.mxu0 0.0
      %1963 = vmatprep.subr.mxu0 0.0
      %1964 = vmatpush1.msra.mxu0 0.0
      %1965 = vmatprep.subr.mxu0 0.0
      %1966 = vmatpush1.msra.mxu0 0.0
      %1967 = vmatprep.subr.mxu0 0.0
      %1968 = vmatpush1.msra.mxu0 0.0
      %1969 = vmatprep.subr.mxu0 0.0
      %1970 = vmatpush1.msra.mxu0 0.0
      %1971 = vmatprep.subr.mxu0 0.0
      %1972 = vmatpush1.msra.mxu0 0.0
      %1973 = vmatprep.subr.mxu0 0.0
      %1974 = vmatpush1.msra.mxu0 0.0
      %1975 = vmatprep.subr.mxu0 0.0
      %1976 = vmatpush1.msra.mxu0 0.0
      %1977 = vmatprep.subr.mxu0 0.0
      %1978 = vmatpush1.msra.mxu0 0.0
      %1979 = vmatprep.subr.mxu0 0.0
      %1980 = vmatpush1.msra.mxu0 0.0
      %1981 = vmatprep.subr.mxu0 0.0
      %1982 = vmatpush1.msra.mxu0 0.0
      %1983 = vmatprep.subr.mxu0 0.0
      %1984 = vmatpush1.msra.mxu0 0.0
      %1985 = vmatprep.subr.mxu0 0.0
      %1986 = vmatpush1.msra.mxu0 0.0
      %1987 = vmatprep.subr.mxu0 0.0
      %1988 = vmatpush1.msra.mxu0 0.0
      %1989 = vmatprep.subr.mxu0 0.0
      %1990 = vmatpush1.msra.mxu0 0.0
      %1991 = vmatprep.subr.mxu0 0.0
      %1992 = vmatpush1.msra.mxu0 0.0
      %1993 = vmatprep.subr.mxu0 0.0
      %1994 = vmatpush1.msra.mxu0 0.0
      %1995 = vmatprep.subr.mxu0 0.0
      %1996 = vmatpush1.msra.mxu0 0.0
      %1997 = vmatprep.subr.mxu0 0.0
      %1998 = vmatpush1.msra.mxu0 0.0
      %1999 = vmatprep.subr.mxu0 0.0
      %2000 = vmatpush1.msra.mxu0 0.0
      %2001 = vmatprep.subr.mxu0 0.0
      %2002 = vmatpush1.msra.mxu0 0.0
      %2003 = vmatprep.subr.mxu0 0.0
      %2004 = vmatpush1.msra.mxu0 0.0
      %2005 = vmatprep.mubr.f32.mxu0 0.0
      %2006 = vmatmul.mubr.f32.gmra.mrb[0].mxu0 %v1859
      %v2007 = vpop.f32.mrb[0].mxu0
      %v2008 = vadd.f32 0.0, %v2007
      %v2009 = vpop.f32.mrb[0].mxu0
      %2010 = vmatprep.mubr.f32.mxu0 0.0
      %2011 = vmatmul.mubr.f32.gmra.mrb[0].mxu0 %v1862
      %v2012 = vpop.f32.mrb[0].mxu0
      %v2013 = vadd.f32 0.0, %v2012
      %v2014 = vpop.f32.mrb[0].mxu0
      %2015 = vdwg.mxu0
      %v2016 = vadd.f32 %v1815, %v1931
      %v2017 = vadd.f32 %v1816, %v1933
      %v2018 = vadd.f32 %v1817, %v2008
      %v2019 = vadd.f32 %v1818, %v1937
      %v2020 = vadd.f32 %v1819, %v1939
      %v2021 = vadd.f32 %v1820, %v2013
      %s2022 = scalar_lea.vmem %s1, 112
      %v2023 = vld [vmem:[%s2022] sm:$0xff]
      %v2024 = vld [vmem:[%s2022 + $0x8] sm:$0xf]
      %2025 = vrot.lane.b32.xlu0 %v644, 91
      %v2026 = vpop.permute.xlu0 %2025
      %2027 = vrot.lane.b32.xlu0 %v645, 91
      %v2028 = vpop.permute.xlu0 %2027
      %2029 = vrot.lane.b32.xlu0 %v646, 91
      %v2030 = vpop.permute.xlu0 %2029
      %2031 = vrot.lane.b32.xlu0 %v647, 91
      %v2032 = vpop.permute.xlu0 %2031
      %2033 = vrot.lane.b32.xlu0 %v648, 91
      %v2034 = vpop.permute.xlu0 %2033
      %2035 = vrot.lane.b32.xlu0 %v649, 91
      %v2036 = vpop.permute.xlu0 %2035
      %2037 = vrot.lane.b32.xlu0 %v650, 91
      %v2038 = vpop.permute.xlu0 %2037
      %2039 = vrot.lane.b32.xlu0 %v651, 91
      %v2040 = vpop.permute.xlu0 %2039
      %2041 = vrot.lane.b32.xlu0 %v652, 91
      %v2042 = vpop.permute.xlu0 %2041
      %vm2043 = vcmask 744448
      %v2044 = vsel %vm2043, %v2026, %v2028
      %v2045 = vsel %vm2043, %v2028, %v2030
      %v2046 = vsel %vm2043, %v2032, %v2034
      %v2047 = vsel %vm2043, %v2034, %v2036
      %v2048 = vsel %vm2043, %v2038, %v2040
      %v2049 = vsel %vm2043, %v2040, %v2042
      %v2060 = vsel %vm417, %v2023, 0
      %v2063 = vsel %vm417, %v2024, 0
      %2065 = vmatprep.subr.mxu0 %v2045
      %2066 = vmatpush1.msra.mxu0 %v2044
      %2067 = vmatprep.subr.mxu0 %v2047
      %2068 = vmatpush1.msra.mxu0 %v2046
      %2069 = vmatprep.subr.mxu0 %v2049
      %2070 = vmatpush1.msra.mxu0 %v2048
      %2071 = vmatprep.subr.mxu0 0.0
      %2072 = vmatpush1.msra.mxu0 0.0
      %2073 = vmatprep.subr.mxu0 0.0
      %2074 = vmatpush1.msra.mxu0 0.0
      %2075 = vmatprep.subr.mxu0 0.0
      %2076 = vmatpush1.msra.mxu0 0.0
      %2077 = vmatprep.subr.mxu0 0.0
      %2078 = vmatpush1.msra.mxu0 0.0
      %2079 = vmatprep.subr.mxu0 0.0
      %2080 = vmatpush1.msra.mxu0 0.0
      %2081 = vmatprep.subr.mxu0 0.0
      %2082 = vmatpush1.msra.mxu0 0.0
      %2083 = vmatprep.subr.mxu0 0.0
      %2084 = vmatpush1.msra.mxu0 0.0
      %2085 = vmatprep.subr.mxu0 0.0
      %2086 = vmatpush1.msra.mxu0 0.0
      %2087 = vmatprep.subr.mxu0 0.0
      %2088 = vmatpush1.msra.mxu0 0.0
      %2089 = vmatprep.subr.mxu0 0.0
      %2090 = vmatpush1.msra.mxu0 0.0
      %2091 = vmatprep.subr.mxu0 0.0
      %2092 = vmatpush1.msra.mxu0 0.0
      %2093 = vmatprep.subr.mxu0 0.0
      %2094 = vmatpush1.msra.mxu0 0.0
      %2095 = vmatprep.subr.mxu0 0.0
      %2096 = vmatpush1.msra.mxu0 0.0
      %2097 = vmatprep.subr.mxu0 0.0
      %2098 = vmatpush1.msra.mxu0 0.0
      %2099 = vmatprep.subr.mxu0 0.0
      %2100 = vmatpush1.msra.mxu0 0.0
      %2101 = vmatprep.subr.mxu0 0.0
      %2102 = vmatpush1.msra.mxu0 0.0
      %2103 = vmatprep.subr.mxu0 0.0
      %2104 = vmatpush1.msra.mxu0 0.0
      %2105 = vmatprep.subr.mxu0 0.0
      %2106 = vmatpush1.msra.mxu0 0.0
      %2107 = vmatprep.subr.mxu0 0.0
      %2108 = vmatpush1.msra.mxu0 0.0
      %2109 = vmatprep.subr.mxu0 0.0
      %2110 = vmatpush1.msra.mxu0 0.0
      %2111 = vmatprep.subr.mxu0 0.0
      %2112 = vmatpush1.msra.mxu0 0.0
      %2113 = vmatprep.subr.mxu0 0.0
      %2114 = vmatpush1.msra.mxu0 0.0
      %2115 = vmatprep.subr.mxu0 0.0
      %2116 = vmatpush1.msra.mxu0 0.0
      %2117 = vmatprep.subr.mxu0 0.0
      %2118 = vmatpush1.msra.mxu0 0.0
      %2119 = vmatprep.subr.mxu0 0.0
      %2120 = vmatpush1.msra.mxu0 0.0
      %2121 = vmatprep.subr.mxu0 0.0
      %2122 = vmatpush1.msra.mxu0 0.0
      %2123 = vmatprep.subr.mxu0 0.0
      %2124 = vmatpush1.msra.mxu0 0.0
      %2125 = vmatprep.subr.mxu0 0.0
      %2126 = vmatpush1.msra.mxu0 0.0
      %2127 = vmatprep.subr.mxu0 0.0
      %2128 = vmatpush1.msra.mxu0 0.0
      %2129 = vmatprep.mubr.f32.mxu0 0.0
      %2130 = vmatmul.mubr.f32.gmra.mrb[0].mxu0 %v2060
      %v2131 = vpop.f32.mrb[0].mxu0
      %v2132 = vadd.f32 0.0, %v2131
      %v2133 = vpop.f32.mrb[0].mxu0
      %v2134 = vadd.f32 0.0, %v2133
      %2135 = vmatprep.mubr.f32.mxu0 0.0
      %2136 = vmatmul.mubr.f32.gmra.mrb[0].mxu0 %v2063
      %v2137 = vpop.f32.mrb[0].mxu0
      %v2138 = vadd.f32 0.0, %v2137
      %v2139 = vpop.f32.mrb[0].mxu0
      %v2140 = vadd.f32 0.0, %v2139
      %2141 = vdwg.mxu0
      %2142 = vmatprep.subr.mxu0 0.0
      %2143 = vmatpush1.msra.mxu0 %v2030
      %2144 = vmatprep.subr.mxu0 0.0
      %2145 = vmatpush1.msra.mxu0 %v2036
      %2146 = vmatprep.subr.mxu0 0.0
      %2147 = vmatpush1.msra.mxu0 %v2042
      %2148 = vmatprep.subr.mxu0 0.0
      %2149 = vmatpush1.msra.mxu0 0.0
      %2150 = vmatprep.subr.mxu0 0.0
      %2151 = vmatpush1.msra.mxu0 0.0
      %2152 = vmatprep.subr.mxu0 0.0
      %2153 = vmatpush1.msra.mxu0 0.0
      %2154 = vmatprep.subr.mxu0 0.0
      %2155 = vmatpush1.msra.mxu0 0.0
      %2156 = vmatprep.subr.mxu0 0.0
      %2157 = vmatpush1.msra.mxu0 0.0
      %2158 = vmatprep.subr.mxu0 0.0
      %2159 = vmatpush1.msra.mxu0 0.0
      %2160 = vmatprep.subr.mxu0 0.0
      %2161 = vmatpush1.msra.mxu0 0.0
      %2162 = vmatprep.subr.mxu0 0.0
      %2163 = vmatpush1.msra.mxu0 0.0
      %2164 = vmatprep.subr.mxu0 0.0
      %2165 = vmatpush1.msra.mxu0 0.0
      %2166 = vmatprep.subr.mxu0 0.0
      %2167 = vmatpush1.msra.mxu0 0.0
      %2168 = vmatprep.subr.mxu0 0.0
      %2169 = vmatpush1.msra.mxu0 0.0
      %2170 = vmatprep.subr.mxu0 0.0
      %2171 = vmatpush1.msra.mxu0 0.0
      %2172 = vmatprep.subr.mxu0 0.0
      %2173 = vmatpush1.msra.mxu0 0.0
      %2174 = vmatprep.subr.mxu0 0.0
      %2175 = vmatpush1.msra.mxu0 0.0
      %2176 = vmatprep.subr.mxu0 0.0
      %2177 = vmatpush1.msra.mxu0 0.0
      %2178 = vmatprep.subr.mxu0 0.0
      %2179 = vmatpush1.msra.mxu0 0.0
      %2180 = vmatprep.subr.mxu0 0.0
      %2181 = vmatpush1.msra.mxu0 0.0
      %2182 = vmatprep.subr.mxu0 0.0
      %2183 = vmatpush1.msra.mxu0 0.0
      %2184 = vmatprep.subr.mxu0 0.0
      %2185 = vmatpush1.msra.mxu0 0.0
      %2186 = vmatprep.subr.mxu0 0.0
      %2187 = vmatpush1.msra.mxu0 0.0
      %2188 = vmatprep.subr.mxu0 0.0
      %2189 = vmatpush1.msra.mxu0 0.0
      %2190 = vmatprep.subr.mxu0 0.0
      %2191 = vmatpush1.msra.mxu0 0.0
      %2192 = vmatprep.subr.mxu0 0.0
      %2193 = vmatpush1.msra.mxu0 0.0
      %2194 = vmatprep.subr.mxu0 0.0
      %2195 = vmatpush1.msra.mxu0 0.0
      %2196 = vmatprep.subr.mxu0 0.0
      %2197 = vmatpush1.msra.mxu0 0.0
      %2198 = vmatprep.subr.mxu0 0.0
      %2199 = vmatpush1.msra.mxu0 0.0
      %2200 = vmatprep.subr.mxu0 0.0
      %2201 = vmatpush1.msra.mxu0 0.0
      %2202 = vmatprep.subr.mxu0 0.0
      %2203 = vmatpush1.msra.mxu0 0.0
      %2204 = vmatprep.subr.mxu0 0.0
      %2205 = vmatpush1.msra.mxu0 0.0
      %2206 = vmatprep.mubr.f32.mxu0 0.0
      %2207 = vmatmul.mubr.f32.gmra.mrb[0].mxu0 %v2060
      %v2208 = vpop.f32.mrb[0].mxu0
      %v2209 = vadd.f32 0.0, %v2208
      %v2210 = vpop.f32.mrb[0].mxu0
      %2211 = vmatprep.mubr.f32.mxu0 0.0
      %2212 = vmatmul.mubr.f32.gmra.mrb[0].mxu0 %v2063
      %v2213 = vpop.f32.mrb[0].mxu0
      %v2214 = vadd.f32 0.0, %v2213
      %v2215 = vpop.f32.mrb[0].mxu0
      %2216 = vdwg.mxu0
      %v2217 = vadd.f32 %v2016, %v2132
      %v2218 = vadd.f32 %v2017, %v2134
      %v2219 = vadd.f32 %v2018, %v2209
      %v2220 = vadd.f32 %v2019, %v2138
      %v2221 = vadd.f32 %v2020, %v2140
      %v2222 = vadd.f32 %v2021, %v2214
      %s2223 = scalar_lea.vmem %s1, 128
      %v2224 = vld [vmem:[%s2223] sm:$0xff]
      %v2225 = vld [vmem:[%s2223 + $0x8] sm:$0xf]
      %2226 = vrot.lane.b32.xlu0 %v644, 90
      %v2227 = vpop.permute.xlu0 %2226
      %2228 = vrot.lane.b32.xlu0 %v645, 90
      %v2229 = vpop.permute.xlu0 %2228
      %2230 = vrot.lane.b32.xlu0 %v646, 90
      %v2231 = vpop.permute.xlu0 %2230
      %2232 = vrot.lane.b32.xlu0 %v647, 90
      %v2233 = vpop.permute.xlu0 %2232
      %2234 = vrot.lane.b32.xlu0 %v648, 90
      %v2235 = vpop.permute.xlu0 %2234
      %2236 = vrot.lane.b32.xlu0 %v649, 90
      %v2237 = vpop.permute.xlu0 %2236
      %2238 = vrot.lane.b32.xlu0 %v650, 90
      %v2239 = vpop.permute.xlu0 %2238
      %2240 = vrot.lane.b32.xlu0 %v651, 90
      %v2241 = vpop.permute.xlu0 %2240
      %2242 = vrot.lane.b32.xlu0 %v652, 90
      %v2243 = vpop.permute.xlu0 %2242
      %vm2244 = vcmask 736256
      %v2245 = vsel %vm2244, %v2227, %v2229
      %v2246 = vsel %vm2244, %v2229, %v2231
      %v2247 = vsel %vm2244, %v2233, %v2235
      %v2248 = vsel %vm2244, %v2235, %v2237
      %v2249 = vsel %vm2244, %v2239, %v2241
      %v2250 = vsel %vm2244, %v2241, %v2243
      %v2261 = vsel %vm417, %v2224, 0
      %v2264 = vsel %vm417, %v2225, 0
      %2266 = vmatprep.subr.mxu0 %v2246
      %2267 = vmatpush1.msra.mxu0 %v2245
      %2268 = vmatprep.subr.mxu0 %v2248
      %2269 = vmatpush1.msra.mxu0 %v2247
      %2270 = vmatprep.subr.mxu0 %v2250
      %2271 = vmatpush1.msra.mxu0 %v2249
      %2272 = vmatprep.subr.mxu0 0.0
      %2273 = vmatpush1.msra.mxu0 0.0
      %2274 = vmatprep.subr.mxu0 0.0
      %2275 = vmatpush1.msra.mxu0 0.0
      %2276 = vmatprep.subr.mxu0 0.0
      %2277 = vmatpush1.msra.mxu0 0.0
      %2278 = vmatprep.subr.mxu0 0.0
      %2279 = vmatpush1.msra.mxu0 0.0
      %2280 = vmatprep.subr.mxu0 0.0
      %2281 = vmatpush1.msra.mxu0 0.0
      %2282 = vmatprep.subr.mxu0 0.0
      %2283 = vmatpush1.msra.mxu0 0.0
      %2284 = vmatprep.subr.mxu0 0.0
      %2285 = vmatpush1.msra.mxu0 0.0
      %2286 = vmatprep.subr.mxu0 0.0
      %2287 = vmatpush1.msra.mxu0 0.0
      %2288 = vmatprep.subr.mxu0 0.0
      %2289 = vmatpush1.msra.mxu0 0.0
      %2290 = vmatprep.subr.mxu0 0.0
      %2291 = vmatpush1.msra.mxu0 0.0
      %2292 = vmatprep.subr.mxu0 0.0
      %2293 = vmatpush1.msra.mxu0 0.0
      %2294 = vmatprep.subr.mxu0 0.0
      %2295 = vmatpush1.msra.mxu0 0.0
      %2296 = vmatprep.subr.mxu0 0.0
      %2297 = vmatpush1.msra.mxu0 0.0
      %2298 = vmatprep.subr.mxu0 0.0
      %2299 = vmatpush1.msra.mxu0 0.0
      %2300 = vmatprep.subr.mxu0 0.0
      %2301 = vmatpush1.msra.mxu0 0.0
      %2302 = vmatprep.subr.mxu0 0.0
      %2303 = vmatpush1.msra.mxu0 0.0
      %2304 = vmatprep.subr.mxu0 0.0
      %2305 = vmatpush1.msra.mxu0 0.0
      %2306 = vmatprep.subr.mxu0 0.0
      %2307 = vmatpush1.msra.mxu0 0.0
      %2308 = vmatprep.subr.mxu0 0.0
      %2309 = vmatpush1.msra.mxu0 0.0
      %2310 = vmatprep.subr.mxu0 0.0
      %2311 = vmatpush1.msra.mxu0 0.0
      %2312 = vmatprep.subr.mxu0 0.0
      %2313 = vmatpush1.msra.mxu0 0.0
      %2314 = vmatprep.subr.mxu0 0.0
      %2315 = vmatpush1.msra.mxu0 0.0
      %2316 = vmatprep.subr.mxu0 0.0
      %2317 = vmatpush1.msra.mxu0 0.0
      %2318 = vmatprep.subr.mxu0 0.0
      %2319 = vmatpush1.msra.mxu0 0.0
      %2320 = vmatprep.subr.mxu0 0.0
      %2321 = vmatpush1.msra.mxu0 0.0
      %2322 = vmatprep.subr.mxu0 0.0
      %2323 = vmatpush1.msra.mxu0 0.0
      %2324 = vmatprep.subr.mxu0 0.0
      %2325 = vmatpush1.msra.mxu0 0.0
      %2326 = vmatprep.subr.mxu0 0.0
      %2327 = vmatpush1.msra.mxu0 0.0
      %2328 = vmatprep.subr.mxu0 0.0
      %2329 = vmatpush1.msra.mxu0 0.0
      %2330 = vmatprep.mubr.f32.mxu0 0.0
      %2331 = vmatmul.mubr.f32.gmra.mrb[0].mxu0 %v2261
      %v2332 = vpop.f32.mrb[0].mxu0
      %v2333 = vadd.f32 0.0, %v2332
      %v2334 = vpop.f32.mrb[0].mxu0
      %v2335 = vadd.f32 0.0, %v2334
      %2336 = vmatprep.mubr.f32.mxu0 0.0
      %2337 = vmatmul.mubr.f32.gmra.mrb[0].mxu0 %v2264
      %v2338 = vpop.f32.mrb[0].mxu0
      %v2339 = vadd.f32 0.0, %v2338
      %v2340 = vpop.f32.mrb[0].mxu0
      %v2341 = vadd.f32 0.0, %v2340
      %2342 = vdwg.mxu0
      %2343 = vmatprep.subr.mxu0 0.0
      %2344 = vmatpush1.msra.mxu0 %v2231
      %2345 = vmatprep.subr.mxu0 0.0
      %2346 = vmatpush1.msra.mxu0 %v2237
      %2347 = vmatprep.subr.mxu0 0.0
      %2348 = vmatpush1.msra.mxu0 %v2243
      %2349 = vmatprep.subr.mxu0 0.0
      %2350 = vmatpush1.msra.mxu0 0.0
      %2351 = vmatprep.subr.mxu0 0.0
      %2352 = vmatpush1.msra.mxu0 0.0
      %2353 = vmatprep.subr.mxu0 0.0
      %2354 = vmatpush1.msra.mxu0 0.0
      %2355 = vmatprep.subr.mxu0 0.0
      %2356 = vmatpush1.msra.mxu0 0.0
      %2357 = vmatprep.subr.mxu0 0.0
      %2358 = vmatpush1.msra.mxu0 0.0
      %2359 = vmatprep.subr.mxu0 0.0
      %2360 = vmatpush1.msra.mxu0 0.0
      %2361 = vmatprep.subr.mxu0 0.0
      %2362 = vmatpush1.msra.mxu0 0.0
      %2363 = vmatprep.subr.mxu0 0.0
      %2364 = vmatpush1.msra.mxu0 0.0
      %2365 = vmatprep.subr.mxu0 0.0
      %2366 = vmatpush1.msra.mxu0 0.0
      %2367 = vmatprep.subr.mxu0 0.0
      %2368 = vmatpush1.msra.mxu0 0.0
      %2369 = vmatprep.subr.mxu0 0.0
      %2370 = vmatpush1.msra.mxu0 0.0
      %2371 = vmatprep.subr.mxu0 0.0
      %2372 = vmatpush1.msra.mxu0 0.0
      %2373 = vmatprep.subr.mxu0 0.0
      %2374 = vmatpush1.msra.mxu0 0.0
      %2375 = vmatprep.subr.mxu0 0.0
      %2376 = vmatpush1.msra.mxu0 0.0
      %2377 = vmatprep.subr.mxu0 0.0
      %2378 = vmatpush1.msra.mxu0 0.0
      %2379 = vmatprep.subr.mxu0 0.0
      %2380 = vmatpush1.msra.mxu0 0.0
      %2381 = vmatprep.subr.mxu0 0.0
      %2382 = vmatpush1.msra.mxu0 0.0
      %2383 = vmatprep.subr.mxu0 0.0
      %2384 = vmatpush1.msra.mxu0 0.0
      %2385 = vmatprep.subr.mxu0 0.0
      %2386 = vmatpush1.msra.mxu0 0.0
      %2387 = vmatprep.subr.mxu0 0.0
      %2388 = vmatpush1.msra.mxu0 0.0
      %2389 = vmatprep.subr.mxu0 0.0
      %2390 = vmatpush1.msra.mxu0 0.0
      %2391 = vmatprep.subr.mxu0 0.0
      %2392 = vmatpush1.msra.mxu0 0.0
      %2393 = vmatprep.subr.mxu0 0.0
      %2394 = vmatpush1.msra.mxu0 0.0
      %2395 = vmatprep.subr.mxu0 0.0
      %2396 = vmatpush1.msra.mxu0 0.0
      %2397 = vmatprep.subr.mxu0 0.0
      %2398 = vmatpush1.msra.mxu0 0.0
      %2399 = vmatprep.subr.mxu0 0.0
      %2400 = vmatpush1.msra.mxu0 0.0
      %2401 = vmatprep.subr.mxu0 0.0
      %2402 = vmatpush1.msra.mxu0 0.0
      %2403 = vmatprep.subr.mxu0 0.0
      %2404 = vmatpush1.msra.mxu0 0.0
      %2405 = vmatprep.subr.mxu0 0.0
      %2406 = vmatpush1.msra.mxu0 0.0
      %2407 = vmatprep.mubr.f32.mxu0 0.0
      %2408 = vmatmul.mubr.f32.gmra.mrb[0].mxu0 %v2261
      %v2409 = vpop.f32.mrb[0].mxu0
      %v2410 = vadd.f32 0.0, %v2409
      %v2411 = vpop.f32.mrb[0].mxu0
      %2412 = vmatprep.mubr.f32.mxu0 0.0
      %2413 = vmatmul.mubr.f32.gmra.mrb[0].mxu0 %v2264
      %v2414 = vpop.f32.mrb[0].mxu0
      %v2415 = vadd.f32 0.0, %v2414
      %v2416 = vpop.f32.mrb[0].mxu0
      %2417 = vdwg.mxu0
      %v2418 = vadd.f32 %v2217, %v2333
      %v2419 = vadd.f32 %v2218, %v2335
      %v2420 = vadd.f32 %v2219, %v2410
      %v2421 = vadd.f32 %v2220, %v2339
      %v2422 = vadd.f32 %v2221, %v2341
      %v2423 = vadd.f32 %v2222, %v2415
      %v2424 = vld [vmem:[%s2] sm:$0xff]
      %v2425 = vld [vmem:[%s2 + $0x8] sm:$0xf]
      %2427 = vset.pattern.permute.xlu0 0
      %2428 = vperm.xlu0 %2427, %v2424
      %v2429 = vpop.permute.xlu0 %2428
      %2432 = vset.pattern.permute.xlu0 0
      %2433 = vperm.xlu0 %2432, %v2425
      %v2434 = vpop.permute.xlu0 %2433
      %v2436 = vadd.f32 %v2418, %v2429
      %v2437 = vadd.f32 %v2419, %v2429
      %v2438 = vadd.f32 %v2420, %v2429
      %v2439 = vadd.f32 %v2421, %v2434
      %v2440 = vadd.f32 %v2422, %v2434
      %v2441 = vadd.f32 %v2423, %v2434
      %v2442 = vld [vmem:[%s8] sm:$0xff]
      %v2443 = vld [vmem:[%s8 + $0x8] sm:$0xf]
      %v2444 = vld [vmem:[%s9] sm:$0xff]
      %v2445 = vld [vmem:[%s9 + $0x8] sm:$0xf]
      %2447 = vset.pattern.permute.xlu0 0
      %2448 = vperm.xlu0 %2447, %v2444
      %v2449 = vpop.permute.xlu0 %2448
      %2452 = vset.pattern.permute.xlu0 0
      %2453 = vperm.xlu0 %2452, %v2445
      %v2454 = vpop.permute.xlu0 %2453
      %vm2456 = vcmask 97280
      %v2458 = vsel %vm2456, %v2442, 0
      %v2461 = vsel %vm2456, %v2443, 0
      %vm2463 = vcmask 1043456
      %v2465 = vsel %vm2463, %v2439, 0
      %v2468 = vsel %vm2463, %v2440, 0
      %v2471 = vsel %vm2463, %v2441, 0
      %2473 = vmatprep.subr.mxu0 %v2437
      %2474 = vmatpush1.msra.mxu0 %v2436
      %2475 = vmatprep.subr.mxu0 %v2468
      %2476 = vmatpush1.msra.mxu0 %v2465
      %2477 = vmatprep.subr.mxu0 0.0
      %2478 = vmatpush1.msra.mxu0 0.0
      %2479 = vmatprep.subr.mxu0 0.0
      %2480 = vmatpush1.msra.mxu0 0.0
      %2481 = vmatprep.subr.mxu0 0.0
      %2482 = vmatpush1.msra.mxu0 0.0
      %2483 = vmatprep.subr.mxu0 0.0
      %2484 = vmatpush1.msra.mxu0 0.0
      %2485 = vmatprep.subr.mxu0 0.0
      %2486 = vmatpush1.msra.mxu0 0.0
      %2487 = vmatprep.subr.mxu0 0.0
      %2488 = vmatpush1.msra.mxu0 0.0
      %2489 = vmatprep.subr.mxu0 0.0
      %2490 = vmatpush1.msra.mxu0 0.0
      %2491 = vmatprep.subr.mxu0 0.0
      %2492 = vmatpush1.msra.mxu0 0.0
      %2493 = vmatprep.subr.mxu0 0.0
      %2494 = vmatpush1.msra.mxu0 0.0
      %2495 = vmatprep.subr.mxu0 0.0
      %2496 = vmatpush1.msra.mxu0 0.0
      %2497 = vmatprep.subr.mxu0 0.0
      %2498 = vmatpush1.msra.mxu0 0.0
      %2499 = vmatprep.subr.mxu0 0.0
      %2500 = vmatpush1.msra.mxu0 0.0
      %2501 = vmatprep.subr.mxu0 0.0
      %2502 = vmatpush1.msra.mxu0 0.0
      %2503 = vmatprep.subr.mxu0 0.0
      %2504 = vmatpush1.msra.mxu0 0.0
      %2505 = vmatprep.subr.mxu0 0.0
      %2506 = vmatpush1.msra.mxu0 0.0
      %2507 = vmatprep.subr.mxu0 0.0
      %2508 = vmatpush1.msra.mxu0 0.0
      %2509 = vmatprep.subr.mxu0 0.0
      %2510 = vmatpush1.msra.mxu0 0.0
      %2511 = vmatprep.subr.mxu0 0.0
      %2512 = vmatpush1.msra.mxu0 0.0
      %2513 = vmatprep.subr.mxu0 0.0
      %2514 = vmatpush1.msra.mxu0 0.0
      %2515 = vmatprep.subr.mxu0 0.0
      %2516 = vmatpush1.msra.mxu0 0.0
      %2517 = vmatprep.subr.mxu0 0.0
      %2518 = vmatpush1.msra.mxu0 0.0
      %2519 = vmatprep.subr.mxu0 0.0
      %2520 = vmatpush1.msra.mxu0 0.0
      %2521 = vmatprep.subr.mxu0 0.0
      %2522 = vmatpush1.msra.mxu0 0.0
      %2523 = vmatprep.subr.mxu0 0.0
      %2524 = vmatpush1.msra.mxu0 0.0
      %2525 = vmatprep.subr.mxu0 0.0
      %2526 = vmatpush1.msra.mxu0 0.0
      %2527 = vmatprep.subr.mxu0 0.0
      %2528 = vmatpush1.msra.mxu0 0.0
      %2529 = vmatprep.subr.mxu0 0.0
      %2530 = vmatpush1.msra.mxu0 0.0
      %2531 = vmatprep.subr.mxu0 0.0
      %2532 = vmatpush1.msra.mxu0 0.0
      %2533 = vmatprep.subr.mxu0 0.0
      %2534 = vmatpush1.msra.mxu0 0.0
      %2535 = vmatprep.subr.mxu0 0.0
      %2536 = vmatpush1.msra.mxu0 0.0
      %2537 = vmatprep.mubr.f32.mxu0 0.0
      %2538 = vmatmul.mubr.f32.gmra.mrb[0].mxu0 %v2458
      %v2539 = vpop.f32.mrb[0].mxu0
      %v2540 = vadd.f32 %v2449, %v2539
      %v2541 = vpop.f32.mrb[0].mxu0
      %v2542 = vadd.f32 %v2449, %v2541
      %2543 = vmatprep.mubr.f32.mxu0 0.0
      %2544 = vmatmul.mubr.f32.gmra.mrb[0].mxu0 %v2461
      %v2545 = vpop.f32.mrb[0].mxu0
      %v2546 = vadd.f32 %v2454, %v2545
      %v2547 = vpop.f32.mrb[0].mxu0
      %v2548 = vadd.f32 %v2454, %v2547
      %2549 = vdwg.mxu0
      %2550 = vmatprep.subr.mxu0 0.0
      %2551 = vmatpush1.msra.mxu0 %v2438
      %2552 = vmatprep.subr.mxu0 0.0
      %2553 = vmatpush1.msra.mxu0 %v2471
      %2554 = vmatprep.subr.mxu0 0.0
      %2555 = vmatpush1.msra.mxu0 0.0
      %2556 = vmatprep.subr.mxu0 0.0
      %2557 = vmatpush1.msra.mxu0 0.0
      %2558 = vmatprep.subr.mxu0 0.0
      %2559 = vmatpush1.msra.mxu0 0.0
      %2560 = vmatprep.subr.mxu0 0.0
      %2561 = vmatpush1.msra.mxu0 0.0
      %2562 = vmatprep.subr.mxu0 0.0
      %2563 = vmatpush1.msra.mxu0 0.0
      %2564 = vmatprep.subr.mxu0 0.0
      %2565 = vmatpush1.msra.mxu0 0.0
      %2566 = vmatprep.subr.mxu0 0.0
      %2567 = vmatpush1.msra.mxu0 0.0
      %2568 = vmatprep.subr.mxu0 0.0
      %2569 = vmatpush1.msra.mxu0 0.0
      %2570 = vmatprep.subr.mxu0 0.0
      %2571 = vmatpush1.msra.mxu0 0.0
      %2572 = vmatprep.subr.mxu0 0.0
      %2573 = vmatpush1.msra.mxu0 0.0
      %2574 = vmatprep.subr.mxu0 0.0
      %2575 = vmatpush1.msra.mxu0 0.0
      %2576 = vmatprep.subr.mxu0 0.0
      %2577 = vmatpush1.msra.mxu0 0.0
      %2578 = vmatprep.subr.mxu0 0.0
      %2579 = vmatpush1.msra.mxu0 0.0
      %2580 = vmatprep.subr.mxu0 0.0
      %2581 = vmatpush1.msra.mxu0 0.0
      %2582 = vmatprep.subr.mxu0 0.0
      %2583 = vmatpush1.msra.mxu0 0.0
      %2584 = vmatprep.subr.mxu0 0.0
      %2585 = vmatpush1.msra.mxu0 0.0
      %2586 = vmatprep.subr.mxu0 0.0
      %2587 = vmatpush1.msra.mxu0 0.0
      %2588 = vmatprep.subr.mxu0 0.0
      %2589 = vmatpush1.msra.mxu0 0.0
      %2590 = vmatprep.subr.mxu0 0.0
      %2591 = vmatpush1.msra.mxu0 0.0
      %2592 = vmatprep.subr.mxu0 0.0
      %2593 = vmatpush1.msra.mxu0 0.0
      %2594 = vmatprep.subr.mxu0 0.0
      %2595 = vmatpush1.msra.mxu0 0.0
      %2596 = vmatprep.subr.mxu0 0.0
      %2597 = vmatpush1.msra.mxu0 0.0
      %2598 = vmatprep.subr.mxu0 0.0
      %2599 = vmatpush1.msra.mxu0 0.0
      %2600 = vmatprep.subr.mxu0 0.0
      %2601 = vmatpush1.msra.mxu0 0.0
      %2602 = vmatprep.subr.mxu0 0.0
      %2603 = vmatpush1.msra.mxu0 0.0
      %2604 = vmatprep.subr.mxu0 0.0
      %2605 = vmatpush1.msra.mxu0 0.0
      %2606 = vmatprep.subr.mxu0 0.0
      %2607 = vmatpush1.msra.mxu0 0.0
      %2608 = vmatprep.subr.mxu0 0.0
      %2609 = vmatpush1.msra.mxu0 0.0
      %2610 = vmatprep.subr.mxu0 0.0
      %2611 = vmatpush1.msra.mxu0 0.0
      %2612 = vmatprep.subr.mxu0 0.0
      %2613 = vmatpush1.msra.mxu0 0.0
      %2614 = vmatprep.mubr.f32.mxu0 0.0
      %2615 = vmatmul.mubr.f32.gmra.mrb[0].mxu0 %v2458
      %v2616 = vpop.f32.mrb[0].mxu0
      %v2617 = vadd.f32 %v2449, %v2616
      %v2618 = vpop.f32.mrb[0].mxu0
      %2619 = vmatprep.mubr.f32.mxu0 0.0
      %2620 = vmatmul.mubr.f32.gmra.mrb[0].mxu0 %v2461
      %v2621 = vpop.f32.mrb[0].mxu0
      %v2622 = vadd.f32 %v2454, %v2621
      %v2623 = vpop.f32.mrb[0].mxu0
      %2624 = vdwg.mxu0
      %v2625 = vxor.u32 %v2540, 2147483648
      %v2626 = vxor.u32 %v2542, 2147483648
      %v2627 = vxor.u32 %v2617, 2147483648
      %v2628 = vxor.u32 %v2546, 2147483648
      %v2629 = vxor.u32 %v2548, 2147483648
      %v2630 = vxor.u32 %v2622, 2147483648
      %v2631 = vmul.f32 %v2625, 1.442695
      %v2632 = vpow.pop %v2631
      %v2633 = vmul.f32 %v2626, 1.442695
      %v2634 = vpow.pop %v2633
      %v2635 = vmul.f32 %v2627, 1.442695
      %v2636 = vpow.pop %v2635
      %v2637 = vmul.f32 %v2628, 1.442695
      %v2638 = vpow.pop %v2637
      %v2639 = vmul.f32 %v2629, 1.442695
      %v2640 = vpow.pop %v2639
      %v2641 = vmul.f32 %v2630, 1.442695
      %v2642 = vpow.pop %v2641
      %v2643 = vadd.f32 %v2632, 1.0
      %v2644 = vadd.f32 %v2634, 1.0
      %v2645 = vadd.f32 %v2636, 1.0
      %v2646 = vadd.f32 %v2638, 1.0
      %v2647 = vadd.f32 %v2640, 1.0
      %v2648 = vadd.f32 %v2642, 1.0
      %v2649 = vrcp.pop %v2643
      %v2650 = vmul.f32 1.0, %v2649
      %v2651 = vrcp.pop %v2644
      %v2652 = vmul.f32 1.0, %v2651
      %v2653 = vrcp.pop %v2645
      %v2654 = vmul.f32 1.0, %v2653
      %v2655 = vrcp.pop %v2646
      %v2656 = vmul.f32 1.0, %v2655
      %v2657 = vrcp.pop %v2647
      %v2658 = vmul.f32 1.0, %v2657
      %v2659 = vrcp.pop %v2648
      %v2660 = vmul.f32 1.0, %v2659
      %v2661 = vmul.f32 %v2436, %v2650
      %v2662 = vmul.f32 %v2437, %v2652
      %v2663 = vmul.f32 %v2438, %v2654
      %v2664 = vmul.f32 %v2439, %v2656
      %v2665 = vmul.f32 %v2440, %v2658
      %v2666 = vmul.f32 %v2441, %v2660
      %v2667 = vld [vmem:[%s10] sm:$0x7]
      %v2669 = vlaneseq
      %v2670 = vshrl.u32 %v2669, 7
      %v2671 = vsub.s32 0, %v2670
      %v2672 = vrot.slane %v2667, %v2671
      %v2673 = vlaneseq
      %v2674 = vshrl.u32 %v2673, 7
      %v2675 = vsub.s32 1, %v2674
      %v2676 = vrot.slane %v2667, %v2675
      %v2677 = vlaneseq
      %v2678 = vshrl.u32 %v2677, 7
      %v2679 = vsub.s32 2, %v2678
      %v2680 = vrot.slane %v2667, %v2679
      %v2684 = vmul.f32 %v2661, %v2672
      %v2685 = vmul.f32 %v2662, %v2676
      %v2686 = vmul.f32 %v2663, %v2680
      %v2687 = vmul.f32 %v2664, %v2672
      %v2688 = vmul.f32 %v2665, %v2676
      %v2689 = vmul.f32 %v2666, %v2680
      %2696 = vrot.lane.b32.xlu0 %v2684, 19
      %v2697 = vpop.permute.xlu0 %2696
      %2698 = vrot.lane.b32.xlu0 %v2685, 19
      %v2699 = vpop.permute.xlu0 %2698
      %2700 = vrot.lane.b32.xlu0 %v2686, 19
      %v2701 = vpop.permute.xlu0 %2700
      %2702 = vrot.lane.b32.xlu0 %v2687, 19
      %v2703 = vpop.permute.xlu0 %2702
      %2704 = vrot.lane.b32.xlu0 %v2688, 19
      %v2705 = vpop.permute.xlu0 %2704
      %2706 = vrot.lane.b32.xlu0 %v2689, 19
      %v2707 = vpop.permute.xlu0 %2706
      %vm2708 = vcmask 154624
      %v2709 = vsel %vm2708, %v2697, %v2699
      %v2710 = vsel %vm2708, %v2699, %v2701
      %v2711 = vsel %vm2708, %v2703, %v2705
      %v2712 = vsel %vm2708, %v2705, %v2707
      %v2718 = vsel %vm2708, 0.0, %v2697
      %v2719 = vsel %vm2708, 0.0, %v2703
      %vm2720 = vcmask 416768
      %v2721 = vsel %vm2720, %v2710, 0.0
      %v2722 = vsel %vm2720, %v2712, 0.0
      %v2723 = vld [vmem:[%s3] sm:$0xff]
      %v2724 = vld [vmem:[%s3 + $0x8] sm:$0xf]
      %s2725 = scalar_lea.vmem %s3, 16
      %v2726 = vld [vmem:[%s2725] sm:$0xff]
      %v2727 = vld [vmem:[%s2725 + $0x8] sm:$0xf]
      %2732 = vrot.lane.b32.xlu0 %v2718, 127
      %v2733 = vpop.permute.xlu0 %2732
      %2734 = vrot.lane.b32.xlu0 %v2709, 127
      %v2735 = vpop.permute.xlu0 %2734
      %2736 = vrot.lane.b32.xlu0 %v2721, 127
      %v2737 = vpop.permute.xlu0 %2736
      %2738 = vrot.lane.b32.xlu0 %v2719, 127
      %v2739 = vpop.permute.xlu0 %2738
      %2740 = vrot.lane.b32.xlu0 %v2711, 127
      %v2741 = vpop.permute.xlu0 %2740
      %2742 = vrot.lane.b32.xlu0 %v2722, 127
      %v2743 = vpop.permute.xlu0 %2742
      %v2744 = vsel %vm685, %v2733, %v2735
      %v2745 = vsel %vm685, %v2735, %v2737
      %v2746 = vsel %vm685, %v2739, %v2741
      %v2747 = vsel %vm685, %v2741, %v2743
      %v2752 = vsel %vm2456, %v2726, 0
      %v2755 = vsel %vm2456, %v2727, 0
      %v2757 = vsel %vm2463, %v2746, 0
      %v2759 = vsel %vm2463, %v2747, 0
      %v2761 = vsel %vm2463, %v2743, 0
      %2763 = vmatprep.subr.mxu0 %v2745
      %2764 = vmatpush1.msra.mxu0 %v2744
      %2765 = vmatprep.subr.mxu0 %v2759
      %2766 = vmatpush1.msra.mxu0 %v2757
      %2767 = vmatprep.subr.mxu0 0.0
      %2768 = vmatpush1.msra.mxu0 0.0
      %2769 = vmatprep.subr.mxu0 0.0
      %2770 = vmatpush1.msra.mxu0 0.0
      %2771 = vmatprep.subr.mxu0 0.0
      %2772 = vmatpush1.msra.mxu0 0.0
      %2773 = vmatprep.subr.mxu0 0.0
      %2774 = vmatpush1.msra.mxu0 0.0
      %2775 = vmatprep.subr.mxu0 0.0
      %2776 = vmatpush1.msra.mxu0 0.0
      %2777 = vmatprep.subr.mxu0 0.0
      %2778 = vmatpush1.msra.mxu0 0.0
      %2779 = vmatprep.subr.mxu0 0.0
      %2780 = vmatpush1.msra.mxu0 0.0
      %2781 = vmatprep.subr.mxu0 0.0
      %2782 = vmatpush1.msra.mxu0 0.0
      %2783 = vmatprep.subr.mxu0 0.0
      %2784 = vmatpush1.msra.mxu0 0.0
      %2785 = vmatprep.subr.mxu0 0.0
      %2786 = vmatpush1.msra.mxu0 0.0
      %2787 = vmatprep.subr.mxu0 0.0
      %2788 = vmatpush1.msra.mxu0 0.0
      %2789 = vmatprep.subr.mxu0 0.0
      %2790 = vmatpush1.msra.mxu0 0.0
      %2791 = vmatprep.subr.mxu0 0.0
      %2792 = vmatpush1.msra.mxu0 0.0
      %2793 = vmatprep.subr.mxu0 0.0
      %2794 = vmatpush1.msra.mxu0 0.0
      %2795 = vmatprep.subr.mxu0 0.0
      %2796 = vmatpush1.msra.mxu0 0.0
      %2797 = vmatprep.subr.mxu0 0.0
      %2798 = vmatpush1.msra.mxu0 0.0
      %2799 = vmatprep.subr.mxu0 0.0
      %2800 = vmatpush1.msra.mxu0 0.0
      %2801 = vmatprep.subr.mxu0 0.0
      %2802 = vmatpush1.msra.mxu0 0.0
      %2803 = vmatprep.subr.mxu0 0.0
      %2804 = vmatpush1.msra.mxu0 0.0
      %2805 = vmatprep.subr.mxu0 0.0
      %2806 = vmatpush1.msra.mxu0 0.0
      %2807 = vmatprep.subr.mxu0 0.0
      %2808 = vmatpush1.msra.mxu0 0.0
      %2809 = vmatprep.subr.mxu0 0.0
      %2810 = vmatpush1.msra.mxu0 0.0
      %2811 = vmatprep.subr.mxu0 0.0
      %2812 = vmatpush1.msra.mxu0 0.0
      %2813 = vmatprep.subr.mxu0 0.0
      %2814 = vmatpush1.msra.mxu0 0.0
      %2815 = vmatprep.subr.mxu0 0.0
      %2816 = vmatpush1.msra.mxu0 0.0
      %2817 = vmatprep.subr.mxu0 0.0
      %2818 = vmatpush1.msra.mxu0 0.0
      %2819 = vmatprep.subr.mxu0 0.0
      %2820 = vmatpush1.msra.mxu0 0.0
      %2821 = vmatprep.subr.mxu0 0.0
      %2822 = vmatpush1.msra.mxu0 0.0
      %2823 = vmatprep.subr.mxu0 0.0
      %2824 = vmatpush1.msra.mxu0 0.0
      %2825 = vmatprep.subr.mxu0 0.0
      %2826 = vmatpush1.msra.mxu0 0.0
      %2827 = vmatprep.mubr.f32.mxu0 0.0
      %2828 = vmatmul.mubr.f32.gmra.mrb[0].mxu0 %v2752
      %v2829 = vpop.f32.mrb[0].mxu0
      %v2830 = vadd.f32 0.0, %v2829
      %v2831 = vpop.f32.mrb[0].mxu0
      %v2832 = vadd.f32 0.0, %v2831
      %2833 = vmatprep.mubr.f32.mxu0 0.0
      %2834 = vmatmul.mubr.f32.gmra.mrb[0].mxu0 %v2755
      %v2835 = vpop.f32.mrb[0].mxu0
      %v2836 = vadd.f32 0.0, %v2835
      %v2837 = vpop.f32.mrb[0].mxu0
      %v2838 = vadd.f32 0.0, %v2837
      %2839 = vdwg.mxu0
      %2840 = vmatprep.subr.mxu0 0.0
      %2841 = vmatpush1.msra.mxu0 %v2737
      %2842 = vmatprep.subr.mxu0 0.0
      %2843 = vmatpush1.msra.mxu0 %v2761
      %2844 = vmatprep.subr.mxu0 0.0
      %2845 = vmatpush1.msra.mxu0 0.0
      %2846 = vmatprep.subr.mxu0 0.0
      %2847 = vmatpush1.msra.mxu0 0.0
      %2848 = vmatprep.subr.mxu0 0.0
      %2849 = vmatpush1.msra.mxu0 0.0
      %2850 = vmatprep.subr.mxu0 0.0
      %2851 = vmatpush1.msra.mxu0 0.0
      %2852 = vmatprep.subr.mxu0 0.0
      %2853 = vmatpush1.msra.mxu0 0.0
      %2854 = vmatprep.subr.mxu0 0.0
      %2855 = vmatpush1.msra.mxu0 0.0
      %2856 = vmatprep.subr.mxu0 0.0
      %2857 = vmatpush1.msra.mxu0 0.0
      %2858 = vmatprep.subr.mxu0 0.0
      %2859 = vmatpush1.msra.mxu0 0.0
      %2860 = vmatprep.subr.mxu0 0.0
      %2861 = vmatpush1.msra.mxu0 0.0
      %2862 = vmatprep.subr.mxu0 0.0
      %2863 = vmatpush1.msra.mxu0 0.0
      %2864 = vmatprep.subr.mxu0 0.0
      %2865 = vmatpush1.msra.mxu0 0.0
      %2866 = vmatprep.subr.mxu0 0.0
      %2867 = vmatpush1.msra.mxu0 0.0
      %2868 = vmatprep.subr.mxu0 0.0
      %2869 = vmatpush1.msra.mxu0 0.0
      %2870 = vmatprep.subr.mxu0 0.0
      %2871 = vmatpush1.msra.mxu0 0.0
      %2872 = vmatprep.subr.mxu0 0.0
      %2873 = vmatpush1.msra.mxu0 0.0
      %2874 = vmatprep.subr.mxu0 0.0
      %2875 = vmatpush1.msra.mxu0 0.0
      %2876 = vmatprep.subr.mxu0 0.0
      %2877 = vmatpush1.msra.mxu0 0.0
      %2878 = vmatprep.subr.mxu0 0.0
      %2879 = vmatpush1.msra.mxu0 0.0
      %2880 = vmatprep.subr.mxu0 0.0
      %2881 = vmatpush1.msra.mxu0 0.0
      %2882 = vmatprep.subr.mxu0 0.0
      %2883 = vmatpush1.msra.mxu0 0.0
      %2884 = vmatprep.subr.mxu0 0.0
      %2885 = vmatpush1.msra.mxu0 0.0
      %2886 = vmatprep.subr.mxu0 0.0
      %2887 = vmatpush1.msra.mxu0 0.0
      %2888 = vmatprep.subr.mxu0 0.0
      %2889 = vmatpush1.msra.mxu0 0.0
      %2890 = vmatprep.subr.mxu0 0.0
      %2891 = vmatpush1.msra.mxu0 0.0
      %2892 = vmatprep.subr.mxu0 0.0
      %2893 = vmatpush1.msra.mxu0 0.0
      %2894 = vmatprep.subr.mxu0 0.0
      %2895 = vmatpush1.msra.mxu0 0.0
      %2896 = vmatprep.subr.mxu0 0.0
      %2897 = vmatpush1.msra.mxu0 0.0
      %2898 = vmatprep.subr.mxu0 0.0
      %2899 = vmatpush1.msra.mxu0 0.0
      %2900 = vmatprep.subr.mxu0 0.0
      %2901 = vmatpush1.msra.mxu0 0.0
      %2902 = vmatprep.subr.mxu0 0.0
      %2903 = vmatpush1.msra.mxu0 0.0
      %2904 = vmatprep.mubr.f32.mxu0 0.0
      %2905 = vmatmul.mubr.f32.gmra.mrb[0].mxu0 %v2752
      %v2906 = vpop.f32.mrb[0].mxu0
      %v2907 = vadd.f32 0.0, %v2906
      %v2908 = vpop.f32.mrb[0].mxu0
      %2909 = vmatprep.mubr.f32.mxu0 0.0
      %2910 = vmatmul.mubr.f32.gmra.mrb[0].mxu0 %v2755
      %v2911 = vpop.f32.mrb[0].mxu0
      %v2912 = vadd.f32 0.0, %v2911
      %v2913 = vpop.f32.mrb[0].mxu0
      %2914 = vdwg.mxu0
      %v2916 = vsel %vm2456, %v2723, 0
      %v2919 = vsel %vm2456, %v2724, 0
      %v2921 = vsel %vm2463, %v2719, 0
      %v2923 = vsel %vm2463, %v2711, 0
      %v2925 = vsel %vm2463, %v2722, 0
      %2927 = vmatprep.subr.mxu0 %v2709
      %2928 = vmatpush1.msra.mxu0 %v2718
      %2929 = vmatprep.subr.mxu0 %v2923
      %2930 = vmatpush1.msra.mxu0 %v2921
      %2931 = vmatprep.subr.mxu0 0.0
      %2932 = vmatpush1.msra.mxu0 0.0
      %2933 = vmatprep.subr.mxu0 0.0
      %2934 = vmatpush1.msra.mxu0 0.0
      %2935 = vmatprep.subr.mxu0 0.0
      %2936 = vmatpush1.msra.mxu0 0.0
      %2937 = vmatprep.subr.mxu0 0.0
      %2938 = vmatpush1.msra.mxu0 0.0
      %2939 = vmatprep.subr.mxu0 0.0
      %2940 = vmatpush1.msra.mxu0 0.0
      %2941 = vmatprep.subr.mxu0 0.0
      %2942 = vmatpush1.msra.mxu0 0.0
      %2943 = vmatprep.subr.mxu0 0.0
      %2944 = vmatpush1.msra.mxu0 0.0
      %2945 = vmatprep.subr.mxu0 0.0
      %2946 = vmatpush1.msra.mxu0 0.0
      %2947 = vmatprep.subr.mxu0 0.0
      %2948 = vmatpush1.msra.mxu0 0.0
      %2949 = vmatprep.subr.mxu0 0.0
      %2950 = vmatpush1.msra.mxu0 0.0
      %2951 = vmatprep.subr.mxu0 0.0
      %2952 = vmatpush1.msra.mxu0 0.0
      %2953 = vmatprep.subr.mxu0 0.0
      %2954 = vmatpush1.msra.mxu0 0.0
      %2955 = vmatprep.subr.mxu0 0.0
      %2956 = vmatpush1.msra.mxu0 0.0
      %2957 = vmatprep.subr.mxu0 0.0
      %2958 = vmatpush1.msra.mxu0 0.0
      %2959 = vmatprep.subr.mxu0 0.0
      %2960 = vmatpush1.msra.mxu0 0.0
      %2961 = vmatprep.subr.mxu0 0.0
      %2962 = vmatpush1.msra.mxu0 0.0
      %2963 = vmatprep.subr.mxu0 0.0
      %2964 = vmatpush1.msra.mxu0 0.0
      %2965 = vmatprep.subr.mxu0 0.0
      %2966 = vmatpush1.msra.mxu0 0.0
      %2967 = vmatprep.subr.mxu0 0.0
      %2968 = vmatpush1.msra.mxu0 0.0
      %2969 = vmatprep.subr.mxu0 0.0
      %2970 = vmatpush1.msra.mxu0 0.0
      %2971 = vmatprep.subr.mxu0 0.0
      %2972 = vmatpush1.msra.mxu0 0.0
      %2973 = vmatprep.subr.mxu0 0.0
      %2974 = vmatpush1.msra.mxu0 0.0
      %2975 = vmatprep.subr.mxu0 0.0
      %2976 = vmatpush1.msra.mxu0 0.0
      %2977 = vmatprep.subr.mxu0 0.0
      %2978 = vmatpush1.msra.mxu0 0.0
      %2979 = vmatprep.subr.mxu0 0.0
      %2980 = vmatpush1.msra.mxu0 0.0
      %2981 = vmatprep.subr.mxu0 0.0
      %2982 = vmatpush1.msra.mxu0 0.0
      %2983 = vmatprep.subr.mxu0 0.0
      %2984 = vmatpush1.msra.mxu0 0.0
      %2985 = vmatprep.subr.mxu0 0.0
      %2986 = vmatpush1.msra.mxu0 0.0
      %2987 = vmatprep.subr.mxu0 0.0
      %2988 = vmatpush1.msra.mxu0 0.0
      %2989 = vmatprep.subr.mxu0 0.0
      %2990 = vmatpush1.msra.mxu0 0.0
      %2991 = vmatprep.mubr.f32.mxu0 0.0
      %2992 = vmatmul.mubr.f32.gmra.mrb[0].mxu0 %v2916
      %v2993 = vpop.f32.mrb[0].mxu0
      %v2994 = vadd.f32 %v2830, %v2993
      %v2995 = vpop.f32.mrb[0].mxu0
      %v2996 = vadd.f32 %v2832, %v2995
      %2997 = vmatprep.mubr.f32.mxu0 0.0
      %2998 = vmatmul.mubr.f32.gmra.mrb[0].mxu0 %v2919
      %v2999 = vpop.f32.mrb[0].mxu0
      %v3000 = vadd.f32 %v2836, %v2999
      %v3001 = vpop.f32.mrb[0].mxu0
      %v3002 = vadd.f32 %v2838, %v3001
      %3003 = vdwg.mxu0
      %3004 = vmatprep.subr.mxu0 0.0
      %3005 = vmatpush1.msra.mxu0 %v2721
      %3006 = vmatprep.subr.mxu0 0.0
      %3007 = vmatpush1.msra.mxu0 %v2925
      %3008 = vmatprep.subr.mxu0 0.0
      %3009 = vmatpush1.msra.mxu0 0.0
      %3010 = vmatprep.subr.mxu0 0.0
      %3011 = vmatpush1.msra.mxu0 0.0
      %3012 = vmatprep.subr.mxu0 0.0
      %3013 = vmatpush1.msra.mxu0 0.0
      %3014 = vmatprep.subr.mxu0 0.0
      %3015 = vmatpush1.msra.mxu0 0.0
      %3016 = vmatprep.subr.mxu0 0.0
      %3017 = vmatpush1.msra.mxu0 0.0
      %3018 = vmatprep.subr.mxu0 0.0
      %3019 = vmatpush1.msra.mxu0 0.0
      %3020 = vmatprep.subr.mxu0 0.0
      %3021 = vmatpush1.msra.mxu0 0.0
      %3022 = vmatprep.subr.mxu0 0.0
      %3023 = vmatpush1.msra.mxu0 0.0
      %3024 = vmatprep.subr.mxu0 0.0
      %3025 = vmatpush1.msra.mxu0 0.0
      %3026 = vmatprep.subr.mxu0 0.0
      %3027 = vmatpush1.msra.mxu0 0.0
      %3028 = vmatprep.subr.mxu0 0.0
      %3029 = vmatpush1.msra.mxu0 0.0
      %3030 = vmatprep.subr.mxu0 0.0
      %3031 = vmatpush1.msra.mxu0 0.0
      %3032 = vmatprep.subr.mxu0 0.0
      %3033 = vmatpush1.msra.mxu0 0.0
      %3034 = vmatprep.subr.mxu0 0.0
      %3035 = vmatpush1.msra.mxu0 0.0
      %3036 = vmatprep.subr.mxu0 0.0
      %3037 = vmatpush1.msra.mxu0 0.0
      %3038 = vmatprep.subr.mxu0 0.0
      %3039 = vmatpush1.msra.mxu0 0.0
      %3040 = vmatprep.subr.mxu0 0.0
      %3041 = vmatpush1.msra.mxu0 0.0
      %3042 = vmatprep.subr.mxu0 0.0
      %3043 = vmatpush1.msra.mxu0 0.0
      %3044 = vmatprep.subr.mxu0 0.0
      %3045 = vmatpush1.msra.mxu0 0.0
      %3046 = vmatprep.subr.mxu0 0.0
      %3047 = vmatpush1.msra.mxu0 0.0
      %3048 = vmatprep.subr.mxu0 0.0
      %3049 = vmatpush1.msra.mxu0 0.0
      %3050 = vmatprep.subr.mxu0 0.0
      %3051 = vmatpush1.msra.mxu0 0.0
      %3052 = vmatprep.subr.mxu0 0.0
      %3053 = vmatpush1.msra.mxu0 0.0
      %3054 = vmatprep.subr.mxu0 0.0
      %3055 = vmatpush1.msra.mxu0 0.0
      %3056 = vmatprep.subr.mxu0 0.0
      %3057 = vmatpush1.msra.mxu0 0.0
      %3058 = vmatprep.subr.mxu0 0.0
      %3059 = vmatpush1.msra.mxu0 0.0
      %3060 = vmatprep.subr.mxu0 0.0
      %3061 = vmatpush1.msra.mxu0 0.0
      %3062 = vmatprep.subr.mxu0 0.0
      %3063 = vmatpush1.msra.mxu0 0.0
      %3064 = vmatprep.subr.mxu0 0.0
      %3065 = vmatpush1.msra.mxu0 0.0
      %3066 = vmatprep.subr.mxu0 0.0
      %3067 = vmatpush1.msra.mxu0 0.0
      %3068 = vmatprep.mubr.f32.mxu0 0.0
      %3069 = vmatmul.mubr.f32.gmra.mrb[0].mxu0 %v2916
      %v3070 = vpop.f32.mrb[0].mxu0
      %v3071 = vadd.f32 %v2907, %v3070
      %v3072 = vpop.f32.mrb[0].mxu0
      %3073 = vmatprep.mubr.f32.mxu0 0.0
      %3074 = vmatmul.mubr.f32.gmra.mrb[0].mxu0 %v2919
      %v3075 = vpop.f32.mrb[0].mxu0
      %v3076 = vadd.f32 %v2912, %v3075
      %v3077 = vpop.f32.mrb[0].mxu0
      %3078 = vdwg.mxu0
      %s3079 = scalar_lea.vmem %s3, 32
      %v3080 = vld [vmem:[%s3079] sm:$0xff]
      %v3081 = vld [vmem:[%s3079 + $0x8] sm:$0xf]
      %3082 = vrot.lane.b32.xlu0 %v2718, 126
      %v3083 = vpop.permute.xlu0 %3082
      %3084 = vrot.lane.b32.xlu0 %v2709, 126
      %v3085 = vpop.permute.xlu0 %3084
      %3086 = vrot.lane.b32.xlu0 %v2721, 126
      %v3087 = vpop.permute.xlu0 %3086
      %3088 = vrot.lane.b32.xlu0 %v2719, 126
      %v3089 = vpop.permute.xlu0 %3088
      %3090 = vrot.lane.b32.xlu0 %v2711, 126
      %v3091 = vpop.permute.xlu0 %3090
      %3092 = vrot.lane.b32.xlu0 %v2722, 126
      %v3093 = vpop.permute.xlu0 %3092
      %v3094 = vsel %vm1038, %v3083, %v3085
      %v3095 = vsel %vm1038, %v3085, %v3087
      %v3096 = vsel %vm1038, %v3089, %v3091
      %v3097 = vsel %vm1038, %v3091, %v3093
      %v3102 = vsel %vm2456, %v3080, 0
      %v3105 = vsel %vm2456, %v3081, 0
      %v3107 = vsel %vm2463, %v3096, 0
      %v3109 = vsel %vm2463, %v3097, 0
      %v3111 = vsel %vm2463, %v3093, 0
      %3113 = vmatprep.subr.mxu0 %v3095
      %3114 = vmatpush1.msra.mxu0 %v3094
      %3115 = vmatprep.subr.mxu0 %v3109
      %3116 = vmatpush1.msra.mxu0 %v3107
      %3117 = vmatprep.subr.mxu0 0.0
      %3118 = vmatpush1.msra.mxu0 0.0
      %3119 = vmatprep.subr.mxu0 0.0
      %3120 = vmatpush1.msra.mxu0 0.0
      %3121 = vmatprep.subr.mxu0 0.0
      %3122 = vmatpush1.msra.mxu0 0.0
      %3123 = vmatprep.subr.mxu0 0.0
      %3124 = vmatpush1.msra.mxu0 0.0
      %3125 = vmatprep.subr.mxu0 0.0
      %3126 = vmatpush1.msra.mxu0 0.0
      %3127 = vmatprep.subr.mxu0 0.0
      %3128 = vmatpush1.msra.mxu0 0.0
      %3129 = vmatprep.subr.mxu0 0.0
      %3130 = vmatpush1.msra.mxu0 0.0
      %3131 = vmatprep.subr.mxu0 0.0
      %3132 = vmatpush1.msra.mxu0 0.0
      %3133 = vmatprep.subr.mxu0 0.0
      %3134 = vmatpush1.msra.mxu0 0.0
      %3135 = vmatprep.subr.mxu0 0.0
      %3136 = vmatpush1.msra.mxu0 0.0
      %3137 = vmatprep.subr.mxu0 0.0
      %3138 = vmatpush1.msra.mxu0 0.0
      %3139 = vmatprep.subr.mxu0 0.0
      %3140 = vmatpush1.msra.mxu0 0.0
      %3141 = vmatprep.subr.mxu0 0.0
      %3142 = vmatpush1.msra.mxu0 0.0
      %3143 = vmatprep.subr.mxu0 0.0
      %3144 = vmatpush1.msra.mxu0 0.0
      %3145 = vmatprep.subr.mxu0 0.0
      %3146 = vmatpush1.msra.mxu0 0.0
      %3147 = vmatprep.subr.mxu0 0.0
      %3148 = vmatpush1.msra.mxu0 0.0
      %3149 = vmatprep.subr.mxu0 0.0
      %3150 = vmatpush1.msra.mxu0 0.0
      %3151 = vmatprep.subr.mxu0 0.0
      %3152 = vmatpush1.msra.mxu0 0.0
      %3153 = vmatprep.subr.mxu0 0.0
      %3154 = vmatpush1.msra.mxu0 0.0
      %3155 = vmatprep.subr.mxu0 0.0
      %3156 = vmatpush1.msra.mxu0 0.0
      %3157 = vmatprep.subr.mxu0 0.0
      %3158 = vmatpush1.msra.mxu0 0.0
      %3159 = vmatprep.subr.mxu0 0.0
      %3160 = vmatpush1.msra.mxu0 0.0
      %3161 = vmatprep.subr.mxu0 0.0
      %3162 = vmatpush1.msra.mxu0 0.0
      %3163 = vmatprep.subr.mxu0 0.0
      %3164 = vmatpush1.msra.mxu0 0.0
      %3165 = vmatprep.subr.mxu0 0.0
      %3166 = vmatpush1.msra.mxu0 0.0
      %3167 = vmatprep.subr.mxu0 0.0
      %3168 = vmatpush1.msra.mxu0 0.0
      %3169 = vmatprep.subr.mxu0 0.0
      %3170 = vmatpush1.msra.mxu0 0.0
      %3171 = vmatprep.subr.mxu0 0.0
      %3172 = vmatpush1.msra.mxu0 0.0
      %3173 = vmatprep.subr.mxu0 0.0
      %3174 = vmatpush1.msra.mxu0 0.0
      %3175 = vmatprep.subr.mxu0 0.0
      %3176 = vmatpush1.msra.mxu0 0.0
      %3177 = vmatprep.mubr.f32.mxu0 0.0
      %3178 = vmatmul.mubr.f32.gmra.mrb[0].mxu0 %v3102
      %v3179 = vpop.f32.mrb[0].mxu0
      %v3180 = vadd.f32 0.0, %v3179
      %v3181 = vpop.f32.mrb[0].mxu0
      %v3182 = vadd.f32 0.0, %v3181
      %3183 = vmatprep.mubr.f32.mxu0 0.0
      %3184 = vmatmul.mubr.f32.gmra.mrb[0].mxu0 %v3105
      %v3185 = vpop.f32.mrb[0].mxu0
      %v3186 = vadd.f32 0.0, %v3185
      %v3187 = vpop.f32.mrb[0].mxu0
      %v3188 = vadd.f32 0.0, %v3187
      %3189 = vdwg.mxu0
      %3190 = vmatprep.subr.mxu0 0.0
      %3191 = vmatpush1.msra.mxu0 %v3087
      %3192 = vmatprep.subr.mxu0 0.0
      %3193 = vmatpush1.msra.mxu0 %v3111
      %3194 = vmatprep.subr.mxu0 0.0
      %3195 = vmatpush1.msra.mxu0 0.0
      %3196 = vmatprep.subr.mxu0 0.0
      %3197 = vmatpush1.msra.mxu0 0.0
      %3198 = vmatprep.subr.mxu0 0.0
      %3199 = vmatpush1.msra.mxu0 0.0
      %3200 = vmatprep.subr.mxu0 0.0
      %3201 = vmatpush1.msra.mxu0 0.0
      %3202 = vmatprep.subr.mxu0 0.0
      %3203 = vmatpush1.msra.mxu0 0.0
      %3204 = vmatprep.subr.mxu0 0.0
      %3205 = vmatpush1.msra.mxu0 0.0
      %3206 = vmatprep.subr.mxu0 0.0
      %3207 = vmatpush1.msra.mxu0 0.0
      %3208 = vmatprep.subr.mxu0 0.0
      %3209 = vmatpush1.msra.mxu0 0.0
      %3210 = vmatprep.subr.mxu0 0.0
      %3211 = vmatpush1.msra.mxu0 0.0
      %3212 = vmatprep.subr.mxu0 0.0
      %3213 = vmatpush1.msra.mxu0 0.0
      %3214 = vmatprep.subr.mxu0 0.0
      %3215 = vmatpush1.msra.mxu0 0.0
      %3216 = vmatprep.subr.mxu0 0.0
      %3217 = vmatpush1.msra.mxu0 0.0
      %3218 = vmatprep.subr.mxu0 0.0
      %3219 = vmatpush1.msra.mxu0 0.0
      %3220 = vmatprep.subr.mxu0 0.0
      %3221 = vmatpush1.msra.mxu0 0.0
      %3222 = vmatprep.subr.mxu0 0.0
      %3223 = vmatpush1.msra.mxu0 0.0
      %3224 = vmatprep.subr.mxu0 0.0
      %3225 = vmatpush1.msra.mxu0 0.0
      %3226 = vmatprep.subr.mxu0 0.0
      %3227 = vmatpush1.msra.mxu0 0.0
      %3228 = vmatprep.subr.mxu0 0.0
      %3229 = vmatpush1.msra.mxu0 0.0
      %3230 = vmatprep.subr.mxu0 0.0
      %3231 = vmatpush1.msra.mxu0 0.0
      %3232 = vmatprep.subr.mxu0 0.0
      %3233 = vmatpush1.msra.mxu0 0.0
      %3234 = vmatprep.subr.mxu0 0.0
      %3235 = vmatpush1.msra.mxu0 0.0
      %3236 = vmatprep.subr.mxu0 0.0
      %3237 = vmatpush1.msra.mxu0 0.0
      %3238 = vmatprep.subr.mxu0 0.0
      %3239 = vmatpush1.msra.mxu0 0.0
      %3240 = vmatprep.subr.mxu0 0.0
      %3241 = vmatpush1.msra.mxu0 0.0
      %3242 = vmatprep.subr.mxu0 0.0
      %3243 = vmatpush1.msra.mxu0 0.0
      %3244 = vmatprep.subr.mxu0 0.0
      %3245 = vmatpush1.msra.mxu0 0.0
      %3246 = vmatprep.subr.mxu0 0.0
      %3247 = vmatpush1.msra.mxu0 0.0
      %3248 = vmatprep.subr.mxu0 0.0
      %3249 = vmatpush1.msra.mxu0 0.0
      %3250 = vmatprep.subr.mxu0 0.0
      %3251 = vmatpush1.msra.mxu0 0.0
      %3252 = vmatprep.subr.mxu0 0.0
      %3253 = vmatpush1.msra.mxu0 0.0
      %3254 = vmatprep.mubr.f32.mxu0 0.0
      %3255 = vmatmul.mubr.f32.gmra.mrb[0].mxu0 %v3102
      %v3256 = vpop.f32.mrb[0].mxu0
      %v3257 = vadd.f32 0.0, %v3256
      %v3258 = vpop.f32.mrb[0].mxu0
      %3259 = vmatprep.mubr.f32.mxu0 0.0
      %3260 = vmatmul.mubr.f32.gmra.mrb[0].mxu0 %v3105
      %v3261 = vpop.f32.mrb[0].mxu0
      %v3262 = vadd.f32 0.0, %v3261
      %v3263 = vpop.f32.mrb[0].mxu0
      %3264 = vdwg.mxu0
      %v3265 = vadd.f32 %v2994, %v3180
      %v3266 = vadd.f32 %v2996, %v3182
      %v3267 = vadd.f32 %v3071, %v3257
      %v3268 = vadd.f32 %v3000, %v3186
      %v3269 = vadd.f32 %v3002, %v3188
      %v3270 = vadd.f32 %v3076, %v3262
      %s3271 = scalar_lea.vmem %s3, 48
      %v3272 = vld [vmem:[%s3271] sm:$0xff]
      %v3273 = vld [vmem:[%s3271 + $0x8] sm:$0xf]
      %3274 = vrot.lane.b32.xlu0 %v2718, 110
      %v3275 = vpop.permute.xlu0 %3274
      %3276 = vrot.lane.b32.xlu0 %v2709, 110
      %v3277 = vpop.permute.xlu0 %3276
      %3278 = vrot.lane.b32.xlu0 %v2721, 110
      %v3279 = vpop.permute.xlu0 %3278
      %3280 = vrot.lane.b32.xlu0 %v2719, 110
      %v3281 = vpop.permute.xlu0 %3280
      %3282 = vrot.lane.b32.xlu0 %v2711, 110
      %v3283 = vpop.permute.xlu0 %3282
      %3284 = vrot.lane.b32.xlu0 %v2722, 110
      %v3285 = vpop.permute.xlu0 %3284
      %v3286 = vsel %vm1239, %v3275, %v3277
      %v3287 = vsel %vm1239, %v3277, %v3279
      %v3288 = vsel %vm1239, %v3281, %v3283
      %v3289 = vsel %vm1239, %v3283, %v3285
      %v3294 = vsel %vm2456, %v3272, 0
      %v3297 = vsel %vm2456, %v3273, 0
      %v3299 = vsel %vm2463, %v3288, 0
      %v3301 = vsel %vm2463, %v3289, 0
      %v3303 = vsel %vm2463, %v3285, 0
      %3305 = vmatprep.subr.mxu0 %v3287
      %3306 = vmatpush1.msra.mxu0 %v3286
      %3307 = vmatprep.subr.mxu0 %v3301
      %3308 = vmatpush1.msra.mxu0 %v3299
      %3309 = vmatprep.subr.mxu0 0.0
      %3310 = vmatpush1.msra.mxu0 0.0
      %3311 = vmatprep.subr.mxu0 0.0
      %3312 = vmatpush1.msra.mxu0 0.0
      %3313 = vmatprep.subr.mxu0 0.0
      %3314 = vmatpush1.msra.mxu0 0.0
      %3315 = vmatprep.subr.mxu0 0.0
      %3316 = vmatpush1.msra.mxu0 0.0
      %3317 = vmatprep.subr.mxu0 0.0
      %3318 = vmatpush1.msra.mxu0 0.0
      %3319 = vmatprep.subr.mxu0 0.0
      %3320 = vmatpush1.msra.mxu0 0.0
      %3321 = vmatprep.subr.mxu0 0.0
      %3322 = vmatpush1.msra.mxu0 0.0
      %3323 = vmatprep.subr.mxu0 0.0
      %3324 = vmatpush1.msra.mxu0 0.0
      %3325 = vmatprep.subr.mxu0 0.0
      %3326 = vmatpush1.msra.mxu0 0.0
      %3327 = vmatprep.subr.mxu0 0.0
      %3328 = vmatpush1.msra.mxu0 0.0
      %3329 = vmatprep.subr.mxu0 0.0
      %3330 = vmatpush1.msra.mxu0 0.0
      %3331 = vmatprep.subr.mxu0 0.0
      %3332 = vmatpush1.msra.mxu0 0.0
      %3333 = vmatprep.subr.mxu0 0.0
      %3334 = vmatpush1.msra.mxu0 0.0
      %3335 = vmatprep.subr.mxu0 0.0
      %3336 = vmatpush1.msra.mxu0 0.0
      %3337 = vmatprep.subr.mxu0 0.0
      %3338 = vmatpush1.msra.mxu0 0.0
      %3339 = vmatprep.subr.mxu0 0.0
      %3340 = vmatpush1.msra.mxu0 0.0
      %3341 = vmatprep.subr.mxu0 0.0
      %3342 = vmatpush1.msra.mxu0 0.0
      %3343 = vmatprep.subr.mxu0 0.0
      %3344 = vmatpush1.msra.mxu0 0.0
      %3345 = vmatprep.subr.mxu0 0.0
      %3346 = vmatpush1.msra.mxu0 0.0
      %3347 = vmatprep.subr.mxu0 0.0
      %3348 = vmatpush1.msra.mxu0 0.0
      %3349 = vmatprep.subr.mxu0 0.0
      %3350 = vmatpush1.msra.mxu0 0.0
      %3351 = vmatprep.subr.mxu0 0.0
      %3352 = vmatpush1.msra.mxu0 0.0
      %3353 = vmatprep.subr.mxu0 0.0
      %3354 = vmatpush1.msra.mxu0 0.0
      %3355 = vmatprep.subr.mxu0 0.0
      %3356 = vmatpush1.msra.mxu0 0.0
      %3357 = vmatprep.subr.mxu0 0.0
      %3358 = vmatpush1.msra.mxu0 0.0
      %3359 = vmatprep.subr.mxu0 0.0
      %3360 = vmatpush1.msra.mxu0 0.0
      %3361 = vmatprep.subr.mxu0 0.0
      %3362 = vmatpush1.msra.mxu0 0.0
      %3363 = vmatprep.subr.mxu0 0.0
      %3364 = vmatpush1.msra.mxu0 0.0
      %3365 = vmatprep.subr.mxu0 0.0
      %3366 = vmatpush1.msra.mxu0 0.0
      %3367 = vmatprep.subr.mxu0 0.0
      %3368 = vmatpush1.msra.mxu0 0.0
      %3369 = vmatprep.mubr.f32.mxu0 0.0
      %3370 = vmatmul.mubr.f32.gmra.mrb[0].mxu0 %v3294
      %v3371 = vpop.f32.mrb[0].mxu0
      %v3372 = vadd.f32 0.0, %v3371
      %v3373 = vpop.f32.mrb[0].mxu0
      %v3374 = vadd.f32 0.0, %v3373
      %3375 = vmatprep.mubr.f32.mxu0 0.0
      %3376 = vmatmul.mubr.f32.gmra.mrb[0].mxu0 %v3297
      %v3377 = vpop.f32.mrb[0].mxu0
      %v3378 = vadd.f32 0.0, %v3377
      %v3379 = vpop.f32.mrb[0].mxu0
      %v3380 = vadd.f32 0.0, %v3379
      %3381 = vdwg.mxu0
      %3382 = vmatprep.subr.mxu0 0.0
      %3383 = vmatpush1.msra.mxu0 %v3279
      %3384 = vmatprep.subr.mxu0 0.0
      %3385 = vmatpush1.msra.mxu0 %v3303
      %3386 = vmatprep.subr.mxu0 0.0
      %3387 = vmatpush1.msra.mxu0 0.0
      %3388 = vmatprep.subr.mxu0 0.0
      %3389 = vmatpush1.msra.mxu0 0.0
      %3390 = vmatprep.subr.mxu0 0.0
      %3391 = vmatpush1.msra.mxu0 0.0
      %3392 = vmatprep.subr.mxu0 0.0
      %3393 = vmatpush1.msra.mxu0 0.0
      %3394 = vmatprep.subr.mxu0 0.0
      %3395 = vmatpush1.msra.mxu0 0.0
      %3396 = vmatprep.subr.mxu0 0.0
      %3397 = vmatpush1.msra.mxu0 0.0
      %3398 = vmatprep.subr.mxu0 0.0
      %3399 = vmatpush1.msra.mxu0 0.0
      %3400 = vmatprep.subr.mxu0 0.0
      %3401 = vmatpush1.msra.mxu0 0.0
      %3402 = vmatprep.subr.mxu0 0.0
      %3403 = vmatpush1.msra.mxu0 0.0
      %3404 = vmatprep.subr.mxu0 0.0
      %3405 = vmatpush1.msra.mxu0 0.0
      %3406 = vmatprep.subr.mxu0 0.0
      %3407 = vmatpush1.msra.mxu0 0.0
      %3408 = vmatprep.subr.mxu0 0.0
      %3409 = vmatpush1.msra.mxu0 0.0
      %3410 = vmatprep.subr.mxu0 0.0
      %3411 = vmatpush1.msra.mxu0 0.0
      %3412 = vmatprep.subr.mxu0 0.0
      %3413 = vmatpush1.msra.mxu0 0.0
      %3414 = vmatprep.subr.mxu0 0.0
      %3415 = vmatpush1.msra.mxu0 0.0
      %3416 = vmatprep.subr.mxu0 0.0
      %3417 = vmatpush1.msra.mxu0 0.0
      %3418 = vmatprep.subr.mxu0 0.0
      %3419 = vmatpush1.msra.mxu0 0.0
      %3420 = vmatprep.subr.mxu0 0.0
      %3421 = vmatpush1.msra.mxu0 0.0
      %3422 = vmatprep.subr.mxu0 0.0
      %3423 = vmatpush1.msra.mxu0 0.0
      %3424 = vmatprep.subr.mxu0 0.0
      %3425 = vmatpush1.msra.mxu0 0.0
      %3426 = vmatprep.subr.mxu0 0.0
      %3427 = vmatpush1.msra.mxu0 0.0
      %3428 = vmatprep.subr.mxu0 0.0
      %3429 = vmatpush1.msra.mxu0 0.0
      %3430 = vmatprep.subr.mxu0 0.0
      %3431 = vmatpush1.msra.mxu0 0.0
      %3432 = vmatprep.subr.mxu0 0.0
      %3433 = vmatpush1.msra.mxu0 0.0
      %3434 = vmatprep.subr.mxu0 0.0
      %3435 = vmatpush1.msra.mxu0 0.0
      %3436 = vmatprep.subr.mxu0 0.0
      %3437 = vmatpush1.msra.mxu0 0.0
      %3438 = vmatprep.subr.mxu0 0.0
      %3439 = vmatpush1.msra.mxu0 0.0
      %3440 = vmatprep.subr.mxu0 0.0
      %3441 = vmatpush1.msra.mxu0 0.0
      %3442 = vmatprep.subr.mxu0 0.0
      %3443 = vmatpush1.msra.mxu0 0.0
      %3444 = vmatprep.subr.mxu0 0.0
      %3445 = vmatpush1.msra.mxu0 0.0
      %3446 = vmatprep.mubr.f32.mxu0 0.0
      %3447 = vmatmul.mubr.f32.gmra.mrb[0].mxu0 %v3294
      %v3448 = vpop.f32.mrb[0].mxu0
      %v3449 = vadd.f32 0.0, %v3448
      %v3450 = vpop.f32.mrb[0].mxu0
      %3451 = vmatprep.mubr.f32.mxu0 0.0
      %3452 = vmatmul.mubr.f32.gmra.mrb[0].mxu0 %v3297
      %v3453 = vpop.f32.mrb[0].mxu0
      %v3454 = vadd.f32 0.0, %v3453
      %v3455 = vpop.f32.mrb[0].mxu0
      %3456 = vdwg.mxu0
      %v3457 = vadd.f32 %v3265, %v3372
      %v3458 = vadd.f32 %v3266, %v3374
      %v3459 = vadd.f32 %v3267, %v3449
      %v3460 = vadd.f32 %v3268, %v3378
      %v3461 = vadd.f32 %v3269, %v3380
      %v3462 = vadd.f32 %v3270, %v3454
      %s3463 = scalar_lea.vmem %s3, 64
      %v3464 = vld [vmem:[%s3463] sm:$0xff]
      %v3465 = vld [vmem:[%s3463 + $0x8] sm:$0xf]
      %3466 = vrot.lane.b32.xlu0 %v2718, 109
      %v3467 = vpop.permute.xlu0 %3466
      %3468 = vrot.lane.b32.xlu0 %v2709, 109
      %v3469 = vpop.permute.xlu0 %3468
      %3470 = vrot.lane.b32.xlu0 %v2721, 109
      %v3471 = vpop.permute.xlu0 %3470
      %3472 = vrot.lane.b32.xlu0 %v2719, 109
      %v3473 = vpop.permute.xlu0 %3472
      %3474 = vrot.lane.b32.xlu0 %v2711, 109
      %v3475 = vpop.permute.xlu0 %3474
      %3476 = vrot.lane.b32.xlu0 %v2722, 109
      %v3477 = vpop.permute.xlu0 %3476
      %v3478 = vsel %vm1440, %v3467, %v3469
      %v3479 = vsel %vm1440, %v3469, %v3471
      %v3480 = vsel %vm1440, %v3473, %v3475
      %v3481 = vsel %vm1440, %v3475, %v3477
      %v3486 = vsel %vm2456, %v3464, 0
      %v3489 = vsel %vm2456, %v3465, 0
      %v3491 = vsel %vm2463, %v3480, 0
      %v3493 = vsel %vm2463, %v3481, 0
      %v3495 = vsel %vm2463, %v3477, 0
      %3497 = vmatprep.subr.mxu0 %v3479
      %3498 = vmatpush1.msra.mxu0 %v3478
      %3499 = vmatprep.subr.mxu0 %v3493
      %3500 = vmatpush1.msra.mxu0 %v3491
      %3501 = vmatprep.subr.mxu0 0.0
      %3502 = vmatpush1.msra.mxu0 0.0
      %3503 = vmatprep.subr.mxu0 0.0
      %3504 = vmatpush1.msra.mxu0 0.0
      %3505 = vmatprep.subr.mxu0 0.0
      %3506 = vmatpush1.msra.mxu0 0.0
      %3507 = vmatprep.subr.mxu0 0.0
      %3508 = vmatpush1.msra.mxu0 0.0
      %3509 = vmatprep.subr.mxu0 0.0
      %3510 = vmatpush1.msra.mxu0 0.0
      %3511 = vmatprep.subr.mxu0 0.0
      %3512 = vmatpush1.msra.mxu0 0.0
      %3513 = vmatprep.subr.mxu0 0.0
      %3514 = vmatpush1.msra.mxu0 0.0
      %3515 = vmatprep.subr.mxu0 0.0
      %3516 = vmatpush1.msra.mxu0 0.0
      %3517 = vmatprep.subr.mxu0 0.0
      %3518 = vmatpush1.msra.mxu0 0.0
      %3519 = vmatprep.subr.mxu0 0.0
      %3520 = vmatpush1.msra.mxu0 0.0
      %3521 = vmatprep.subr.mxu0 0.0
      %3522 = vmatpush1.msra.mxu0 0.0
      %3523 = vmatprep.subr.mxu0 0.0
      %3524 = vmatpush1.msra.mxu0 0.0
      %3525 = vmatprep.subr.mxu0 0.0
      %3526 = vmatpush1.msra.mxu0 0.0
      %3527 = vmatprep.subr.mxu0 0.0
      %3528 = vmatpush1.msra.mxu0 0.0
      %3529 = vmatprep.subr.mxu0 0.0
      %3530 = vmatpush1.msra.mxu0 0.0
      %3531 = vmatprep.subr.mxu0 0.0
      %3532 = vmatpush1.msra.mxu0 0.0
      %3533 = vmatprep.subr.mxu0 0.0
      %3534 = vmatpush1.msra.mxu0 0.0
      %3535 = vmatprep.subr.mxu0 0.0
      %3536 = vmatpush1.msra.mxu0 0.0
      %3537 = vmatprep.subr.mxu0 0.0
      %3538 = vmatpush1.msra.mxu0 0.0
      %3539 = vmatprep.subr.mxu0 0.0
      %3540 = vmatpush1.msra.mxu0 0.0
      %3541 = vmatprep.subr.mxu0 0.0
      %3542 = vmatpush1.msra.mxu0 0.0
      %3543 = vmatprep.subr.mxu0 0.0
      %3544 = vmatpush1.msra.mxu0 0.0
      %3545 = vmatprep.subr.mxu0 0.0
      %3546 = vmatpush1.msra.mxu0 0.0
      %3547 = vmatprep.subr.mxu0 0.0
      %3548 = vmatpush1.msra.mxu0 0.0
      %3549 = vmatprep.subr.mxu0 0.0
      %3550 = vmatpush1.msra.mxu0 0.0
      %3551 = vmatprep.subr.mxu0 0.0
      %3552 = vmatpush1.msra.mxu0 0.0
      %3553 = vmatprep.subr.mxu0 0.0
      %3554 = vmatpush1.msra.mxu0 0.0
      %3555 = vmatprep.subr.mxu0 0.0
      %3556 = vmatpush1.msra.mxu0 0.0
      %3557 = vmatprep.subr.mxu0 0.0
      %3558 = vmatpush1.msra.mxu0 0.0
      %3559 = vmatprep.subr.mxu0 0.0
      %3560 = vmatpush1.msra.mxu0 0.0
      %3561 = vmatprep.mubr.f32.mxu0 0.0
      %3562 = vmatmul.mubr.f32.gmra.mrb[0].mxu0 %v3486
      %v3563 = vpop.f32.mrb[0].mxu0
      %v3564 = vadd.f32 0.0, %v3563
      %v3565 = vpop.f32.mrb[0].mxu0
      %v3566 = vadd.f32 0.0, %v3565
      %3567 = vmatprep.mubr.f32.mxu0 0.0
      %3568 = vmatmul.mubr.f32.gmra.mrb[0].mxu0 %v3489
      %v3569 = vpop.f32.mrb[0].mxu0
      %v3570 = vadd.f32 0.0, %v3569
      %v3571 = vpop.f32.mrb[0].mxu0
      %v3572 = vadd.f32 0.0, %v3571
      %3573 = vdwg.mxu0
      %3574 = vmatprep.subr.mxu0 0.0
      %3575 = vmatpush1.msra.mxu0 %v3471
      %3576 = vmatprep.subr.mxu0 0.0
      %3577 = vmatpush1.msra.mxu0 %v3495
      %3578 = vmatprep.subr.mxu0 0.0
      %3579 = vmatpush1.msra.mxu0 0.0
      %3580 = vmatprep.subr.mxu0 0.0
      %3581 = vmatpush1.msra.mxu0 0.0
      %3582 = vmatprep.subr.mxu0 0.0
      %3583 = vmatpush1.msra.mxu0 0.0
      %3584 = vmatprep.subr.mxu0 0.0
      %3585 = vmatpush1.msra.mxu0 0.0
      %3586 = vmatprep.subr.mxu0 0.0
      %3587 = vmatpush1.msra.mxu0 0.0
      %3588 = vmatprep.subr.mxu0 0.0
      %3589 = vmatpush1.msra.mxu0 0.0
      %3590 = vmatprep.subr.mxu0 0.0
      %3591 = vmatpush1.msra.mxu0 0.0
      %3592 = vmatprep.subr.mxu0 0.0
      %3593 = vmatpush1.msra.mxu0 0.0
      %3594 = vmatprep.subr.mxu0 0.0
      %3595 = vmatpush1.msra.mxu0 0.0
      %3596 = vmatprep.subr.mxu0 0.0
      %3597 = vmatpush1.msra.mxu0 0.0
      %3598 = vmatprep.subr.mxu0 0.0
      %3599 = vmatpush1.msra.mxu0 0.0
      %3600 = vmatprep.subr.mxu0 0.0
      %3601 = vmatpush1.msra.mxu0 0.0
      %3602 = vmatprep.subr.mxu0 0.0
      %3603 = vmatpush1.msra.mxu0 0.0
      %3604 = vmatprep.subr.mxu0 0.0
      %3605 = vmatpush1.msra.mxu0 0.0
      %3606 = vmatprep.subr.mxu0 0.0
      %3607 = vmatpush1.msra.mxu0 0.0
      %3608 = vmatprep.subr.mxu0 0.0
      %3609 = vmatpush1.msra.mxu0 0.0
      %3610 = vmatprep.subr.mxu0 0.0
      %3611 = vmatpush1.msra.mxu0 0.0
      %3612 = vmatprep.subr.mxu0 0.0
      %3613 = vmatpush1.msra.mxu0 0.0
      %3614 = vmatprep.subr.mxu0 0.0
      %3615 = vmatpush1.msra.mxu0 0.0
      %3616 = vmatprep.subr.mxu0 0.0
      %3617 = vmatpush1.msra.mxu0 0.0
      %3618 = vmatprep.subr.mxu0 0.0
      %3619 = vmatpush1.msra.mxu0 0.0
      %3620 = vmatprep.subr.mxu0 0.0
      %3621 = vmatpush1.msra.mxu0 0.0
      %3622 = vmatprep.subr.mxu0 0.0
      %3623 = vmatpush1.msra.mxu0 0.0
      %3624 = vmatprep.subr.mxu0 0.0
      %3625 = vmatpush1.msra.mxu0 0.0
      %3626 = vmatprep.subr.mxu0 0.0
      %3627 = vmatpush1.msra.mxu0 0.0
      %3628 = vmatprep.subr.mxu0 0.0
      %3629 = vmatpush1.msra.mxu0 0.0
      %3630 = vmatprep.subr.mxu0 0.0
      %3631 = vmatpush1.msra.mxu0 0.0
      %3632 = vmatprep.subr.mxu0 0.0
      %3633 = vmatpush1.msra.mxu0 0.0
      %3634 = vmatprep.subr.mxu0 0.0
      %3635 = vmatpush1.msra.mxu0 0.0
      %3636 = vmatprep.subr.mxu0 0.0
      %3637 = vmatpush1.msra.mxu0 0.0
      %3638 = vmatprep.mubr.f32.mxu0 0.0
      %3639 = vmatmul.mubr.f32.gmra.mrb[0].mxu0 %v3486
      %v3640 = vpop.f32.mrb[0].mxu0
      %v3641 = vadd.f32 0.0, %v3640
      %v3642 = vpop.f32.mrb[0].mxu0
      %3643 = vmatprep.mubr.f32.mxu0 0.0
      %3644 = vmatmul.mubr.f32.gmra.mrb[0].mxu0 %v3489
      %v3645 = vpop.f32.mrb[0].mxu0
      %v3646 = vadd.f32 0.0, %v3645
      %v3647 = vpop.f32.mrb[0].mxu0
      %3648 = vdwg.mxu0
      %v3649 = vadd.f32 %v3457, %v3564
      %v3650 = vadd.f32 %v3458, %v3566
      %v3651 = vadd.f32 %v3459, %v3641
      %v3652 = vadd.f32 %v3460, %v3570
      %v3653 = vadd.f32 %v3461, %v3572
      %v3654 = vadd.f32 %v3462, %v3646
      %s3655 = scalar_lea.vmem %s3, 80
      %v3656 = vld [vmem:[%s3655] sm:$0xff]
      %v3657 = vld [vmem:[%s3655 + $0x8] sm:$0xf]
      %3658 = vrot.lane.b32.xlu0 %v2718, 108
      %v3659 = vpop.permute.xlu0 %3658
      %3660 = vrot.lane.b32.xlu0 %v2709, 108
      %v3661 = vpop.permute.xlu0 %3660
      %3662 = vrot.lane.b32.xlu0 %v2721, 108
      %v3663 = vpop.permute.xlu0 %3662
      %3664 = vrot.lane.b32.xlu0 %v2719, 108
      %v3665 = vpop.permute.xlu0 %3664
      %3666 = vrot.lane.b32.xlu0 %v2711, 108
      %v3667 = vpop.permute.xlu0 %3666
      %3668 = vrot.lane.b32.xlu0 %v2722, 108
      %v3669 = vpop.permute.xlu0 %3668
      %v3670 = vsel %vm1641, %v3659, %v3661
      %v3671 = vsel %vm1641, %v3661, %v3663
      %v3672 = vsel %vm1641, %v3665, %v3667
      %v3673 = vsel %vm1641, %v3667, %v3669
      %v3678 = vsel %vm2456, %v3656, 0
      %v3681 = vsel %vm2456, %v3657, 0
      %v3683 = vsel %vm2463, %v3672, 0
      %v3685 = vsel %vm2463, %v3673, 0
      %v3687 = vsel %vm2463, %v3669, 0
      %3689 = vmatprep.subr.mxu0 %v3671
      %3690 = vmatpush1.msra.mxu0 %v3670
      %3691 = vmatprep.subr.mxu0 %v3685
      %3692 = vmatpush1.msra.mxu0 %v3683
      %3693 = vmatprep.subr.mxu0 0.0
      %3694 = vmatpush1.msra.mxu0 0.0
      %3695 = vmatprep.subr.mxu0 0.0
      %3696 = vmatpush1.msra.mxu0 0.0
      %3697 = vmatprep.subr.mxu0 0.0
      %3698 = vmatpush1.msra.mxu0 0.0
      %3699 = vmatprep.subr.mxu0 0.0
      %3700 = vmatpush1.msra.mxu0 0.0
      %3701 = vmatprep.subr.mxu0 0.0
      %3702 = vmatpush1.msra.mxu0 0.0
      %3703 = vmatprep.subr.mxu0 0.0
      %3704 = vmatpush1.msra.mxu0 0.0
      %3705 = vmatprep.subr.mxu0 0.0
      %3706 = vmatpush1.msra.mxu0 0.0
      %3707 = vmatprep.subr.mxu0 0.0
      %3708 = vmatpush1.msra.mxu0 0.0
      %3709 = vmatprep.subr.mxu0 0.0
      %3710 = vmatpush1.msra.mxu0 0.0
      %3711 = vmatprep.subr.mxu0 0.0
      %3712 = vmatpush1.msra.mxu0 0.0
      %3713 = vmatprep.subr.mxu0 0.0
      %3714 = vmatpush1.msra.mxu0 0.0
      %3715 = vmatprep.subr.mxu0 0.0
      %3716 = vmatpush1.msra.mxu0 0.0
      %3717 = vmatprep.subr.mxu0 0.0
      %3718 = vmatpush1.msra.mxu0 0.0
      %3719 = vmatprep.subr.mxu0 0.0
      %3720 = vmatpush1.msra.mxu0 0.0
      %3721 = vmatprep.subr.mxu0 0.0
      %3722 = vmatpush1.msra.mxu0 0.0
      %3723 = vmatprep.subr.mxu0 0.0
      %3724 = vmatpush1.msra.mxu0 0.0
      %3725 = vmatprep.subr.mxu0 0.0
      %3726 = vmatpush1.msra.mxu0 0.0
      %3727 = vmatprep.subr.mxu0 0.0
      %3728 = vmatpush1.msra.mxu0 0.0
      %3729 = vmatprep.subr.mxu0 0.0
      %3730 = vmatpush1.msra.mxu0 0.0
      %3731 = vmatprep.subr.mxu0 0.0
      %3732 = vmatpush1.msra.mxu0 0.0
      %3733 = vmatprep.subr.mxu0 0.0
      %3734 = vmatpush1.msra.mxu0 0.0
      %3735 = vmatprep.subr.mxu0 0.0
      %3736 = vmatpush1.msra.mxu0 0.0
      %3737 = vmatprep.subr.mxu0 0.0
      %3738 = vmatpush1.msra.mxu0 0.0
      %3739 = vmatprep.subr.mxu0 0.0
      %3740 = vmatpush1.msra.mxu0 0.0
      %3741 = vmatprep.subr.mxu0 0.0
      %3742 = vmatpush1.msra.mxu0 0.0
      %3743 = vmatprep.subr.mxu0 0.0
      %3744 = vmatpush1.msra.mxu0 0.0
      %3745 = vmatprep.subr.mxu0 0.0
      %3746 = vmatpush1.msra.mxu0 0.0
      %3747 = vmatprep.subr.mxu0 0.0
      %3748 = vmatpush1.msra.mxu0 0.0
      %3749 = vmatprep.subr.mxu0 0.0
      %3750 = vmatpush1.msra.mxu0 0.0
      %3751 = vmatprep.subr.mxu0 0.0
      %3752 = vmatpush1.msra.mxu0 0.0
      %3753 = vmatprep.mubr.f32.mxu0 0.0
      %3754 = vmatmul.mubr.f32.gmra.mrb[0].mxu0 %v3678
      %v3755 = vpop.f32.mrb[0].mxu0
      %v3756 = vadd.f32 0.0, %v3755
      %v3757 = vpop.f32.mrb[0].mxu0
      %v3758 = vadd.f32 0.0, %v3757
      %3759 = vmatprep.mubr.f32.mxu0 0.0
      %3760 = vmatmul.mubr.f32.gmra.mrb[0].mxu0 %v3681
      %v3761 = vpop.f32.mrb[0].mxu0
      %v3762 = vadd.f32 0.0, %v3761
      %v3763 = vpop.f32.mrb[0].mxu0
      %v3764 = vadd.f32 0.0, %v3763
      %3765 = vdwg.mxu0
      %3766 = vmatprep.subr.mxu0 0.0
      %3767 = vmatpush1.msra.mxu0 %v3663
      %3768 = vmatprep.subr.mxu0 0.0
      %3769 = vmatpush1.msra.mxu0 %v3687
      %3770 = vmatprep.subr.mxu0 0.0
      %3771 = vmatpush1.msra.mxu0 0.0
      %3772 = vmatprep.subr.mxu0 0.0
      %3773 = vmatpush1.msra.mxu0 0.0
      %3774 = vmatprep.subr.mxu0 0.0
      %3775 = vmatpush1.msra.mxu0 0.0
      %3776 = vmatprep.subr.mxu0 0.0
      %3777 = vmatpush1.msra.mxu0 0.0
      %3778 = vmatprep.subr.mxu0 0.0
      %3779 = vmatpush1.msra.mxu0 0.0
      %3780 = vmatprep.subr.mxu0 0.0
      %3781 = vmatpush1.msra.mxu0 0.0
      %3782 = vmatprep.subr.mxu0 0.0
      %3783 = vmatpush1.msra.mxu0 0.0
      %3784 = vmatprep.subr.mxu0 0.0
      %3785 = vmatpush1.msra.mxu0 0.0
      %3786 = vmatprep.subr.mxu0 0.0
      %3787 = vmatpush1.msra.mxu0 0.0
      %3788 = vmatprep.subr.mxu0 0.0
      %3789 = vmatpush1.msra.mxu0 0.0
      %3790 = vmatprep.subr.mxu0 0.0
      %3791 = vmatpush1.msra.mxu0 0.0
      %3792 = vmatprep.subr.mxu0 0.0
      %3793 = vmatpush1.msra.mxu0 0.0
      %3794 = vmatprep.subr.mxu0 0.0
      %3795 = vmatpush1.msra.mxu0 0.0
      %3796 = vmatprep.subr.mxu0 0.0
      %3797 = vmatpush1.msra.mxu0 0.0
      %3798 = vmatprep.subr.mxu0 0.0
      %3799 = vmatpush1.msra.mxu0 0.0
      %3800 = vmatprep.subr.mxu0 0.0
      %3801 = vmatpush1.msra.mxu0 0.0
      %3802 = vmatprep.subr.mxu0 0.0
      %3803 = vmatpush1.msra.mxu0 0.0
      %3804 = vmatprep.subr.mxu0 0.0
      %3805 = vmatpush1.msra.mxu0 0.0
      %3806 = vmatprep.subr.mxu0 0.0
      %3807 = vmatpush1.msra.mxu0 0.0
      %3808 = vmatprep.subr.mxu0 0.0
      %3809 = vmatpush1.msra.mxu0 0.0
      %3810 = vmatprep.subr.mxu0 0.0
      %3811 = vmatpush1.msra.mxu0 0.0
      %3812 = vmatprep.subr.mxu0 0.0
      %3813 = vmatpush1.msra.mxu0 0.0
      %3814 = vmatprep.subr.mxu0 0.0
      %3815 = vmatpush1.msra.mxu0 0.0
      %3816 = vmatprep.subr.mxu0 0.0
      %3817 = vmatpush1.msra.mxu0 0.0
      %3818 = vmatprep.subr.mxu0 0.0
      %3819 = vmatpush1.msra.mxu0 0.0
      %3820 = vmatprep.subr.mxu0 0.0
      %3821 = vmatpush1.msra.mxu0 0.0
      %3822 = vmatprep.subr.mxu0 0.0
      %3823 = vmatpush1.msra.mxu0 0.0
      %3824 = vmatprep.subr.mxu0 0.0
      %3825 = vmatpush1.msra.mxu0 0.0
      %3826 = vmatprep.subr.mxu0 0.0
      %3827 = vmatpush1.msra.mxu0 0.0
      %3828 = vmatprep.subr.mxu0 0.0
      %3829 = vmatpush1.msra.mxu0 0.0
      %3830 = vmatprep.mubr.f32.mxu0 0.0
      %3831 = vmatmul.mubr.f32.gmra.mrb[0].mxu0 %v3678
      %v3832 = vpop.f32.mrb[0].mxu0
      %v3833 = vadd.f32 0.0, %v3832
      %v3834 = vpop.f32.mrb[0].mxu0
      %3835 = vmatprep.mubr.f32.mxu0 0.0
      %3836 = vmatmul.mubr.f32.gmra.mrb[0].mxu0 %v3681
      %v3837 = vpop.f32.mrb[0].mxu0
      %v3838 = vadd.f32 0.0, %v3837
      %v3839 = vpop.f32.mrb[0].mxu0
      %3840 = vdwg.mxu0
      %v3841 = vadd.f32 %v3649, %v3756
      %v3842 = vadd.f32 %v3650, %v3758
      %v3843 = vadd.f32 %v3651, %v3833
      %v3844 = vadd.f32 %v3652, %v3762
      %v3845 = vadd.f32 %v3653, %v3764
      %v3846 = vadd.f32 %v3654, %v3838
      %s3847 = scalar_lea.vmem %s3, 96
      %v3848 = vld [vmem:[%s3847] sm:$0xff]
      %v3849 = vld [vmem:[%s3847 + $0x8] sm:$0xf]
      %3850 = vrot.lane.b32.xlu0 %v2718, 92
      %v3851 = vpop.permute.xlu0 %3850
      %3852 = vrot.lane.b32.xlu0 %v2709, 92
      %v3853 = vpop.permute.xlu0 %3852
      %3854 = vrot.lane.b32.xlu0 %v2721, 92
      %v3855 = vpop.permute.xlu0 %3854
      %3856 = vrot.lane.b32.xlu0 %v2719, 92
      %v3857 = vpop.permute.xlu0 %3856
      %3858 = vrot.lane.b32.xlu0 %v2711, 92
      %v3859 = vpop.permute.xlu0 %3858
      %3860 = vrot.lane.b32.xlu0 %v2722, 92
      %v3861 = vpop.permute.xlu0 %3860
      %v3862 = vsel %vm1842, %v3851, %v3853
      %v3863 = vsel %vm1842, %v3853, %v3855
      %v3864 = vsel %vm1842, %v3857, %v3859
      %v3865 = vsel %vm1842, %v3859, %v3861
      %v3870 = vsel %vm2456, %v3848, 0
      %v3873 = vsel %vm2456, %v3849, 0
      %v3875 = vsel %vm2463, %v3864, 0
      %v3877 = vsel %vm2463, %v3865, 0
      %v3879 = vsel %vm2463, %v3861, 0
      %3881 = vmatprep.subr.mxu0 %v3863
      %3882 = vmatpush1.msra.mxu0 %v3862
      %3883 = vmatprep.subr.mxu0 %v3877
      %3884 = vmatpush1.msra.mxu0 %v3875
      %3885 = vmatprep.subr.mxu0 0.0
      %3886 = vmatpush1.msra.mxu0 0.0
      %3887 = vmatprep.subr.mxu0 0.0
      %3888 = vmatpush1.msra.mxu0 0.0
      %3889 = vmatprep.subr.mxu0 0.0
      %3890 = vmatpush1.msra.mxu0 0.0
      %3891 = vmatprep.subr.mxu0 0.0
      %3892 = vmatpush1.msra.mxu0 0.0
      %3893 = vmatprep.subr.mxu0 0.0
      %3894 = vmatpush1.msra.mxu0 0.0
      %3895 = vmatprep.subr.mxu0 0.0
      %3896 = vmatpush1.msra.mxu0 0.0
      %3897 = vmatprep.subr.mxu0 0.0
      %3898 = vmatpush1.msra.mxu0 0.0
      %3899 = vmatprep.subr.mxu0 0.0
      %3900 = vmatpush1.msra.mxu0 0.0
      %3901 = vmatprep.subr.mxu0 0.0
      %3902 = vmatpush1.msra.mxu0 0.0
      %3903 = vmatprep.subr.mxu0 0.0
      %3904 = vmatpush1.msra.mxu0 0.0
      %3905 = vmatprep.subr.mxu0 0.0
      %3906 = vmatpush1.msra.mxu0 0.0
      %3907 = vmatprep.subr.mxu0 0.0
      %3908 = vmatpush1.msra.mxu0 0.0
      %3909 = vmatprep.subr.mxu0 0.0
      %3910 = vmatpush1.msra.mxu0 0.0
      %3911 = vmatprep.subr.mxu0 0.0
      %3912 = vmatpush1.msra.mxu0 0.0
      %3913 = vmatprep.subr.mxu0 0.0
      %3914 = vmatpush1.msra.mxu0 0.0
      %3915 = vmatprep.subr.mxu0 0.0
      %3916 = vmatpush1.msra.mxu0 0.0
      %3917 = vmatprep.subr.mxu0 0.0
      %3918 = vmatpush1.msra.mxu0 0.0
      %3919 = vmatprep.subr.mxu0 0.0
      %3920 = vmatpush1.msra.mxu0 0.0
      %3921 = vmatprep.subr.mxu0 0.0
      %3922 = vmatpush1.msra.mxu0 0.0
      %3923 = vmatprep.subr.mxu0 0.0
      %3924 = vmatpush1.msra.mxu0 0.0
      %3925 = vmatprep.subr.mxu0 0.0
      %3926 = vmatpush1.msra.mxu0 0.0
      %3927 = vmatprep.subr.mxu0 0.0
      %3928 = vmatpush1.msra.mxu0 0.0
      %3929 = vmatprep.subr.mxu0 0.0
      %3930 = vmatpush1.msra.mxu0 0.0
      %3931 = vmatprep.subr.mxu0 0.0
      %3932 = vmatpush1.msra.mxu0 0.0
      %3933 = vmatprep.subr.mxu0 0.0
      %3934 = vmatpush1.msra.mxu0 0.0
      %3935 = vmatprep.subr.mxu0 0.0
      %3936 = vmatpush1.msra.mxu0 0.0
      %3937 = vmatprep.subr.mxu0 0.0
      %3938 = vmatpush1.msra.mxu0 0.0
      %3939 = vmatprep.subr.mxu0 0.0
      %3940 = vmatpush1.msra.mxu0 0.0
      %3941 = vmatprep.subr.mxu0 0.0
      %3942 = vmatpush1.msra.mxu0 0.0
      %3943 = vmatprep.subr.mxu0 0.0
      %3944 = vmatpush1.msra.mxu0 0.0
      %3945 = vmatprep.mubr.f32.mxu0 0.0
      %3946 = vmatmul.mubr.f32.gmra.mrb[0].mxu0 %v3870
      %v3947 = vpop.f32.mrb[0].mxu0
      %v3948 = vadd.f32 0.0, %v3947
      %v3949 = vpop.f32.mrb[0].mxu0
      %v3950 = vadd.f32 0.0, %v3949
      %3951 = vmatprep.mubr.f32.mxu0 0.0
      %3952 = vmatmul.mubr.f32.gmra.mrb[0].mxu0 %v3873
      %v3953 = vpop.f32.mrb[0].mxu0
      %v3954 = vadd.f32 0.0, %v3953
      %v3955 = vpop.f32.mrb[0].mxu0
      %v3956 = vadd.f32 0.0, %v3955
      %3957 = vdwg.mxu0
      %3958 = vmatprep.subr.mxu0 0.0
      %3959 = vmatpush1.msra.mxu0 %v3855
      %3960 = vmatprep.subr.mxu0 0.0
      %3961 = vmatpush1.msra.mxu0 %v3879
      %3962 = vmatprep.subr.mxu0 0.0
      %3963 = vmatpush1.msra.mxu0 0.0
      %3964 = vmatprep.subr.mxu0 0.0
      %3965 = vmatpush1.msra.mxu0 0.0
      %3966 = vmatprep.subr.mxu0 0.0
      %3967 = vmatpush1.msra.mxu0 0.0
      %3968 = vmatprep.subr.mxu0 0.0
      %3969 = vmatpush1.msra.mxu0 0.0
      %3970 = vmatprep.subr.mxu0 0.0
      %3971 = vmatpush1.msra.mxu0 0.0
      %3972 = vmatprep.subr.mxu0 0.0
      %3973 = vmatpush1.msra.mxu0 0.0
      %3974 = vmatprep.subr.mxu0 0.0
      %3975 = vmatpush1.msra.mxu0 0.0
      %3976 = vmatprep.subr.mxu0 0.0
      %3977 = vmatpush1.msra.mxu0 0.0
      %3978 = vmatprep.subr.mxu0 0.0
      %3979 = vmatpush1.msra.mxu0 0.0
      %3980 = vmatprep.subr.mxu0 0.0
      %3981 = vmatpush1.msra.mxu0 0.0
      %3982 = vmatprep.subr.mxu0 0.0
      %3983 = vmatpush1.msra.mxu0 0.0
      %3984 = vmatprep.subr.mxu0 0.0
      %3985 = vmatpush1.msra.mxu0 0.0
      %3986 = vmatprep.subr.mxu0 0.0
      %3987 = vmatpush1.msra.mxu0 0.0
      %3988 = vmatprep.subr.mxu0 0.0
      %3989 = vmatpush1.msra.mxu0 0.0
      %3990 = vmatprep.subr.mxu0 0.0
      %3991 = vmatpush1.msra.mxu0 0.0
      %3992 = vmatprep.subr.mxu0 0.0
      %3993 = vmatpush1.msra.mxu0 0.0
      %3994 = vmatprep.subr.mxu0 0.0
      %3995 = vmatpush1.msra.mxu0 0.0
      %3996 = vmatprep.subr.mxu0 0.0
      %3997 = vmatpush1.msra.mxu0 0.0
      %3998 = vmatprep.subr.mxu0 0.0
      %3999 = vmatpush1.msra.mxu0 0.0
      %4000 = vmatprep.subr.mxu0 0.0
      %4001 = vmatpush1.msra.mxu0 0.0
      %4002 = vmatprep.subr.mxu0 0.0
      %4003 = vmatpush1.msra.mxu0 0.0
      %4004 = vmatprep.subr.mxu0 0.0
      %4005 = vmatpush1.msra.mxu0 0.0
      %4006 = vmatprep.subr.mxu0 0.0
      %4007 = vmatpush1.msra.mxu0 0.0
      %4008 = vmatprep.subr.mxu0 0.0
      %4009 = vmatpush1.msra.mxu0 0.0
      %4010 = vmatprep.subr.mxu0 0.0
      %4011 = vmatpush1.msra.mxu0 0.0
      %4012 = vmatprep.subr.mxu0 0.0
      %4013 = vmatpush1.msra.mxu0 0.0
      %4014 = vmatprep.subr.mxu0 0.0
      %4015 = vmatpush1.msra.mxu0 0.0
      %4016 = vmatprep.subr.mxu0 0.0
      %4017 = vmatpush1.msra.mxu0 0.0
      %4018 = vmatprep.subr.mxu0 0.0
      %4019 = vmatpush1.msra.mxu0 0.0
      %4020 = vmatprep.subr.mxu0 0.0
      %4021 = vmatpush1.msra.mxu0 0.0
      %4022 = vmatprep.mubr.f32.mxu0 0.0
      %4023 = vmatmul.mubr.f32.gmra.mrb[0].mxu0 %v3870
      %v4024 = vpop.f32.mrb[0].mxu0
      %v4025 = vadd.f32 0.0, %v4024
      %v4026 = vpop.f32.mrb[0].mxu0
      %4027 = vmatprep.mubr.f32.mxu0 0.0
      %4028 = vmatmul.mubr.f32.gmra.mrb[0].mxu0 %v3873
      %v4029 = vpop.f32.mrb[0].mxu0
      %v4030 = vadd.f32 0.0, %v4029
      %v4031 = vpop.f32.mrb[0].mxu0
      %4032 = vdwg.mxu0
      %v4033 = vadd.f32 %v3841, %v3948
      %v4034 = vadd.f32 %v3842, %v3950
      %v4035 = vadd.f32 %v3843, %v4025
      %v4036 = vadd.f32 %v3844, %v3954
      %v4037 = vadd.f32 %v3845, %v3956
      %v4038 = vadd.f32 %v3846, %v4030
      %s4039 = scalar_lea.vmem %s3, 112
      %v4040 = vld [vmem:[%s4039] sm:$0xff]
      %v4041 = vld [vmem:[%s4039 + $0x8] sm:$0xf]
      %4042 = vrot.lane.b32.xlu0 %v2718, 91
      %v4043 = vpop.permute.xlu0 %4042
      %4044 = vrot.lane.b32.xlu0 %v2709, 91
      %v4045 = vpop.permute.xlu0 %4044
      %4046 = vrot.lane.b32.xlu0 %v2721, 91
      %v4047 = vpop.permute.xlu0 %4046
      %4048 = vrot.lane.b32.xlu0 %v2719, 91
      %v4049 = vpop.permute.xlu0 %4048
      %4050 = vrot.lane.b32.xlu0 %v2711, 91
      %v4051 = vpop.permute.xlu0 %4050
      %4052 = vrot.lane.b32.xlu0 %v2722, 91
      %v4053 = vpop.permute.xlu0 %4052
      %v4054 = vsel %vm2043, %v4043, %v4045
      %v4055 = vsel %vm2043, %v4045, %v4047
      %v4056 = vsel %vm2043, %v4049, %v4051
      %v4057 = vsel %vm2043, %v4051, %v4053
      %v4062 = vsel %vm2456, %v4040, 0
      %v4065 = vsel %vm2456, %v4041, 0
      %v4067 = vsel %vm2463, %v4056, 0
      %v4069 = vsel %vm2463, %v4057, 0
      %v4071 = vsel %vm2463, %v4053, 0
      %4073 = vmatprep.subr.mxu0 %v4055
      %4074 = vmatpush1.msra.mxu0 %v4054
      %4075 = vmatprep.subr.mxu0 %v4069
      %4076 = vmatpush1.msra.mxu0 %v4067
      %4077 = vmatprep.subr.mxu0 0.0
      %4078 = vmatpush1.msra.mxu0 0.0
      %4079 = vmatprep.subr.mxu0 0.0
      %4080 = vmatpush1.msra.mxu0 0.0
      %4081 = vmatprep.subr.mxu0 0.0
      %4082 = vmatpush1.msra.mxu0 0.0
      %4083 = vmatprep.subr.mxu0 0.0
      %4084 = vmatpush1.msra.mxu0 0.0
      %4085 = vmatprep.subr.mxu0 0.0
      %4086 = vmatpush1.msra.mxu0 0.0
      %4087 = vmatprep.subr.mxu0 0.0
      %4088 = vmatpush1.msra.mxu0 0.0
      %4089 = vmatprep.subr.mxu0 0.0
      %4090 = vmatpush1.msra.mxu0 0.0
      %4091 = vmatprep.subr.mxu0 0.0
      %4092 = vmatpush1.msra.mxu0 0.0
      %4093 = vmatprep.subr.mxu0 0.0
      %4094 = vmatpush1.msra.mxu0 0.0
      %4095 = vmatprep.subr.mxu0 0.0
      %4096 = vmatpush1.msra.mxu0 0.0
      %4097 = vmatprep.subr.mxu0 0.0
      %4098 = vmatpush1.msra.mxu0 0.0
      %4099 = vmatprep.subr.mxu0 0.0
      %4100 = vmatpush1.msra.mxu0 0.0
      %4101 = vmatprep.subr.mxu0 0.0
      %4102 = vmatpush1.msra.mxu0 0.0
      %4103 = vmatprep.subr.mxu0 0.0
      %4104 = vmatpush1.msra.mxu0 0.0
      %4105 = vmatprep.subr.mxu0 0.0
      %4106 = vmatpush1.msra.mxu0 0.0
      %4107 = vmatprep.subr.mxu0 0.0
      %4108 = vmatpush1.msra.mxu0 0.0
      %4109 = vmatprep.subr.mxu0 0.0
      %4110 = vmatpush1.msra.mxu0 0.0
      %4111 = vmatprep.subr.mxu0 0.0
      %4112 = vmatpush1.msra.mxu0 0.0
      %4113 = vmatprep.subr.mxu0 0.0
      %4114 = vmatpush1.msra.mxu0 0.0
      %4115 = vmatprep.subr.mxu0 0.0
      %4116 = vmatpush1.msra.mxu0 0.0
      %4117 = vmatprep.subr.mxu0 0.0
      %4118 = vmatpush1.msra.mxu0 0.0
      %4119 = vmatprep.subr.mxu0 0.0
      %4120 = vmatpush1.msra.mxu0 0.0
      %4121 = vmatprep.subr.mxu0 0.0
      %4122 = vmatpush1.msra.mxu0 0.0
      %4123 = vmatprep.subr.mxu0 0.0
      %4124 = vmatpush1.msra.mxu0 0.0
      %4125 = vmatprep.subr.mxu0 0.0
      %4126 = vmatpush1.msra.mxu0 0.0
      %4127 = vmatprep.subr.mxu0 0.0
      %4128 = vmatpush1.msra.mxu0 0.0
      %4129 = vmatprep.subr.mxu0 0.0
      %4130 = vmatpush1.msra.mxu0 0.0
      %4131 = vmatprep.subr.mxu0 0.0
      %4132 = vmatpush1.msra.mxu0 0.0
      %4133 = vmatprep.subr.mxu0 0.0
      %4134 = vmatpush1.msra.mxu0 0.0
      %4135 = vmatprep.subr.mxu0 0.0
      %4136 = vmatpush1.msra.mxu0 0.0
      %4137 = vmatprep.mubr.f32.mxu0 0.0
      %4138 = vmatmul.mubr.f32.gmra.mrb[0].mxu0 %v4062
      %v4139 = vpop.f32.mrb[0].mxu0
      %v4140 = vadd.f32 0.0, %v4139
      %v4141 = vpop.f32.mrb[0].mxu0
      %v4142 = vadd.f32 0.0, %v4141
      %4143 = vmatprep.mubr.f32.mxu0 0.0
      %4144 = vmatmul.mubr.f32.gmra.mrb[0].mxu0 %v4065
      %v4145 = vpop.f32.mrb[0].mxu0
      %v4146 = vadd.f32 0.0, %v4145
      %v4147 = vpop.f32.mrb[0].mxu0
      %v4148 = vadd.f32 0.0, %v4147
      %4149 = vdwg.mxu0
      %4150 = vmatprep.subr.mxu0 0.0
      %4151 = vmatpush1.msra.mxu0 %v4047
      %4152 = vmatprep.subr.mxu0 0.0
      %4153 = vmatpush1.msra.mxu0 %v4071
      %4154 = vmatprep.subr.mxu0 0.0
      %4155 = vmatpush1.msra.mxu0 0.0
      %4156 = vmatprep.subr.mxu0 0.0
      %4157 = vmatpush1.msra.mxu0 0.0
      %4158 = vmatprep.subr.mxu0 0.0
      %4159 = vmatpush1.msra.mxu0 0.0
      %4160 = vmatprep.subr.mxu0 0.0
      %4161 = vmatpush1.msra.mxu0 0.0
      %4162 = vmatprep.subr.mxu0 0.0
      %4163 = vmatpush1.msra.mxu0 0.0
      %4164 = vmatprep.subr.mxu0 0.0
      %4165 = vmatpush1.msra.mxu0 0.0
      %4166 = vmatprep.subr.mxu0 0.0
      %4167 = vmatpush1.msra.mxu0 0.0
      %4168 = vmatprep.subr.mxu0 0.0
      %4169 = vmatpush1.msra.mxu0 0.0
      %4170 = vmatprep.subr.mxu0 0.0
      %4171 = vmatpush1.msra.mxu0 0.0
      %4172 = vmatprep.subr.mxu0 0.0
      %4173 = vmatpush1.msra.mxu0 0.0
      %4174 = vmatprep.subr.mxu0 0.0
      %4175 = vmatpush1.msra.mxu0 0.0
      %4176 = vmatprep.subr.mxu0 0.0
      %4177 = vmatpush1.msra.mxu0 0.0
      %4178 = vmatprep.subr.mxu0 0.0
      %4179 = vmatpush1.msra.mxu0 0.0
      %4180 = vmatprep.subr.mxu0 0.0
      %4181 = vmatpush1.msra.mxu0 0.0
      %4182 = vmatprep.subr.mxu0 0.0
      %4183 = vmatpush1.msra.mxu0 0.0
      %4184 = vmatprep.subr.mxu0 0.0
      %4185 = vmatpush1.msra.mxu0 0.0
      %4186 = vmatprep.subr.mxu0 0.0
      %4187 = vmatpush1.msra.mxu0 0.0
      %4188 = vmatprep.subr.mxu0 0.0
      %4189 = vmatpush1.msra.mxu0 0.0
      %4190 = vmatprep.subr.mxu0 0.0
      %4191 = vmatpush1.msra.mxu0 0.0
      %4192 = vmatprep.subr.mxu0 0.0
      %4193 = vmatpush1.msra.mxu0 0.0
      %4194 = vmatprep.subr.mxu0 0.0
      %4195 = vmatpush1.msra.mxu0 0.0
      %4196 = vmatprep.subr.mxu0 0.0
      %4197 = vmatpush1.msra.mxu0 0.0
      %4198 = vmatprep.subr.mxu0 0.0
      %4199 = vmatpush1.msra.mxu0 0.0
      %4200 = vmatprep.subr.mxu0 0.0
      %4201 = vmatpush1.msra.mxu0 0.0
      %4202 = vmatprep.subr.mxu0 0.0
      %4203 = vmatpush1.msra.mxu0 0.0
      %4204 = vmatprep.subr.mxu0 0.0
      %4205 = vmatpush1.msra.mxu0 0.0
      %4206 = vmatprep.subr.mxu0 0.0
      %4207 = vmatpush1.msra.mxu0 0.0
      %4208 = vmatprep.subr.mxu0 0.0
      %4209 = vmatpush1.msra.mxu0 0.0
      %4210 = vmatprep.subr.mxu0 0.0
      %4211 = vmatpush1.msra.mxu0 0.0
      %4212 = vmatprep.subr.mxu0 0.0
      %4213 = vmatpush1.msra.mxu0 0.0
      %4214 = vmatprep.mubr.f32.mxu0 0.0
      %4215 = vmatmul.mubr.f32.gmra.mrb[0].mxu0 %v4062
      %v4216 = vpop.f32.mrb[0].mxu0
      %v4217 = vadd.f32 0.0, %v4216
      %v4218 = vpop.f32.mrb[0].mxu0
      %4219 = vmatprep.mubr.f32.mxu0 0.0
      %4220 = vmatmul.mubr.f32.gmra.mrb[0].mxu0 %v4065
      %v4221 = vpop.f32.mrb[0].mxu0
      %v4222 = vadd.f32 0.0, %v4221
      %v4223 = vpop.f32.mrb[0].mxu0
      %4224 = vdwg.mxu0
      %v4225 = vadd.f32 %v4033, %v4140
      %v4226 = vadd.f32 %v4034, %v4142
      %v4227 = vadd.f32 %v4035, %v4217
      %v4228 = vadd.f32 %v4036, %v4146
      %v4229 = vadd.f32 %v4037, %v4148
      %v4230 = vadd.f32 %v4038, %v4222
      %s4231 = scalar_lea.vmem %s3, 128
      %v4232 = vld [vmem:[%s4231] sm:$0xff]
      %v4233 = vld [vmem:[%s4231 + $0x8] sm:$0xf]
      %4234 = vrot.lane.b32.xlu0 %v2718, 90
      %v4235 = vpop.permute.xlu0 %4234
      %4236 = vrot.lane.b32.xlu0 %v2709, 90
      %v4237 = vpop.permute.xlu0 %4236
      %4238 = vrot.lane.b32.xlu0 %v2721, 90
      %v4239 = vpop.permute.xlu0 %4238
      %4240 = vrot.lane.b32.xlu0 %v2719, 90
      %v4241 = vpop.permute.xlu0 %4240
      %4242 = vrot.lane.b32.xlu0 %v2711, 90
      %v4243 = vpop.permute.xlu0 %4242
      %4244 = vrot.lane.b32.xlu0 %v2722, 90
      %v4245 = vpop.permute.xlu0 %4244
      %v4246 = vsel %vm2244, %v4235, %v4237
      %v4247 = vsel %vm2244, %v4237, %v4239
      %v4248 = vsel %vm2244, %v4241, %v4243
      %v4249 = vsel %vm2244, %v4243, %v4245
      %v4254 = vsel %vm2456, %v4232, 0
      %v4257 = vsel %vm2456, %v4233, 0
      %v4259 = vsel %vm2463, %v4248, 0
      %v4261 = vsel %vm2463, %v4249, 0
      %v4263 = vsel %vm2463, %v4245, 0
      %4265 = vmatprep.subr.mxu0 %v4247
      %4266 = vmatpush1.msra.mxu0 %v4246
      %4267 = vmatprep.subr.mxu0 %v4261
      %4268 = vmatpush1.msra.mxu0 %v4259
      %4269 = vmatprep.subr.mxu0 0.0
      %4270 = vmatpush1.msra.mxu0 0.0
      %4271 = vmatprep.subr.mxu0 0.0
      %4272 = vmatpush1.msra.mxu0 0.0
      %4273 = vmatprep.subr.mxu0 0.0
      %4274 = vmatpush1.msra.mxu0 0.0
      %4275 = vmatprep.subr.mxu0 0.0
      %4276 = vmatpush1.msra.mxu0 0.0
      %4277 = vmatprep.subr.mxu0 0.0
      %4278 = vmatpush1.msra.mxu0 0.0
      %4279 = vmatprep.subr.mxu0 0.0
      %4280 = vmatpush1.msra.mxu0 0.0
      %4281 = vmatprep.subr.mxu0 0.0
      %4282 = vmatpush1.msra.mxu0 0.0
      %4283 = vmatprep.subr.mxu0 0.0
      %4284 = vmatpush1.msra.mxu0 0.0
      %4285 = vmatprep.subr.mxu0 0.0
      %4286 = vmatpush1.msra.mxu0 0.0
      %4287 = vmatprep.subr.mxu0 0.0
      %4288 = vmatpush1.msra.mxu0 0.0
      %4289 = vmatprep.subr.mxu0 0.0
      %4290 = vmatpush1.msra.mxu0 0.0
      %4291 = vmatprep.subr.mxu0 0.0
      %4292 = vmatpush1.msra.mxu0 0.0
      %4293 = vmatprep.subr.mxu0 0.0
      %4294 = vmatpush1.msra.mxu0 0.0
      %4295 = vmatprep.subr.mxu0 0.0
      %4296 = vmatpush1.msra.mxu0 0.0
      %4297 = vmatprep.subr.mxu0 0.0
      %4298 = vmatpush1.msra.mxu0 0.0
      %4299 = vmatprep.subr.mxu0 0.0
      %4300 = vmatpush1.msra.mxu0 0.0
      %4301 = vmatprep.subr.mxu0 0.0
      %4302 = vmatpush1.msra.mxu0 0.0
      %4303 = vmatprep.subr.mxu0 0.0
      %4304 = vmatpush1.msra.mxu0 0.0
      %4305 = vmatprep.subr.mxu0 0.0
      %4306 = vmatpush1.msra.mxu0 0.0
      %4307 = vmatprep.subr.mxu0 0.0
      %4308 = vmatpush1.msra.mxu0 0.0
      %4309 = vmatprep.subr.mxu0 0.0
      %4310 = vmatpush1.msra.mxu0 0.0
      %4311 = vmatprep.subr.mxu0 0.0
      %4312 = vmatpush1.msra.mxu0 0.0
      %4313 = vmatprep.subr.mxu0 0.0
      %4314 = vmatpush1.msra.mxu0 0.0
      %4315 = vmatprep.subr.mxu0 0.0
      %4316 = vmatpush1.msra.mxu0 0.0
      %4317 = vmatprep.subr.mxu0 0.0
      %4318 = vmatpush1.msra.mxu0 0.0
      %4319 = vmatprep.subr.mxu0 0.0
      %4320 = vmatpush1.msra.mxu0 0.0
      %4321 = vmatprep.subr.mxu0 0.0
      %4322 = vmatpush1.msra.mxu0 0.0
      %4323 = vmatprep.subr.mxu0 0.0
      %4324 = vmatpush1.msra.mxu0 0.0
      %4325 = vmatprep.subr.mxu0 0.0
      %4326 = vmatpush1.msra.mxu0 0.0
      %4327 = vmatprep.subr.mxu0 0.0
      %4328 = vmatpush1.msra.mxu0 0.0
      %4329 = vmatprep.mubr.f32.mxu0 0.0
      %4330 = vmatmul.mubr.f32.gmra.mrb[0].mxu0 %v4254
      %v4331 = vpop.f32.mrb[0].mxu0
      %v4332 = vadd.f32 0.0, %v4331
      %v4333 = vpop.f32.mrb[0].mxu0
      %v4334 = vadd.f32 0.0, %v4333
      %4335 = vmatprep.mubr.f32.mxu0 0.0
      %4336 = vmatmul.mubr.f32.gmra.mrb[0].mxu0 %v4257
      %v4337 = vpop.f32.mrb[0].mxu0
      %v4338 = vadd.f32 0.0, %v4337
      %v4339 = vpop.f32.mrb[0].mxu0
      %v4340 = vadd.f32 0.0, %v4339
      %4341 = vdwg.mxu0
      %4342 = vmatprep.subr.mxu0 0.0
      %4343 = vmatpush1.msra.mxu0 %v4239
      %4344 = vmatprep.subr.mxu0 0.0
      %4345 = vmatpush1.msra.mxu0 %v4263
      %4346 = vmatprep.subr.mxu0 0.0
      %4347 = vmatpush1.msra.mxu0 0.0
      %4348 = vmatprep.subr.mxu0 0.0
      %4349 = vmatpush1.msra.mxu0 0.0
      %4350 = vmatprep.subr.mxu0 0.0
      %4351 = vmatpush1.msra.mxu0 0.0
      %4352 = vmatprep.subr.mxu0 0.0
      %4353 = vmatpush1.msra.mxu0 0.0
      %4354 = vmatprep.subr.mxu0 0.0
      %4355 = vmatpush1.msra.mxu0 0.0
      %4356 = vmatprep.subr.mxu0 0.0
      %4357 = vmatpush1.msra.mxu0 0.0
      %4358 = vmatprep.subr.mxu0 0.0
      %4359 = vmatpush1.msra.mxu0 0.0
      %4360 = vmatprep.subr.mxu0 0.0
      %4361 = vmatpush1.msra.mxu0 0.0
      %4362 = vmatprep.subr.mxu0 0.0
      %4363 = vmatpush1.msra.mxu0 0.0
      %4364 = vmatprep.subr.mxu0 0.0
      %4365 = vmatpush1.msra.mxu0 0.0
      %4366 = vmatprep.subr.mxu0 0.0
      %4367 = vmatpush1.msra.mxu0 0.0
      %4368 = vmatprep.subr.mxu0 0.0
      %4369 = vmatpush1.msra.mxu0 0.0
      %4370 = vmatprep.subr.mxu0 0.0
      %4371 = vmatpush1.msra.mxu0 0.0
      %4372 = vmatprep.subr.mxu0 0.0
      %4373 = vmatpush1.msra.mxu0 0.0
      %4374 = vmatprep.subr.mxu0 0.0
      %4375 = vmatpush1.msra.mxu0 0.0
      %4376 = vmatprep.subr.mxu0 0.0
      %4377 = vmatpush1.msra.mxu0 0.0
      %4378 = vmatprep.subr.mxu0 0.0
      %4379 = vmatpush1.msra.mxu0 0.0
      %4380 = vmatprep.subr.mxu0 0.0
      %4381 = vmatpush1.msra.mxu0 0.0
      %4382 = vmatprep.subr.mxu0 0.0
      %4383 = vmatpush1.msra.mxu0 0.0
      %4384 = vmatprep.subr.mxu0 0.0
      %4385 = vmatpush1.msra.mxu0 0.0
      %4386 = vmatprep.subr.mxu0 0.0
      %4387 = vmatpush1.msra.mxu0 0.0
      %4388 = vmatprep.subr.mxu0 0.0
      %4389 = vmatpush1.msra.mxu0 0.0
      %4390 = vmatprep.subr.mxu0 0.0
      %4391 = vmatpush1.msra.mxu0 0.0
      %4392 = vmatprep.subr.mxu0 0.0
      %4393 = vmatpush1.msra.mxu0 0.0
      %4394 = vmatprep.subr.mxu0 0.0
      %4395 = vmatpush1.msra.mxu0 0.0
      %4396 = vmatprep.subr.mxu0 0.0
      %4397 = vmatpush1.msra.mxu0 0.0
      %4398 = vmatprep.subr.mxu0 0.0
      %4399 = vmatpush1.msra.mxu0 0.0
      %4400 = vmatprep.subr.mxu0 0.0
      %4401 = vmatpush1.msra.mxu0 0.0
      %4402 = vmatprep.subr.mxu0 0.0
      %4403 = vmatpush1.msra.mxu0 0.0
      %4404 = vmatprep.subr.mxu0 0.0
      %4405 = vmatpush1.msra.mxu0 0.0
      %4406 = vmatprep.mubr.f32.mxu0 0.0
      %4407 = vmatmul.mubr.f32.gmra.mrb[0].mxu0 %v4254
      %v4408 = vpop.f32.mrb[0].mxu0
      %v4409 = vadd.f32 0.0, %v4408
      %v4410 = vpop.f32.mrb[0].mxu0
      %4411 = vmatprep.mubr.f32.mxu0 0.0
      %4412 = vmatmul.mubr.f32.gmra.mrb[0].mxu0 %v4257
      %v4413 = vpop.f32.mrb[0].mxu0
      %v4414 = vadd.f32 0.0, %v4413
      %v4415 = vpop.f32.mrb[0].mxu0
      %4416 = vdwg.mxu0
      %v4417 = vadd.f32 %v4225, %v4332
      %v4418 = vadd.f32 %v4226, %v4334
      %v4419 = vadd.f32 %v4227, %v4409
      %v4420 = vadd.f32 %v4228, %v4338
      %v4421 = vadd.f32 %v4229, %v4340
      %v4422 = vadd.f32 %v4230, %v4414
      %v4423 = vld [vmem:[%s5] sm:$0xff]
      %v4424 = vld [vmem:[%s5 + $0x8] sm:$0xf]
      %4434 = vrot.lane.b32.xlu0 %v387, 109
      %v4435 = vpop.permute.xlu0 %4434
      %4436 = vrot.lane.b32.xlu0 %v388, 109
      %v4437 = vpop.permute.xlu0 %4436
      %4438 = vrot.lane.b32.xlu0 %v389, 109
      %v4439 = vpop.permute.xlu0 %4438
      %4440 = vrot.lane.b32.xlu0 %v390, 109
      %v4441 = vpop.permute.xlu0 %4440
      %4442 = vrot.lane.b32.xlu0 %v391, 109
      %v4443 = vpop.permute.xlu0 %4442
      %4444 = vrot.lane.b32.xlu0 %v392, 109
      %v4445 = vpop.permute.xlu0 %4444
      %4446 = vrot.lane.b32.xlu0 %v393, 109
      %v4447 = vpop.permute.xlu0 %4446
      %4448 = vrot.lane.b32.xlu0 %v394, 109
      %v4449 = vpop.permute.xlu0 %4448
      %4450 = vrot.lane.b32.xlu0 %v395, 109
      %v4451 = vpop.permute.xlu0 %4450
      %v4452 = vsel %vm1440, %v4435, %v4437
      %v4453 = vsel %vm1440, %v4437, %v4439
      %v4454 = vsel %vm1440, %v4441, %v4443
      %v4455 = vsel %vm1440, %v4443, %v4445
      %v4456 = vsel %vm1440, %v4447, %v4449
      %v4457 = vsel %vm1440, %v4449, %v4451
      %v4468 = vsel %vm417, %v4423, 0
      %v4471 = vsel %vm417, %v4424, 0
      %4473 = vmatprep.subr.mxu0 %v4453
      %4474 = vmatpush1.msra.mxu0 %v4452
      %4475 = vmatprep.subr.mxu0 %v4455
      %4476 = vmatpush1.msra.mxu0 %v4454
      %4477 = vmatprep.subr.mxu0 %v4457
      %4478 = vmatpush1.msra.mxu0 %v4456
      %4479 = vmatprep.subr.mxu0 0.0
      %4480 = vmatpush1.msra.mxu0 0.0
      %4481 = vmatprep.subr.mxu0 0.0
      %4482 = vmatpush1.msra.mxu0 0.0
      %4483 = vmatprep.subr.mxu0 0.0
      %4484 = vmatpush1.msra.mxu0 0.0
      %4485 = vmatprep.subr.mxu0 0.0
      %4486 = vmatpush1.msra.mxu0 0.0
      %4487 = vmatprep.subr.mxu0 0.0
      %4488 = vmatpush1.msra.mxu0 0.0
      %4489 = vmatprep.subr.mxu0 0.0
      %4490 = vmatpush1.msra.mxu0 0.0
      %4491 = vmatprep.subr.mxu0 0.0
      %4492 = vmatpush1.msra.mxu0 0.0
      %4493 = vmatprep.subr.mxu0 0.0
      %4494 = vmatpush1.msra.mxu0 0.0
      %4495 = vmatprep.subr.mxu0 0.0
      %4496 = vmatpush1.msra.mxu0 0.0
      %4497 = vmatprep.subr.mxu0 0.0
      %4498 = vmatpush1.msra.mxu0 0.0
      %4499 = vmatprep.subr.mxu0 0.0
      %4500 = vmatpush1.msra.mxu0 0.0
      %4501 = vmatprep.subr.mxu0 0.0
      %4502 = vmatpush1.msra.mxu0 0.0
      %4503 = vmatprep.subr.mxu0 0.0
      %4504 = vmatpush1.msra.mxu0 0.0
      %4505 = vmatprep.subr.mxu0 0.0
      %4506 = vmatpush1.msra.mxu0 0.0
      %4507 = vmatprep.subr.mxu0 0.0
      %4508 = vmatpush1.msra.mxu0 0.0
      %4509 = vmatprep.subr.mxu0 0.0
      %4510 = vmatpush1.msra.mxu0 0.0
      %4511 = vmatprep.subr.mxu0 0.0
      %4512 = vmatpush1.msra.mxu0 0.0
      %4513 = vmatprep.subr.mxu0 0.0
      %4514 = vmatpush1.msra.mxu0 0.0
      %4515 = vmatprep.subr.mxu0 0.0
      %4516 = vmatpush1.msra.mxu0 0.0
      %4517 = vmatprep.subr.mxu0 0.0
      %4518 = vmatpush1.msra.mxu0 0.0
      %4519 = vmatprep.subr.mxu0 0.0
      %4520 = vmatpush1.msra.mxu0 0.0
      %4521 = vmatprep.subr.mxu0 0.0
      %4522 = vmatpush1.msra.mxu0 0.0
      %4523 = vmatprep.subr.mxu0 0.0
      %4524 = vmatpush1.msra.mxu0 0.0
      %4525 = vmatprep.subr.mxu0 0.0
      %4526 = vmatpush1.msra.mxu0 0.0
      %4527 = vmatprep.subr.mxu0 0.0
      %4528 = vmatpush1.msra.mxu0 0.0
      %4529 = vmatprep.subr.mxu0 0.0
      %4530 = vmatpush1.msra.mxu0 0.0
      %4531 = vmatprep.subr.mxu0 0.0
      %4532 = vmatpush1.msra.mxu0 0.0
      %4533 = vmatprep.subr.mxu0 0.0
      %4534 = vmatpush1.msra.mxu0 0.0
      %4535 = vmatprep.subr.mxu0 0.0
      %4536 = vmatpush1.msra.mxu0 0.0
      %4537 = vmatprep.mubr.f32.mxu0 0.0
      %4538 = vmatmul.mubr.f32.gmra.mrb[0].mxu0 %v4468
      %v4539 = vpop.f32.mrb[0].mxu0
      %v4540 = vadd.f32 0.0, %v4539
      %v4541 = vpop.f32.mrb[0].mxu0
      %v4542 = vadd.f32 0.0, %v4541
      %4543 = vmatprep.mubr.f32.mxu0 0.0
      %4544 = vmatmul.mubr.f32.gmra.mrb[0].mxu0 %v4471
      %v4545 = vpop.f32.mrb[0].mxu0
      %v4546 = vadd.f32 0.0, %v4545
      %v4547 = vpop.f32.mrb[0].mxu0
      %v4548 = vadd.f32 0.0, %v4547
      %4549 = vdwg.mxu0
      %4550 = vmatprep.subr.mxu0 0.0
      %4551 = vmatpush1.msra.mxu0 %v4439
      %4552 = vmatprep.subr.mxu0 0.0
      %4553 = vmatpush1.msra.mxu0 %v4445
      %4554 = vmatprep.subr.mxu0 0.0
      %4555 = vmatpush1.msra.mxu0 %v4451
      %4556 = vmatprep.subr.mxu0 0.0
      %4557 = vmatpush1.msra.mxu0 0.0
      %4558 = vmatprep.subr.mxu0 0.0
      %4559 = vmatpush1.msra.mxu0 0.0
      %4560 = vmatprep.subr.mxu0 0.0
      %4561 = vmatpush1.msra.mxu0 0.0
      %4562 = vmatprep.subr.mxu0 0.0
      %4563 = vmatpush1.msra.mxu0 0.0
      %4564 = vmatprep.subr.mxu0 0.0
      %4565 = vmatpush1.msra.mxu0 0.0
      %4566 = vmatprep.subr.mxu0 0.0
      %4567 = vmatpush1.msra.mxu0 0.0
      %4568 = vmatprep.subr.mxu0 0.0
      %4569 = vmatpush1.msra.mxu0 0.0
      %4570 = vmatprep.subr.mxu0 0.0
      %4571 = vmatpush1.msra.mxu0 0.0
      %4572 = vmatprep.subr.mxu0 0.0
      %4573 = vmatpush1.msra.mxu0 0.0
      %4574 = vmatprep.subr.mxu0 0.0
      %4575 = vmatpush1.msra.mxu0 0.0
      %4576 = vmatprep.subr.mxu0 0.0
      %4577 = vmatpush1.msra.mxu0 0.0
      %4578 = vmatprep.subr.mxu0 0.0
      %4579 = vmatpush1.msra.mxu0 0.0
      %4580 = vmatprep.subr.mxu0 0.0
      %4581 = vmatpush1.msra.mxu0 0.0
      %4582 = vmatprep.subr.mxu0 0.0
      %4583 = vmatpush1.msra.mxu0 0.0
      %4584 = vmatprep.subr.mxu0 0.0
      %4585 = vmatpush1.msra.mxu0 0.0
      %4586 = vmatprep.subr.mxu0 0.0
      %4587 = vmatpush1.msra.mxu0 0.0
      %4588 = vmatprep.subr.mxu0 0.0
      %4589 = vmatpush1.msra.mxu0 0.0
      %4590 = vmatprep.subr.mxu0 0.0
      %4591 = vmatpush1.msra.mxu0 0.0
      %4592 = vmatprep.subr.mxu0 0.0
      %4593 = vmatpush1.msra.mxu0 0.0
      %4594 = vmatprep.subr.mxu0 0.0
      %4595 = vmatpush1.msra.mxu0 0.0
      %4596 = vmatprep.subr.mxu0 0.0
      %4597 = vmatpush1.msra.mxu0 0.0
      %4598 = vmatprep.subr.mxu0 0.0
      %4599 = vmatpush1.msra.mxu0 0.0
      %4600 = vmatprep.subr.mxu0 0.0
      %4601 = vmatpush1.msra.mxu0 0.0
      %4602 = vmatprep.subr.mxu0 0.0
      %4603 = vmatpush1.msra.mxu0 0.0
      %4604 = vmatprep.subr.mxu0 0.0
      %4605 = vmatpush1.msra.mxu0 0.0
      %4606 = vmatprep.subr.mxu0 0.0
      %4607 = vmatpush1.msra.mxu0 0.0
      %4608 = vmatprep.subr.mxu0 0.0
      %4609 = vmatpush1.msra.mxu0 0.0
      %4610 = vmatprep.subr.mxu0 0.0
      %4611 = vmatpush1.msra.mxu0 0.0
      %4612 = vmatprep.subr.mxu0 0.0
      %4613 = vmatpush1.msra.mxu0 0.0
      %4614 = vmatprep.mubr.f32.mxu0 0.0
      %4615 = vmatmul.mubr.f32.gmra.mrb[0].mxu0 %v4468
      %v4616 = vpop.f32.mrb[0].mxu0
      %v4617 = vadd.f32 0.0, %v4616
      %v4618 = vpop.f32.mrb[0].mxu0
      %4619 = vmatprep.mubr.f32.mxu0 0.0
      %4620 = vmatmul.mubr.f32.gmra.mrb[0].mxu0 %v4471
      %v4621 = vpop.f32.mrb[0].mxu0
      %v4622 = vadd.f32 0.0, %v4621
      %v4623 = vpop.f32.mrb[0].mxu0
      %4624 = vdwg.mxu0
      %v4625 = vadd.f32 %v4417, %v4540
      %v4626 = vadd.f32 %v4418, %v4542
      %v4627 = vadd.f32 %v4419, %v4617
      %v4628 = vadd.f32 %v4420, %v4546
      %v4629 = vadd.f32 %v4421, %v4548
      %v4630 = vadd.f32 %v4422, %v4622
      %v4631 = vld [vmem:[%s4] sm:$0xff]
      %v4632 = vld [vmem:[%s4 + $0x8] sm:$0xf]
      %4634 = vset.pattern.permute.xlu0 0
      %4635 = vperm.xlu0 %4634, %v4631
      %v4636 = vpop.permute.xlu0 %4635
      %4639 = vset.pattern.permute.xlu0 0
      %4640 = vperm.xlu0 %4639, %v4632
      %v4641 = vpop.permute.xlu0 %4640
      %v4643 = vadd.f32 %v4625, %v4636
      %v4644 = vadd.f32 %v4626, %v4636
      %v4645 = vadd.f32 %v4627, %v4636
      %v4646 = vadd.f32 %v4628, %v4641
      %v4647 = vadd.f32 %v4629, %v4641
      %v4648 = vadd.f32 %v4630, %v4641
      %4649 = vst [vmem:[%s386] sm:$0xff] %v4643
      %4650 = vst [vmem:[%s386 + $0x8] sm:$0xff] %v4644
      %vm4651 = vcmask 261120
      %4652 = vst.msk [vmem:[%s386 + $0x10] sm:$0xff] %vm4651, %v4645
      %4653 = vst [vmem:[%s386 + $0x18] sm:$0xf] %v4646
      %4654 = vst [vmem:[%s386 + $0x20] sm:$0xf] %v4647
      %vm4655 = vcmask 257024
      %4656 = vst.msk [vmem:[%s386 + $0x28] sm:$0xf] %vm4655, %v4648
      %p4657 = scmp.lt.s32.totalorder %s22, 1
      %s4658 = scalar_select %p4657, %s22, 1
      %s4659 = smul.addr %s4658, 6
      %s4660 = smul.addr %s4659, 8
      %s4661 = scalar_lea.vmem %s11, %s4660
      // Predicated region
      $region65: #{clifford_g3_upblock_forward.1} parent=63 // pred_check
        %p4662 = pneg %p276
      $region66: #{clifford_g3_upblock_forward.1} parent=63 // pred_check_branch
        %4664 = sbr.rel (%p4662) target = $region68
      $region67: #{clifford_g3_upblock_forward.1} parent=63 // pred_region
        _
      $region68: #{clifford_g3_upblock_forward.1} parent=63 // pred_fallthru
        _
    $region64: #{clifford_g3_upblock_forward.1} parent=5 // pred_fallthru
      _
    %p4665 = scmp.le.s32.totalorder 2, %s17
    // Predicated region
    $region69: #{clifford_g3_upblock_forward.1} parent=5 // pred_check
      %p4666 = pneg %p4665
    $region70: #{clifford_g3_upblock_forward.1} parent=5 // pred_check_branch
      %4668 = sbr.rel (%p4666) target = $region72
    $region71: #{clifford_g3_upblock_forward.1} parent=5 // pred_region
      %s4669 = ssub.s32 %s17, 2
      // Predicated region
      $region73: #{clifford_g3_upblock_forward.1} parent=71 // pred_check
        %p4670 = pneg %p282
      $region74: #{clifford_g3_upblock_forward.1} parent=71 // pred_check_branch
        %4672 = sbr.rel (%p4670) target = $region76
      $region75: #{clifford_g3_upblock_forward.1} parent=71 // pred_region
        %p4673 = scmp.lt.s32.totalorder %s23, 1
        %s4674 = scalar_select %p4673, %s23, 1
        %s4675 = smul.addr %s4674, 6
        %s4676 = smul.addr %s4675, 8
        %s4677 = scalar_lea.vmem %s11, %s4676
      $region76: #{clifford_g3_upblock_forward.1} parent=71 // pred_fallthru
        _
    $region72: #{clifford_g3_upblock_forward.1} parent=5 // pred_fallthru
      _
  $region6: #{clifford_g3_upblock_forward.1} parent=0 // loop_footer
    %s21 = sadd.s32 1, %s17
  $region7: #{clifford_g3_upblock_forward.1} parent=0 // loop_footer_branch
    %16 = sbr.rel target = $region3
  $region8: #{clifford_g3_upblock_forward.1} parent=0 // loop_exit
    _

</llo_original>
